<compile_context>
chip_gen: v6e
topology: v6e:2x2x1
jax: 0.10.0
libtpu: 0.0.40
codegen_flags: <defaults>
</compile_context>

<pallas_src>
import jax
import jax.numpy as jnp
from jax.experimental import pallas as pl
from jax.experimental.pallas import tpu as pltpu

BATCH_SIZE = 200        # module constant (multiple of 8 sublanes)
DROP_PROB = 0.1
RHO_INIT = -100.0       # log-variance parameter init from the module (-100)
BN_EPS = 1e-5
PAD = 128               # lane width: all output feature dims padded to this
K_ALIGN = 16            # bf16 sublane tile: pad each layer's fan-in to this


# --------------------------------------------------------------------------
# Static layer configuration (13-layer chain of the reference forward).
# --------------------------------------------------------------------------
def _layer_cfg(name, n_in, n_out, *, pool, bn, affine, relu, drop):
    return dict(name=name, n_in=n_in, n_out=n_out, pool=pool,
                bn=bn, affine=affine, relu=relu, drop=drop)


def _build_layer_configs():
    # hierarchy node counts n0..n6 (stand-ins for the index** matrix shapes)
    s = [64, 32, 32, 16, 16, 8, 8]
    cfgs = []
    # slin0 -> batch0l -> relu -> dropout
    cfgs.append(_layer_cfg("slin0", s[0], s[0], pool=False,
                           bn=True, affine=True, relu=True, drop=True))
    for lvl in range(1, 7):
        last = (lvl == 6)
        # spool{lvl}: masked mean-pool matmul, no BN/ReLU/dropout in forward
        cfgs.append(_layer_cfg(f"spool{lvl}", s[lvl - 1], s[lvl], pool=True,
                               bn=False, affine=False, relu=False, drop=False))
        # slin{lvl} -> batch{lvl}l (-> relu -> dropout, except the last level,
        # whose BatchNorm is affine=False and has no relu/dropout after it)
        cfgs.append(_layer_cfg(f"slin{lvl}", s[lvl], s[lvl], pool=False,
                               bn=True, affine=not last,
                               relu=not last, drop=not last))
    return tuple(cfgs)


LAYER_CONFIGS = _build_layer_configs()
NUM_LAYERS = len(LAYER_CONFIGS)
NUM_AFFINE = sum(c["affine"] for c in LAYER_CONFIGS)   # 6 (slin0..slin5)
NUM_DROPOUT = sum(c["drop"] for c in LAYER_CONFIGS)    # 6 (after slin0..slin5)
N_OUT_FINAL = LAYER_CONFIGS[-1]["n_out"]

# Per-layer fan-in padded to the bf16 sublane tile, and static offsets into
# the single concatenated (TOTAL_K, PAD) weight buffer.
def _round_up(v, m):
    return ((v + m - 1) // m) * m

K_PADS = tuple(int(_round_up(c["n_in"], K_ALIGN)) for c in LAYER_CONFIGS)
K_OFFS = []
_off = 0
for _kp in K_PADS:
    K_OFFS.append(_off)
    _off += _kp
K_OFFS = tuple(K_OFFS)
TOTAL_K = _off                      # 368 rows -> ~92 KiB of bf16 weights


# --------------------------------------------------------------------------
# The single fused kernel: statically unrolled 13-layer chain.
#   x_ref     : (B, PAD)              f32   (lanes >= n_in are zero)
#   w_ref     : (TOTAL_K, PAD)        bf16  (per-layer K-compacted weights)
#   gamma_ref : (NUM_AFFINE, PAD)     f32
#   beta_ref  : (NUM_AFFINE, PAD)     f32
#   drop_ref  : (NUM_DROPOUT, B, PAD) bf16  (precomputed 0 / 1/(1-p) masks)
#   out_ref   : (B, PAD)              f32
# All 7 biases were dropped: training-mode BN's mean subtraction cancels any
# pre-BN per-feature bias exactly, so the output is independent of them.
# --------------------------------------------------------------------------
def fused_encoder_kernel(x_ref, w_ref, gamma_ref, beta_ref, drop_ref, out_ref):
    h = x_ref[...]                                     # (B, PAD) f32
    a_i = d_i = 0
    for li, cfg in enumerate(LAYER_CONFIGS):
        kp, off = K_PADS[li], K_OFFS[li]
        w = w_ref[off:off + kp, :]                     # (kp, PAD) bf16, static
        hs = h[:, :kp].astype(jnp.bfloat16)            # bf16 only for the MXU
        y = jnp.dot(hs, w, preferred_element_type=jnp.float32)   # (B, PAD) f32
        if cfg["bn"]:
            # training-mode BatchNorm1d: biased batch statistics
            # TODO(synk): running_mean/running_var (eval-mode stats) not tracked.
            mean = jnp.mean(y, axis=0, keepdims=True)
            var = jnp.mean(jnp.square(y - mean), axis=0, keepdims=True)
            y = (y - mean) * jax.lax.rsqrt(var + BN_EPS)
            if cfg["affine"]:
                y = y * gamma_ref[a_i:a_i + 1, :] + beta_ref[a_i:a_i + 1, :]
                a_i += 1
        if cfg["relu"]:
            y = jnp.maximum(y, 0.0)
        if cfg["drop"]:
            y = y * drop_ref[d_i].astype(jnp.float32)  # single vmul per layer
            d_i += 1
        h = y
    out_ref[...] = h.astype(out_ref.dtype)


# --------------------------------------------------------------------------
# Parameter init (stand-in for the missing BayesianSparse* classes).
# (No bias parameters: they are mathematically inert under training-mode BN.)
# --------------------------------------------------------------------------
def init_layer_params(key, n_in, n_out):
    kmask, kmu = jax.random.split(key)
    mask = jax.random.bernoulli(kmask, 0.5, (n_in, n_out)).astype(jnp.float32)
    mu = jax.random.normal(kmu, (n_in, n_out), jnp.float32) * 0.1
    rho = jnp.full((n_in, n_out), RHO_INIT, jnp.float32)
    gamma = jnp.ones((n_out,), jnp.float32)
    beta = jnp.zeros((n_out,), jnp.float32)
    return dict(mask=mask, mu=mu, rho=rho, gamma=gamma, beta=beta)


def init_encoder_params(key):
    params = {}
    keys = jax.random.split(key, NUM_LAYERS)
    for k, cfg in zip(keys, LAYER_CONFIGS):
        params[cfg["name"]] = init_layer_params(k, cfg["n_in"], cfg["n_out"])
    return params


# --------------------------------------------------------------------------
# x-independent per-forward work, hoisted out of the kernel into plain XLA:
# sampled effective weights, pooler normalization, K-compacted packing, KL.
# --------------------------------------------------------------------------
def _gaussian_kl(mask, mu, rho):
    # KL( N(mu, sigma^2) || N(0, 1) ) summed over active connections.
    # log(sigma) computed stably for very negative rho (softplus ~ exp(rho)),
    # with both `where` branches kept finite.
    sp = jnp.log1p(jnp.exp(jnp.maximum(rho, -20.0)))
    log_sigma = jnp.where(rho < -10.0, rho, jnp.log(sp))
    sigma2 = jnp.exp(2.0 * log_sigma)
    kl_elem = -log_sigma + 0.5 * (sigma2 + mu * mu) - 0.5
    return jnp.sum(mask * kl_elem)


def _prepare_inputs(params, key):
    w_keys = jax.random.split(key, NUM_LAYERS)
    w_rows, gammas, betas = [], [], []
    kl_tot = jnp.float32(0.0)
    for li, (k, cfg) in enumerate(zip(w_keys, LAYER_CONFIGS)):
        p = params[cfg["name"]]
        mask, mu, rho = p["mask"], p["mu"], p["rho"]
        # Reparameterized Bayes-by-backprop weight sample.
        # With rho = -100, softplus underflows to 0 -> w == mask * mu exactly.
        eps = jax.random.normal(k, mu.shape, jnp.float32)
        w = mask * (mu + jax.nn.softplus(rho) * eps)
        if cfg["pool"]:
            # mean-pool over the fan-in of each output node
            denom = jnp.maximum(jnp.sum(mask, axis=0, keepdims=True), 1.0)
            w = w / denom
        kp = K_PADS[li]
        w_pad = (jnp.zeros((kp, PAD), jnp.float32)
                 .at[:cfg["n_in"], :cfg["n_out"]].set(w))
        w_rows.append(w_pad)
        kl_tot = kl_tot + _gaussian_kl(mask, mu, rho)
        if cfg["affine"]:
            gammas.append(jnp.zeros((PAD,), jnp.float32)
                          .at[:cfg["n_out"]].set(p["gamma"]))
            betas.append(jnp.zeros((PAD,), jnp.float32)
                         .at[:cfg["n_out"]].set(p["beta"]))
    w_cat = jnp.concatenate(w_rows, axis=0).astype(jnp.bfloat16)  # (TOTAL_K, PAD)
    gamma_stack = jnp.stack(gammas)       # (NUM_AFFINE, PAD)  sublane-dense
    beta_stack = jnp.stack(betas)         # (NUM_AFFINE, PAD)
    return w_cat, gamma_stack, beta_stack, kl_tot


# --------------------------------------------------------------------------
# Forward pass: one pallas_call for the whole encoder.
# `key` is a traced jax.random key (no static seed -> no per-step recompile).
# --------------------------------------------------------------------------
@jax.jit
def bayesian_encoder_forward(x, params, key):
    B = x.shape[0]
    assert B % 8 == 0, "batch must be a multiple of 8 sublanes"
    h = x.reshape(B, -1).astype(jnp.float32)       # x.reshape(BATCH_SIZE, -1)
    F = h.shape[1]
    assert F <= PAD
    x_pad = jnp.zeros((B, PAD), jnp.float32).at[:, :F].set(h)

    kw, kd = jax.random.split(key)
    w_cat, gamma_stack, beta_stack, kl_tot = _prepare_inputs(params, kw)

    # Precomputed multiplicative dropout masks (0 or 1/(1-p)), bf16.
    rand = jax.random.uniform(kd, (NUM_DROPOUT, B, PAD), jnp.float32)
    drop_mask = ((rand >= DROP_PROB) * (1.0 / (1.0 - DROP_PROB))
                 ).astype(jnp.bfloat16)

    vmem = pl.BlockSpec(memory_space=pltpu.MemorySpace.VMEM)
    flops = 2 * B * PAD * TOTAL_K
    bytes_accessed = (x_pad.size * 4 + w_cat.size * 2 + gamma_stack.size * 4
                      + beta_stack.size * 4 + drop_mask.size * 2 + B * PAD * 4)
    cost = pl.CostEstimate(flops=flops, transcendentals=7 * PAD,
                           bytes_accessed=bytes_accessed)

    out_pad = pl.pallas_call(
        fused_encoder_kernel,
        out_shape=jax.ShapeDtypeStruct((B, PAD), jnp.float32),
        in_specs=[vmem] * 5,
        out_specs=vmem,
        cost_estimate=cost,
    )(x_pad, w_cat, gamma_stack, beta_stack, drop_mask)

    return out_pad[:, :N_OUT_FINAL], kl_tot


if __name__ == "__main__":
    key = jax.random.PRNGKey(0)
    kx, kp, kfwd = jax.random.split(key, 3)
    # NCHW-ish input; flattened to (BATCH_SIZE, 64) inside the forward
    x = jax.random.normal(kx, (BATCH_SIZE, 4, 4, 4), jnp.float32)
    params = init_encoder_params(kp)

    out, kl_tot = bayesian_encoder_forward(x, params, kfwd)
    jax.block_until_ready((out, kl_tot))

    assert out.shape == (BATCH_SIZE, N_OUT_FINAL), out.shape
    assert bool(jnp.isfinite(out).all()) and bool(jnp.isfinite(kl_tot))
    print("KERNEL_OK")
</pallas_src>

<mosaic_0001>
module attributes {stable_mosaic.version = 11 : i64} {
  func.func @fused_encoder_kernel(%arg0: memref<200x128xf32, #tpu.memory_space<vmem>>, %arg1: memref<368x128xbf16, #tpu.memory_space<vmem>>, %arg2: memref<6x128xf32, #tpu.memory_space<vmem>>, %arg3: memref<6x128xf32, #tpu.memory_space<vmem>>, %arg4: memref<6x200x128xbf16, #tpu.memory_space<vmem>>, %arg5: memref<200x128xf32, #tpu.memory_space<vmem>>) attributes {dimension_semantics = [], scalar_prefetch = 0 : i64, scratch_operands = 0 : i64, tpu.core_type = #tpu.core_type<tc>} {
    %c0 = arith.constant 0 : index
    %c0_0 = arith.constant 0 : index
    %0 = vector.load %arg0[%c0, %c0_0] : memref<200x128xf32, #tpu.memory_space<vmem>>, vector<200x128xf32>
    %c0_1 = arith.constant 0 : index
    %c0_2 = arith.constant 0 : index
    %1 = vector.load %arg1[%c0_1, %c0_2] : memref<368x128xbf16, #tpu.memory_space<vmem>>, vector<64x128xbf16>
    %2 = vector.extract_strided_slice %0 {offsets = [0, 0], sizes = [200, 64], strides = [1, 1]} : vector<200x128xf32> to vector<200x64xf32>
    %3 = arith.truncf %2 : vector<200x64xf32> to vector<200x64xbf16>
    %cst = arith.constant dense<0.000000e+00> : vector<200x128xf32>
    %4 = tpu.matmul %3, %1, %cst {dimension_numbers = #tpu.dot_dimension_numbers<[1], [0], [0], [1], [0, 0, 1, 1], [], []>} : vector<200x64xbf16>, vector<64x128xbf16>, vector<200x128xf32> -> vector<200x128xf32>
    %cst_3 = arith.constant dense<0.000000e+00> : vector<128xf32>
    %5 = vector.multi_reduction <add>, %4, %cst_3 [0] : vector<200x128xf32> to vector<128xf32>
    %6 = vector.shape_cast %5 : vector<128xf32> to vector<1x128xf32>
    %cst_4 = arith.constant 2.000000e+02 : f32
    %7 = vector.broadcast %cst_4 : f32 to vector<1x128xf32>
    %8 = arith.divf %6, %7 : vector<1x128xf32>
    %9 = vector.broadcast %8 : vector<1x128xf32> to vector<200x128xf32>
    %10 = arith.subf %4, %9 : vector<200x128xf32>
    %11 = arith.mulf %10, %10 : vector<200x128xf32>
    %cst_5 = arith.constant dense<0.000000e+00> : vector<128xf32>
    %12 = vector.multi_reduction <add>, %11, %cst_5 [0] : vector<200x128xf32> to vector<128xf32>
    %13 = vector.shape_cast %12 : vector<128xf32> to vector<1x128xf32>
    %cst_6 = arith.constant 2.000000e+02 : f32
    %14 = vector.broadcast %cst_6 : f32 to vector<1x128xf32>
    %15 = arith.divf %13, %14 : vector<1x128xf32>
    %16 = vector.broadcast %8 : vector<1x128xf32> to vector<200x128xf32>
    %17 = arith.subf %4, %16 : vector<200x128xf32>
    %cst_7 = arith.constant 9.99999974E-6 : f32
    %18 = vector.broadcast %cst_7 : f32 to vector<1x128xf32>
    %19 = arith.addf %15, %18 : vector<1x128xf32>
    %20 = math.rsqrt %19 : vector<1x128xf32>
    %21 = vector.broadcast %20 : vector<1x128xf32> to vector<200x128xf32>
    %22 = arith.mulf %17, %21 : vector<200x128xf32>
    %c0_8 = arith.constant 0 : index
    %c0_9 = arith.constant 0 : index
    %23 = vector.load %arg2[%c0_8, %c0_9] : memref<6x128xf32, #tpu.memory_space<vmem>>, vector<1x128xf32>
    %24 = vector.broadcast %23 : vector<1x128xf32> to vector<200x128xf32>
    %25 = arith.mulf %22, %24 : vector<200x128xf32>
    %c0_10 = arith.constant 0 : index
    %c0_11 = arith.constant 0 : index
    %26 = vector.load %arg3[%c0_10, %c0_11] : memref<6x128xf32, #tpu.memory_space<vmem>>, vector<1x128xf32>
    %27 = vector.broadcast %26 : vector<1x128xf32> to vector<200x128xf32>
    %28 = arith.addf %25, %27 : vector<200x128xf32>
    %cst_12 = arith.constant 0.000000e+00 : f32
    %29 = vector.broadcast %cst_12 : f32 to vector<200x128xf32>
    %30 = arith.maximumf %28, %29 : vector<200x128xf32>
    %c0_13 = arith.constant 0 : index
    %c0_14 = arith.constant 0 : index
    %c0_15 = arith.constant 0 : index
    %31 = vector.load %arg4[%c0_13, %c0_14, %c0_15] : memref<6x200x128xbf16, #tpu.memory_space<vmem>>, vector<1x200x128xbf16>
    %32 = vector.shape_cast %31 : vector<1x200x128xbf16> to vector<200x128xbf16>
    %33 = arith.extf %32 : vector<200x128xbf16> to vector<200x128xf32>
    %34 = arith.mulf %30, %33 : vector<200x128xf32>
    %c64 = arith.constant 64 : index
    %c0_16 = arith.constant 0 : index
    %35 = vector.load %arg1[%c64, %c0_16] : memref<368x128xbf16, #tpu.memory_space<vmem>>, vector<64x128xbf16>
    %36 = vector.extract_strided_slice %34 {offsets = [0, 0], sizes = [200, 64], strides = [1, 1]} : vector<200x128xf32> to vector<200x64xf32>
    %37 = arith.truncf %36 : vector<200x64xf32> to vector<200x64xbf16>
    %cst_17 = arith.constant dense<0.000000e+00> : vector<200x128xf32>
    %38 = tpu.matmul %37, %35, %cst_17 {dimension_numbers = #tpu.dot_dimension_numbers<[1], [0], [0], [1], [0, 0, 1, 1], [], []>} : vector<200x64xbf16>, vector<64x128xbf16>, vector<200x128xf32> -> vector<200x128xf32>
    %c128 = arith.constant 128 : index
    %c0_18 = arith.constant 0 : index
    %39 = vector.load %arg1[%c128, %c0_18] : memref<368x128xbf16, #tpu.memory_space<vmem>>, vector<32x128xbf16>
    %40 = vector.extract_strided_slice %38 {offsets = [0, 0], sizes = [200, 32], strides = [1, 1]} : vector<200x128xf32> to vector<200x32xf32>
    %41 = arith.truncf %40 : vector<200x32xf32> to vector<200x32xbf16>
    %cst_19 = arith.constant dense<0.000000e+00> : vector<200x128xf32>
    %42 = tpu.matmul %41, %39, %cst_19 {dimension_numbers = #tpu.dot_dimension_numbers<[1], [0], [0], [1], [0, 0, 1, 1], [], []>} : vector<200x32xbf16>, vector<32x128xbf16>, vector<200x128xf32> -> vector<200x128xf32>
    %cst_20 = arith.constant dense<0.000000e+00> : vector<128xf32>
    %43 = vector.multi_reduction <add>, %42, %cst_20 [0] : vector<200x128xf32> to vector<128xf32>
    %44 = vector.shape_cast %43 : vector<128xf32> to vector<1x128xf32>
    %cst_21 = arith.constant 2.000000e+02 : f32
    %45 = vector.broadcast %cst_21 : f32 to vector<1x128xf32>
    %46 = arith.divf %44, %45 : vector<1x128xf32>
    %47 = vector.broadcast %46 : vector<1x128xf32> to vector<200x128xf32>
    %48 = arith.subf %42, %47 : vector<200x128xf32>
    %49 = arith.mulf %48, %48 : vector<200x128xf32>
    %cst_22 = arith.constant dense<0.000000e+00> : vector<128xf32>
    %50 = vector.multi_reduction <add>, %49, %cst_22 [0] : vector<200x128xf32> to vector<128xf32>
    %51 = vector.shape_cast %50 : vector<128xf32> to vector<1x128xf32>
    %cst_23 = arith.constant 2.000000e+02 : f32
    %52 = vector.broadcast %cst_23 : f32 to vector<1x128xf32>
    %53 = arith.divf %51, %52 : vector<1x128xf32>
    %54 = vector.broadcast %46 : vector<1x128xf32> to vector<200x128xf32>
    %55 = arith.subf %42, %54 : vector<200x128xf32>
    %cst_24 = arith.constant 9.99999974E-6 : f32
    %56 = vector.broadcast %cst_24 : f32 to vector<1x128xf32>
    %57 = arith.addf %53, %56 : vector<1x128xf32>
    %58 = math.rsqrt %57 : vector<1x128xf32>
    %59 = vector.broadcast %58 : vector<1x128xf32> to vector<200x128xf32>
    %60 = arith.mulf %55, %59 : vector<200x128xf32>
    %c1 = arith.constant 1 : index
    %c0_25 = arith.constant 0 : index
    %61 = vector.load %arg2[%c1, %c0_25] : memref<6x128xf32, #tpu.memory_space<vmem>>, vector<1x128xf32>
    %62 = vector.broadcast %61 : vector<1x128xf32> to vector<200x128xf32>
    %63 = arith.mulf %60, %62 : vector<200x128xf32>
    %c1_26 = arith.constant 1 : index
    %c0_27 = arith.constant 0 : index
    %64 = vector.load %arg3[%c1_26, %c0_27] : memref<6x128xf32, #tpu.memory_space<vmem>>, vector<1x128xf32>
    %65 = vector.broadcast %64 : vector<1x128xf32> to vector<200x128xf32>
    %66 = arith.addf %63, %65 : vector<200x128xf32>
    %cst_28 = arith.constant 0.000000e+00 : f32
    %67 = vector.broadcast %cst_28 : f32 to vector<200x128xf32>
    %68 = arith.maximumf %66, %67 : vector<200x128xf32>
    %c1_29 = arith.constant 1 : index
    %c0_30 = arith.constant 0 : index
    %c0_31 = arith.constant 0 : index
    %69 = vector.load %arg4[%c1_29, %c0_30, %c0_31] : memref<6x200x128xbf16, #tpu.memory_space<vmem>>, vector<1x200x128xbf16>
    %70 = vector.shape_cast %69 : vector<1x200x128xbf16> to vector<200x128xbf16>
    %71 = arith.extf %70 : vector<200x128xbf16> to vector<200x128xf32>
    %72 = arith.mulf %68, %71 : vector<200x128xf32>
    %c160 = arith.constant 160 : index
    %c0_32 = arith.constant 0 : index
    %73 = vector.load %arg1[%c160, %c0_32] : memref<368x128xbf16, #tpu.memory_space<vmem>>, vector<32x128xbf16>
    %74 = vector.extract_strided_slice %72 {offsets = [0, 0], sizes = [200, 32], strides = [1, 1]} : vector<200x128xf32> to vector<200x32xf32>
    %75 = arith.truncf %74 : vector<200x32xf32> to vector<200x32xbf16>
    %cst_33 = arith.constant dense<0.000000e+00> : vector<200x128xf32>
    %76 = tpu.matmul %75, %73, %cst_33 {dimension_numbers = #tpu.dot_dimension_numbers<[1], [0], [0], [1], [0, 0, 1, 1], [], []>} : vector<200x32xbf16>, vector<32x128xbf16>, vector<200x128xf32> -> vector<200x128xf32>
    %c192 = arith.constant 192 : index
    %c0_34 = arith.constant 0 : index
    %77 = vector.load %arg1[%c192, %c0_34] : memref<368x128xbf16, #tpu.memory_space<vmem>>, vector<32x128xbf16>
    %78 = vector.extract_strided_slice %76 {offsets = [0, 0], sizes = [200, 32], strides = [1, 1]} : vector<200x128xf32> to vector<200x32xf32>
    %79 = arith.truncf %78 : vector<200x32xf32> to vector<200x32xbf16>
    %cst_35 = arith.constant dense<0.000000e+00> : vector<200x128xf32>
    %80 = tpu.matmul %79, %77, %cst_35 {dimension_numbers = #tpu.dot_dimension_numbers<[1], [0], [0], [1], [0, 0, 1, 1], [], []>} : vector<200x32xbf16>, vector<32x128xbf16>, vector<200x128xf32> -> vector<200x128xf32>
    %cst_36 = arith.constant dense<0.000000e+00> : vector<128xf32>
    %81 = vector.multi_reduction <add>, %80, %cst_36 [0] : vector<200x128xf32> to vector<128xf32>
    %82 = vector.shape_cast %81 : vector<128xf32> to vector<1x128xf32>
    %cst_37 = arith.constant 2.000000e+02 : f32
    %83 = vector.broadcast %cst_37 : f32 to vector<1x128xf32>
    %84 = arith.divf %82, %83 : vector<1x128xf32>
    %85 = vector.broadcast %84 : vector<1x128xf32> to vector<200x128xf32>
    %86 = arith.subf %80, %85 : vector<200x128xf32>
    %87 = arith.mulf %86, %86 : vector<200x128xf32>
    %cst_38 = arith.constant dense<0.000000e+00> : vector<128xf32>
    %88 = vector.multi_reduction <add>, %87, %cst_38 [0] : vector<200x128xf32> to vector<128xf32>
    %89 = vector.shape_cast %88 : vector<128xf32> to vector<1x128xf32>
    %cst_39 = arith.constant 2.000000e+02 : f32
    %90 = vector.broadcast %cst_39 : f32 to vector<1x128xf32>
    %91 = arith.divf %89, %90 : vector<1x128xf32>
    %92 = vector.broadcast %84 : vector<1x128xf32> to vector<200x128xf32>
    %93 = arith.subf %80, %92 : vector<200x128xf32>
    %cst_40 = arith.constant 9.99999974E-6 : f32
    %94 = vector.broadcast %cst_40 : f32 to vector<1x128xf32>
    %95 = arith.addf %91, %94 : vector<1x128xf32>
    %96 = math.rsqrt %95 : vector<1x128xf32>
    %97 = vector.broadcast %96 : vector<1x128xf32> to vector<200x128xf32>
    %98 = arith.mulf %93, %97 : vector<200x128xf32>
    %c2 = arith.constant 2 : index
    %c0_41 = arith.constant 0 : index
    %99 = vector.load %arg2[%c2, %c0_41] : memref<6x128xf32, #tpu.memory_space<vmem>>, vector<1x128xf32>
    %100 = vector.broadcast %99 : vector<1x128xf32> to vector<200x128xf32>
    %101 = arith.mulf %98, %100 : vector<200x128xf32>
    %c2_42 = arith.constant 2 : index
    %c0_43 = arith.constant 0 : index
    %102 = vector.load %arg3[%c2_42, %c0_43] : memref<6x128xf32, #tpu.memory_space<vmem>>, vector<1x128xf32>
    %103 = vector.broadcast %102 : vector<1x128xf32> to vector<200x128xf32>
    %104 = arith.addf %101, %103 : vector<200x128xf32>
    %cst_44 = arith.constant 0.000000e+00 : f32
    %105 = vector.broadcast %cst_44 : f32 to vector<200x128xf32>
    %106 = arith.maximumf %104, %105 : vector<200x128xf32>
    %c2_45 = arith.constant 2 : index
    %c0_46 = arith.constant 0 : index
    %c0_47 = arith.constant 0 : index
    %107 = vector.load %arg4[%c2_45, %c0_46, %c0_47] : memref<6x200x128xbf16, #tpu.memory_space<vmem>>, vector<1x200x128xbf16>
    %108 = vector.shape_cast %107 : vector<1x200x128xbf16> to vector<200x128xbf16>
    %109 = arith.extf %108 : vector<200x128xbf16> to vector<200x128xf32>
    %110 = arith.mulf %106, %109 : vector<200x128xf32>
    %c224 = arith.constant 224 : index
    %c0_48 = arith.constant 0 : index
    %111 = vector.load %arg1[%c224, %c0_48] : memref<368x128xbf16, #tpu.memory_space<vmem>>, vector<32x128xbf16>
    %112 = vector.extract_strided_slice %110 {offsets = [0, 0], sizes = [200, 32], strides = [1, 1]} : vector<200x128xf32> to vector<200x32xf32>
    %113 = arith.truncf %112 : vector<200x32xf32> to vector<200x32xbf16>
    %cst_49 = arith.constant dense<0.000000e+00> : vector<200x128xf32>
    %114 = tpu.matmul %113, %111, %cst_49 {dimension_numbers = #tpu.dot_dimension_numbers<[1], [0], [0], [1], [0, 0, 1, 1], [], []>} : vector<200x32xbf16>, vector<32x128xbf16>, vector<200x128xf32> -> vector<200x128xf32>
    %c256 = arith.constant 256 : index
    %c0_50 = arith.constant 0 : index
    %115 = vector.load %arg1[%c256, %c0_50] : memref<368x128xbf16, #tpu.memory_space<vmem>>, vector<16x128xbf16>
    %116 = vector.extract_strided_slice %114 {offsets = [0, 0], sizes = [200, 16], strides = [1, 1]} : vector<200x128xf32> to vector<200x16xf32>
    %117 = arith.truncf %116 : vector<200x16xf32> to vector<200x16xbf16>
    %cst_51 = arith.constant dense<0.000000e+00> : vector<200x128xf32>
    %118 = tpu.matmul %117, %115, %cst_51 {dimension_numbers = #tpu.dot_dimension_numbers<[1], [0], [0], [1], [0, 0, 1, 1], [], []>} : vector<200x16xbf16>, vector<16x128xbf16>, vector<200x128xf32> -> vector<200x128xf32>
    %cst_52 = arith.constant dense<0.000000e+00> : vector<128xf32>
    %119 = vector.multi_reduction <add>, %118, %cst_52 [0] : vector<200x128xf32> to vector<128xf32>
    %120 = vector.shape_cast %119 : vector<128xf32> to vector<1x128xf32>
    %cst_53 = arith.constant 2.000000e+02 : f32
    %121 = vector.broadcast %cst_53 : f32 to vector<1x128xf32>
    %122 = arith.divf %120, %121 : vector<1x128xf32>
    %123 = vector.broadcast %122 : vector<1x128xf32> to vector<200x128xf32>
    %124 = arith.subf %118, %123 : vector<200x128xf32>
    %125 = arith.mulf %124, %124 : vector<200x128xf32>
    %cst_54 = arith.constant dense<0.000000e+00> : vector<128xf32>
    %126 = vector.multi_reduction <add>, %125, %cst_54 [0] : vector<200x128xf32> to vector<128xf32>
    %127 = vector.shape_cast %126 : vector<128xf32> to vector<1x128xf32>
    %cst_55 = arith.constant 2.000000e+02 : f32
    %128 = vector.broadcast %cst_55 : f32 to vector<1x128xf32>
    %129 = arith.divf %127, %128 : vector<1x128xf32>
    %130 = vector.broadcast %122 : vector<1x128xf32> to vector<200x128xf32>
    %131 = arith.subf %118, %130 : vector<200x128xf32>
    %cst_56 = arith.constant 9.99999974E-6 : f32
    %132 = vector.broadcast %cst_56 : f32 to vector<1x128xf32>
    %133 = arith.addf %129, %132 : vector<1x128xf32>
    %134 = math.rsqrt %133 : vector<1x128xf32>
    %135 = vector.broadcast %134 : vector<1x128xf32> to vector<200x128xf32>
    %136 = arith.mulf %131, %135 : vector<200x128xf32>
    %c3 = arith.constant 3 : index
    %c0_57 = arith.constant 0 : index
    %137 = vector.load %arg2[%c3, %c0_57] : memref<6x128xf32, #tpu.memory_space<vmem>>, vector<1x128xf32>
    %138 = vector.broadcast %137 : vector<1x128xf32> to vector<200x128xf32>
    %139 = arith.mulf %136, %138 : vector<200x128xf32>
    %c3_58 = arith.constant 3 : index
    %c0_59 = arith.constant 0 : index
    %140 = vector.load %arg3[%c3_58, %c0_59] : memref<6x128xf32, #tpu.memory_space<vmem>>, vector<1x128xf32>
    %141 = vector.broadcast %140 : vector<1x128xf32> to vector<200x128xf32>
    %142 = arith.addf %139, %141 : vector<200x128xf32>
    %cst_60 = arith.constant 0.000000e+00 : f32
    %143 = vector.broadcast %cst_60 : f32 to vector<200x128xf32>
    %144 = arith.maximumf %142, %143 : vector<200x128xf32>
    %c3_61 = arith.constant 3 : index
    %c0_62 = arith.constant 0 : index
    %c0_63 = arith.constant 0 : index
    %145 = vector.load %arg4[%c3_61, %c0_62, %c0_63] : memref<6x200x128xbf16, #tpu.memory_space<vmem>>, vector<1x200x128xbf16>
    %146 = vector.shape_cast %145 : vector<1x200x128xbf16> to vector<200x128xbf16>
    %147 = arith.extf %146 : vector<200x128xbf16> to vector<200x128xf32>
    %148 = arith.mulf %144, %147 : vector<200x128xf32>
    %c272 = arith.constant 272 : index
    %c0_64 = arith.constant 0 : index
    %149 = vector.load %arg1[%c272, %c0_64] : memref<368x128xbf16, #tpu.memory_space<vmem>>, vector<16x128xbf16>
    %150 = vector.extract_strided_slice %148 {offsets = [0, 0], sizes = [200, 16], strides = [1, 1]} : vector<200x128xf32> to vector<200x16xf32>
    %151 = arith.truncf %150 : vector<200x16xf32> to vector<200x16xbf16>
    %cst_65 = arith.constant dense<0.000000e+00> : vector<200x128xf32>
    %152 = tpu.matmul %151, %149, %cst_65 {dimension_numbers = #tpu.dot_dimension_numbers<[1], [0], [0], [1], [0, 0, 1, 1], [], []>} : vector<200x16xbf16>, vector<16x128xbf16>, vector<200x128xf32> -> vector<200x128xf32>
    %c288 = arith.constant 288 : index
    %c0_66 = arith.constant 0 : index
    %153 = vector.load %arg1[%c288, %c0_66] : memref<368x128xbf16, #tpu.memory_space<vmem>>, vector<16x128xbf16>
    %154 = vector.extract_strided_slice %152 {offsets = [0, 0], sizes = [200, 16], strides = [1, 1]} : vector<200x128xf32> to vector<200x16xf32>
    %155 = arith.truncf %154 : vector<200x16xf32> to vector<200x16xbf16>
    %cst_67 = arith.constant dense<0.000000e+00> : vector<200x128xf32>
    %156 = tpu.matmul %155, %153, %cst_67 {dimension_numbers = #tpu.dot_dimension_numbers<[1], [0], [0], [1], [0, 0, 1, 1], [], []>} : vector<200x16xbf16>, vector<16x128xbf16>, vector<200x128xf32> -> vector<200x128xf32>
    %cst_68 = arith.constant dense<0.000000e+00> : vector<128xf32>
    %157 = vector.multi_reduction <add>, %156, %cst_68 [0] : vector<200x128xf32> to vector<128xf32>
    %158 = vector.shape_cast %157 : vector<128xf32> to vector<1x128xf32>
    %cst_69 = arith.constant 2.000000e+02 : f32
    %159 = vector.broadcast %cst_69 : f32 to vector<1x128xf32>
    %160 = arith.divf %158, %159 : vector<1x128xf32>
    %161 = vector.broadcast %160 : vector<1x128xf32> to vector<200x128xf32>
    %162 = arith.subf %156, %161 : vector<200x128xf32>
    %163 = arith.mulf %162, %162 : vector<200x128xf32>
    %cst_70 = arith.constant dense<0.000000e+00> : vector<128xf32>
    %164 = vector.multi_reduction <add>, %163, %cst_70 [0] : vector<200x128xf32> to vector<128xf32>
    %165 = vector.shape_cast %164 : vector<128xf32> to vector<1x128xf32>
    %cst_71 = arith.constant 2.000000e+02 : f32
    %166 = vector.broadcast %cst_71 : f32 to vector<1x128xf32>
    %167 = arith.divf %165, %166 : vector<1x128xf32>
    %168 = vector.broadcast %160 : vector<1x128xf32> to vector<200x128xf32>
    %169 = arith.subf %156, %168 : vector<200x128xf32>
    %cst_72 = arith.constant 9.99999974E-6 : f32
    %170 = vector.broadcast %cst_72 : f32 to vector<1x128xf32>
    %171 = arith.addf %167, %170 : vector<1x128xf32>
    %172 = math.rsqrt %171 : vector<1x128xf32>
    %173 = vector.broadcast %172 : vector<1x128xf32> to vector<200x128xf32>
    %174 = arith.mulf %169, %173 : vector<200x128xf32>
    %c4 = arith.constant 4 : index
    %c0_73 = arith.constant 0 : index
    %175 = vector.load %arg2[%c4, %c0_73] : memref<6x128xf32, #tpu.memory_space<vmem>>, vector<1x128xf32>
    %176 = vector.broadcast %175 : vector<1x128xf32> to vector<200x128xf32>
    %177 = arith.mulf %174, %176 : vector<200x128xf32>
    %c4_74 = arith.constant 4 : index
    %c0_75 = arith.constant 0 : index
    %178 = vector.load %arg3[%c4_74, %c0_75] : memref<6x128xf32, #tpu.memory_space<vmem>>, vector<1x128xf32>
    %179 = vector.broadcast %178 : vector<1x128xf32> to vector<200x128xf32>
    %180 = arith.addf %177, %179 : vector<200x128xf32>
    %cst_76 = arith.constant 0.000000e+00 : f32
    %181 = vector.broadcast %cst_76 : f32 to vector<200x128xf32>
    %182 = arith.maximumf %180, %181 : vector<200x128xf32>
    %c4_77 = arith.constant 4 : index
    %c0_78 = arith.constant 0 : index
    %c0_79 = arith.constant 0 : index
    %183 = vector.load %arg4[%c4_77, %c0_78, %c0_79] : memref<6x200x128xbf16, #tpu.memory_space<vmem>>, vector<1x200x128xbf16>
    %184 = vector.shape_cast %183 : vector<1x200x128xbf16> to vector<200x128xbf16>
    %185 = arith.extf %184 : vector<200x128xbf16> to vector<200x128xf32>
    %186 = arith.mulf %182, %185 : vector<200x128xf32>
    %c304 = arith.constant 304 : index
    %c0_80 = arith.constant 0 : index
    %187 = vector.load %arg1[%c304, %c0_80] : memref<368x128xbf16, #tpu.memory_space<vmem>>, vector<16x128xbf16>
    %188 = vector.extract_strided_slice %186 {offsets = [0, 0], sizes = [200, 16], strides = [1, 1]} : vector<200x128xf32> to vector<200x16xf32>
    %189 = arith.truncf %188 : vector<200x16xf32> to vector<200x16xbf16>
    %cst_81 = arith.constant dense<0.000000e+00> : vector<200x128xf32>
    %190 = tpu.matmul %189, %187, %cst_81 {dimension_numbers = #tpu.dot_dimension_numbers<[1], [0], [0], [1], [0, 0, 1, 1], [], []>} : vector<200x16xbf16>, vector<16x128xbf16>, vector<200x128xf32> -> vector<200x128xf32>
    %c320 = arith.constant 320 : index
    %c0_82 = arith.constant 0 : index
    %191 = vector.load %arg1[%c320, %c0_82] : memref<368x128xbf16, #tpu.memory_space<vmem>>, vector<16x128xbf16>
    %192 = vector.extract_strided_slice %190 {offsets = [0, 0], sizes = [200, 16], strides = [1, 1]} : vector<200x128xf32> to vector<200x16xf32>
    %193 = arith.truncf %192 : vector<200x16xf32> to vector<200x16xbf16>
    %cst_83 = arith.constant dense<0.000000e+00> : vector<200x128xf32>
    %194 = tpu.matmul %193, %191, %cst_83 {dimension_numbers = #tpu.dot_dimension_numbers<[1], [0], [0], [1], [0, 0, 1, 1], [], []>} : vector<200x16xbf16>, vector<16x128xbf16>, vector<200x128xf32> -> vector<200x128xf32>
    %cst_84 = arith.constant dense<0.000000e+00> : vector<128xf32>
    %195 = vector.multi_reduction <add>, %194, %cst_84 [0] : vector<200x128xf32> to vector<128xf32>
    %196 = vector.shape_cast %195 : vector<128xf32> to vector<1x128xf32>
    %cst_85 = arith.constant 2.000000e+02 : f32
    %197 = vector.broadcast %cst_85 : f32 to vector<1x128xf32>
    %198 = arith.divf %196, %197 : vector<1x128xf32>
    %199 = vector.broadcast %198 : vector<1x128xf32> to vector<200x128xf32>
    %200 = arith.subf %194, %199 : vector<200x128xf32>
    %201 = arith.mulf %200, %200 : vector<200x128xf32>
    %cst_86 = arith.constant dense<0.000000e+00> : vector<128xf32>
    %202 = vector.multi_reduction <add>, %201, %cst_86 [0] : vector<200x128xf32> to vector<128xf32>
    %203 = vector.shape_cast %202 : vector<128xf32> to vector<1x128xf32>
    %cst_87 = arith.constant 2.000000e+02 : f32
    %204 = vector.broadcast %cst_87 : f32 to vector<1x128xf32>
    %205 = arith.divf %203, %204 : vector<1x128xf32>
    %206 = vector.broadcast %198 : vector<1x128xf32> to vector<200x128xf32>
    %207 = arith.subf %194, %206 : vector<200x128xf32>
    %cst_88 = arith.constant 9.99999974E-6 : f32
    %208 = vector.broadcast %cst_88 : f32 to vector<1x128xf32>
    %209 = arith.addf %205, %208 : vector<1x128xf32>
    %210 = math.rsqrt %209 : vector<1x128xf32>
    %211 = vector.broadcast %210 : vector<1x128xf32> to vector<200x128xf32>
    %212 = arith.mulf %207, %211 : vector<200x128xf32>
    %c5 = arith.constant 5 : index
    %c0_89 = arith.constant 0 : index
    %213 = vector.load %arg2[%c5, %c0_89] : memref<6x128xf32, #tpu.memory_space<vmem>>, vector<1x128xf32>
    %214 = vector.broadcast %213 : vector<1x128xf32> to vector<200x128xf32>
    %215 = arith.mulf %212, %214 : vector<200x128xf32>
    %c5_90 = arith.constant 5 : index
    %c0_91 = arith.constant 0 : index
    %216 = vector.load %arg3[%c5_90, %c0_91] : memref<6x128xf32, #tpu.memory_space<vmem>>, vector<1x128xf32>
    %217 = vector.broadcast %216 : vector<1x128xf32> to vector<200x128xf32>
    %218 = arith.addf %215, %217 : vector<200x128xf32>
    %cst_92 = arith.constant 0.000000e+00 : f32
    %219 = vector.broadcast %cst_92 : f32 to vector<200x128xf32>
    %220 = arith.maximumf %218, %219 : vector<200x128xf32>
    %c5_93 = arith.constant 5 : index
    %c0_94 = arith.constant 0 : index
    %c0_95 = arith.constant 0 : index
    %221 = vector.load %arg4[%c5_93, %c0_94, %c0_95] : memref<6x200x128xbf16, #tpu.memory_space<vmem>>, vector<1x200x128xbf16>
    %222 = vector.shape_cast %221 : vector<1x200x128xbf16> to vector<200x128xbf16>
    %223 = arith.extf %222 : vector<200x128xbf16> to vector<200x128xf32>
    %224 = arith.mulf %220, %223 : vector<200x128xf32>
    %c336 = arith.constant 336 : index
    %c0_96 = arith.constant 0 : index
    %225 = vector.load %arg1[%c336, %c0_96] : memref<368x128xbf16, #tpu.memory_space<vmem>>, vector<16x128xbf16>
    %226 = vector.extract_strided_slice %224 {offsets = [0, 0], sizes = [200, 16], strides = [1, 1]} : vector<200x128xf32> to vector<200x16xf32>
    %227 = arith.truncf %226 : vector<200x16xf32> to vector<200x16xbf16>
    %cst_97 = arith.constant dense<0.000000e+00> : vector<200x128xf32>
    %228 = tpu.matmul %227, %225, %cst_97 {dimension_numbers = #tpu.dot_dimension_numbers<[1], [0], [0], [1], [0, 0, 1, 1], [], []>} : vector<200x16xbf16>, vector<16x128xbf16>, vector<200x128xf32> -> vector<200x128xf32>
    %c352 = arith.constant 352 : index
    %c0_98 = arith.constant 0 : index
    %229 = vector.load %arg1[%c352, %c0_98] : memref<368x128xbf16, #tpu.memory_space<vmem>>, vector<16x128xbf16>
    %230 = vector.extract_strided_slice %228 {offsets = [0, 0], sizes = [200, 16], strides = [1, 1]} : vector<200x128xf32> to vector<200x16xf32>
    %231 = arith.truncf %230 : vector<200x16xf32> to vector<200x16xbf16>
    %cst_99 = arith.constant dense<0.000000e+00> : vector<200x128xf32>
    %232 = tpu.matmul %231, %229, %cst_99 {dimension_numbers = #tpu.dot_dimension_numbers<[1], [0], [0], [1], [0, 0, 1, 1], [], []>} : vector<200x16xbf16>, vector<16x128xbf16>, vector<200x128xf32> -> vector<200x128xf32>
    %cst_100 = arith.constant dense<0.000000e+00> : vector<128xf32>
    %233 = vector.multi_reduction <add>, %232, %cst_100 [0] : vector<200x128xf32> to vector<128xf32>
    %234 = vector.shape_cast %233 : vector<128xf32> to vector<1x128xf32>
    %cst_101 = arith.constant 2.000000e+02 : f32
    %235 = vector.broadcast %cst_101 : f32 to vector<1x128xf32>
    %236 = arith.divf %234, %235 : vector<1x128xf32>
    %237 = vector.broadcast %236 : vector<1x128xf32> to vector<200x128xf32>
    %238 = arith.subf %232, %237 : vector<200x128xf32>
    %239 = arith.mulf %238, %238 : vector<200x128xf32>
    %cst_102 = arith.constant dense<0.000000e+00> : vector<128xf32>
    %240 = vector.multi_reduction <add>, %239, %cst_102 [0] : vector<200x128xf32> to vector<128xf32>
    %241 = vector.shape_cast %240 : vector<128xf32> to vector<1x128xf32>
    %cst_103 = arith.constant 2.000000e+02 : f32
    %242 = vector.broadcast %cst_103 : f32 to vector<1x128xf32>
    %243 = arith.divf %241, %242 : vector<1x128xf32>
    %244 = vector.broadcast %236 : vector<1x128xf32> to vector<200x128xf32>
    %245 = arith.subf %232, %244 : vector<200x128xf32>
    %cst_104 = arith.constant 9.99999974E-6 : f32
    %246 = vector.broadcast %cst_104 : f32 to vector<1x128xf32>
    %247 = arith.addf %243, %246 : vector<1x128xf32>
    %248 = math.rsqrt %247 : vector<1x128xf32>
    %249 = vector.broadcast %248 : vector<1x128xf32> to vector<200x128xf32>
    %250 = arith.mulf %245, %249 : vector<200x128xf32>
    %c0_105 = arith.constant 0 : index
    %c0_106 = arith.constant 0 : index
    %251 = vector.load %arg5[%c0_105, %c0_106] : memref<200x128xf32, #tpu.memory_space<vmem>>, vector<200x128xf32>
    tpu.vector_store %arg5[%c0_105, %c0_106], %250 {strides = array<i32>} : memref<200x128xf32, #tpu.memory_space<vmem>>, vector<200x128xf32>,
    return
  }
}

</mosaic_0001>

<llo_original>
// kernel: bayesian_encoder_forward.3
$region0: #{bayesian_encoder_forward.3}
  #allocation0 [shape = 'u32[]', space=smem, size = 0x4, offset = 0x4, fixed_abs, tag = 'smem constant byte address 0x4 - core index']
  #allocation1 [shape = 'u32[144,128]{1,0:T(1,128)}', space=vmem, size = 0x12000, scoped, tag = 'internal scratch']
  %s0 = inlined_call_operand.vmem [shape: f32[200,128], index: 0, kind: input, shape index: {}]
  %s1 = inlined_call_operand.vmem [shape: bf16[368,128], index: 1, kind: input, shape index: {}]
  %s2 = inlined_call_operand.vmem [shape: f32[6,128], index: 2, kind: input, shape index: {}]
  %s3 = inlined_call_operand.vmem [shape: f32[6,128], index: 3, kind: input, shape index: {}]
  %s4 = inlined_call_operand.vmem [shape: bf16[6,200,128], index: 4, kind: input, shape index: {}]
  %s5 = inlined_call_operand.vmem [shape: f32[200,128], index: 5, kind: output, shape index: {}]
  %s6 = sld [smem:[#allocation0]]
  $region30: #{bayesian_encoder_forward.3} parent=0
    _
  %s8 = ssub.s32 1, %s6
  %s9 = scalar_select 0, %s8, %s6
  // Predicated region
  $region2: #{bayesian_encoder_forward.3} parent=0 // pred_check
    _
  $region3: #{bayesian_encoder_forward.3} parent=0 // pred_check_branch
    %11 = sbr.rel (0) target = $region5
  $region4: #{bayesian_encoder_forward.3} parent=0 // pred_region
    _
  $region5: #{bayesian_encoder_forward.3} parent=0 // pred_fallthru
    _
  // Predicated region
  $region6: #{bayesian_encoder_forward.3} parent=0 // pred_check
    _
  $region7: #{bayesian_encoder_forward.3} parent=0 // pred_check_branch
    %13 = sbr.rel (0) target = $region9
  $region8: #{bayesian_encoder_forward.3} parent=0 // pred_region
    _
  $region9: #{bayesian_encoder_forward.3} parent=0 // pred_fallthru
    _
  // Predicated region
  $region10: #{bayesian_encoder_forward.3} parent=0 // pred_check
    _
  $region11: #{bayesian_encoder_forward.3} parent=0 // pred_check_branch
    %15 = sbr.rel (0) target = $region13
  $region12: #{bayesian_encoder_forward.3} parent=0 // pred_region
    _
  $region13: #{bayesian_encoder_forward.3} parent=0 // pred_fallthru
    _
  // Predicated region
  $region14: #{bayesian_encoder_forward.3} parent=0 // pred_check
    _
  $region15: #{bayesian_encoder_forward.3} parent=0 // pred_check_branch
    %17 = sbr.rel (0) target = $region17
  $region16: #{bayesian_encoder_forward.3} parent=0 // pred_region
    _
  $region17: #{bayesian_encoder_forward.3} parent=0 // pred_fallthru
    _
  // Predicated region
  $region18: #{bayesian_encoder_forward.3} parent=0 // pred_check
    _
  $region19: #{bayesian_encoder_forward.3} parent=0 // pred_check_branch
    %19 = sbr.rel (0) target = $region21
  $region20: #{bayesian_encoder_forward.3} parent=0 // pred_region
    _
  $region21: #{bayesian_encoder_forward.3} parent=0 // pred_fallthru
    _
  %v21 = vld [vmem:[%s0] sm:$0xff]
  %v22 = vld [vmem:[%s0 + $0x8] sm:$0xff]
  %v23 = vld [vmem:[%s0 + $0x10] sm:$0xff]
  %v24 = vld [vmem:[%s0 + $0x18] sm:$0xff]
  %v25 = vld [vmem:[%s0 + $0x20] sm:$0xff]
  %v26 = vld [vmem:[%s0 + $0x28] sm:$0xff]
  %v27 = vld [vmem:[%s0 + $0x30] sm:$0xff]
  %v28 = vld [vmem:[%s0 + $0x38] sm:$0xff]
  %v29 = vld [vmem:[%s0 + $0x40] sm:$0xff]
  %v30 = vld [vmem:[%s0 + $0x48] sm:$0xff]
  %v31 = vld [vmem:[%s0 + $0x50] sm:$0xff]
  %v32 = vld [vmem:[%s0 + $0x58] sm:$0xff]
  %v33 = vld [vmem:[%s0 + $0x60] sm:$0xff]
  %v34 = vld [vmem:[%s0 + $0x68] sm:$0xff]
  %v35 = vld [vmem:[%s0 + $0x70] sm:$0xff]
  %v36 = vld [vmem:[%s0 + $0x78] sm:$0xff]
  %v37 = vld [vmem:[%s0 + $0x80] sm:$0xff]
  %v38 = vld [vmem:[%s0 + $0x88] sm:$0xff]
  %v39 = vld [vmem:[%s0 + $0x90] sm:$0xff]
  %v40 = vld [vmem:[%s0 + $0x98] sm:$0xff]
  %v41 = vld [vmem:[%s0 + $0xa0] sm:$0xff]
  %v42 = vld [vmem:[%s0 + $0xa8] sm:$0xff]
  %v43 = vld [vmem:[%s0 + $0xb0] sm:$0xff]
  %v44 = vld [vmem:[%s0 + $0xb8] sm:$0xff]
  %v45 = vld [vmem:[%s0 + $0xc0] sm:$0xff]
  %v46 = vld [vmem:[%s1] sm:$0xf]
  %v47 = vld [vmem:[%s1 + $0x4] sm:$0xf]
  %v48 = vld [vmem:[%s1 + $0x8] sm:$0xf]
  %v49 = vld [vmem:[%s1 + $0xc] sm:$0xf]
  %v50 = vld [vmem:[%s1 + $0x10] sm:$0xf]
  %v51 = vld [vmem:[%s1 + $0x14] sm:$0xf]
  %v52 = vld [vmem:[%s1 + $0x18] sm:$0xf]
  %v53 = vld [vmem:[%s1 + $0x1c] sm:$0xf]
  %v54 = vpack.c.bf16 %v22, %v21
  %v55 = vpack.c.bf16 %v24, %v23
  %v56 = vpack.c.bf16 %v26, %v25
  %v57 = vpack.c.bf16 %v28, %v27
  %v58 = vpack.c.bf16 %v30, %v29
  %v59 = vpack.c.bf16 %v32, %v31
  %v60 = vpack.c.bf16 %v34, %v33
  %v61 = vpack.c.bf16 %v36, %v35
  %v62 = vpack.c.bf16 %v38, %v37
  %v63 = vpack.c.bf16 %v40, %v39
  %v64 = vpack.c.bf16 %v42, %v41
  %v65 = vpack.c.bf16 %v44, %v43
  %v66 = vpack.c.bf16 %v45, %v45
  %v75 = vunpack.c.l.b16 %v46
  %v76 = vunpack.c.l.b16 %v47
  %v77 = vunpack.c.l.b16 %v48
  %v78 = vunpack.c.l.b16 %v49
  %v79 = vunpack.c.l.b16 %v50
  %v80 = vunpack.c.l.b16 %v51
  %v81 = vunpack.c.l.b16 %v52
  %v82 = vunpack.c.l.b16 %v53
  %v83 = vpack.c.b16 %v76, %v75
  %v84 = vpack.c.b16 %v78, %v77
  %v85 = vpack.c.b16 %v80, %v79
  %v86 = vpack.c.b16 %v82, %v81
  %vm91 = vcmask 523264
  %v93 = vsel %vm91, %v54, 0
  %v96 = vsel %vm91, %v55, 0
  %v99 = vsel %vm91, %v56, 0
  %v102 = vsel %vm91, %v57, 0
  %v105 = vsel %vm91, %v58, 0
  %v108 = vsel %vm91, %v59, 0
  %v111 = vsel %vm91, %v60, 0
  %v114 = vsel %vm91, %v61, 0
  %v117 = vsel %vm91, %v62, 0
  %v120 = vsel %vm91, %v63, 0
  %v123 = vsel %vm91, %v64, 0
  %v126 = vsel %vm91, %v65, 0
  %v129 = vsel %vm91, %v66, 0
  %131 = vmatprep.subr.bf16.mxu0 0
  %132 = vmatpush1.bf16.msra.mxu0 0
  %133 = vmatprep.subr.bf16.mxu0 0
  %134 = vmatpush1.bf16.msra.mxu0 0
  %135 = vmatprep.subr.bf16.mxu0 0
  %136 = vmatpush1.bf16.msra.mxu0 0
  %137 = vmatprep.subr.bf16.mxu0 0
  %138 = vmatpush1.bf16.msra.mxu0 0
  %139 = vmatprep.subr.bf16.mxu0 0
  %140 = vmatpush1.bf16.msra.mxu0 %v86
  %141 = vmatprep.subr.bf16.mxu0 0
  %142 = vmatpush1.bf16.msra.mxu0 %v85
  %143 = vmatprep.subr.bf16.mxu0 0
  %144 = vmatpush1.bf16.msra.mxu0 %v84
  %145 = vmatprep.subr.bf16.mxu0 0
  %146 = vmatpush1.bf16.msra.mxu0 %v83
  %147 = vmatprep.subr.bf16.mxu0 0
  %148 = vmatpush2.bf16.msra.mxu0 0
  %149 = vmatprep.subr.bf16.mxu0 0
  %150 = vmatpush2.bf16.msra.mxu0 0
  %151 = vmatprep.subr.bf16.mxu0 0
  %152 = vmatpush2.bf16.msra.mxu0 0
  %153 = vmatprep.subr.bf16.mxu0 0
  %154 = vmatpush2.bf16.msra.mxu0 0
  %155 = vmatprep.subr.bf16.mxu0 0
  %156 = vmatpush2.bf16.msra.mxu0 0
  %157 = vmatprep.subr.bf16.mxu0 0
  %158 = vmatpush2.bf16.msra.mxu0 0
  %159 = vmatprep.subr.bf16.mxu0 0
  %160 = vmatpush2.bf16.msra.mxu0 0
  %161 = vmatprep.subr.bf16.mxu0 0
  %162 = vmatpush2.bf16.msra.mxu0 0
  %163 = vmatprep.mubr.bf16.mxu0 0
  %164 = vmatmul.mubr.bf16.gmra.mxu0 %v93
  %v165 = vpop.f32.mrf.mxu0
  %v166 = vadd.f32 0.0, %v165
  %v167 = vpop.f32.mrf.mxu0
  %v168 = vpop.f32.mrf.mxu0
  %v169 = vadd.f32 0.0, %v168
  %v170 = vpop.f32.mrf.mxu0
  %171 = vmatprep.mubr.bf16.mxu0 0
  %172 = vmatmul.mubr.bf16.gmra.mxu0 %v96
  %v173 = vpop.f32.mrf.mxu0
  %v174 = vadd.f32 0.0, %v173
  %v175 = vpop.f32.mrf.mxu0
  %v176 = vpop.f32.mrf.mxu0
  %v177 = vadd.f32 0.0, %v176
  %v178 = vpop.f32.mrf.mxu0
  %179 = vmatprep.mubr.bf16.mxu0 0
  %180 = vmatmul.mubr.bf16.gmra.mxu0 %v99
  %v181 = vpop.f32.mrf.mxu0
  %v182 = vadd.f32 0.0, %v181
  %v183 = vpop.f32.mrf.mxu0
  %v184 = vpop.f32.mrf.mxu0
  %v185 = vadd.f32 0.0, %v184
  %v186 = vpop.f32.mrf.mxu0
  %187 = vmatprep.mubr.bf16.mxu0 0
  %188 = vmatmul.mubr.bf16.gmra.mxu0 %v102
  %v189 = vpop.f32.mrf.mxu0
  %v190 = vadd.f32 0.0, %v189
  %v191 = vpop.f32.mrf.mxu0
  %v192 = vpop.f32.mrf.mxu0
  %v193 = vadd.f32 0.0, %v192
  %v194 = vpop.f32.mrf.mxu0
  %195 = vmatprep.mubr.bf16.mxu0 0
  %196 = vmatmul.mubr.bf16.gmra.mxu0 %v105
  %v197 = vpop.f32.mrf.mxu0
  %v198 = vadd.f32 0.0, %v197
  %v199 = vpop.f32.mrf.mxu0
  %v200 = vpop.f32.mrf.mxu0
  %v201 = vadd.f32 0.0, %v200
  %v202 = vpop.f32.mrf.mxu0
  %203 = vmatprep.mubr.bf16.mxu0 0
  %204 = vmatmul.mubr.bf16.gmra.mxu0 %v108
  %v205 = vpop.f32.mrf.mxu0
  %v206 = vadd.f32 0.0, %v205
  %v207 = vpop.f32.mrf.mxu0
  %v208 = vpop.f32.mrf.mxu0
  %v209 = vadd.f32 0.0, %v208
  %v210 = vpop.f32.mrf.mxu0
  %211 = vmatprep.mubr.bf16.mxu0 0
  %212 = vmatmul.mubr.bf16.gmra.mxu0 %v111
  %v213 = vpop.f32.mrf.mxu0
  %v214 = vadd.f32 0.0, %v213
  %v215 = vpop.f32.mrf.mxu0
  %v216 = vpop.f32.mrf.mxu0
  %v217 = vadd.f32 0.0, %v216
  %v218 = vpop.f32.mrf.mxu0
  %219 = vmatprep.mubr.bf16.mxu0 0
  %220 = vmatmul.mubr.bf16.gmra.mxu0 %v114
  %v221 = vpop.f32.mrf.mxu0
  %v222 = vadd.f32 0.0, %v221
  %v223 = vpop.f32.mrf.mxu0
  %v224 = vpop.f32.mrf.mxu0
  %v225 = vadd.f32 0.0, %v224
  %v226 = vpop.f32.mrf.mxu0
  %227 = vmatprep.mubr.bf16.mxu0 0
  %228 = vmatmul.mubr.bf16.gmra.mxu0 %v117
  %v229 = vpop.f32.mrf.mxu0
  %v230 = vadd.f32 0.0, %v229
  %v231 = vpop.f32.mrf.mxu0
  %v232 = vpop.f32.mrf.mxu0
  %v233 = vadd.f32 0.0, %v232
  %v234 = vpop.f32.mrf.mxu0
  %235 = vmatprep.mubr.bf16.mxu0 0
  %236 = vmatmul.mubr.bf16.gmra.mxu0 %v120
  %v237 = vpop.f32.mrf.mxu0
  %v238 = vadd.f32 0.0, %v237
  %v239 = vpop.f32.mrf.mxu0
  %v240 = vpop.f32.mrf.mxu0
  %v241 = vadd.f32 0.0, %v240
  %v242 = vpop.f32.mrf.mxu0
  %243 = vmatprep.mubr.bf16.mxu0 0
  %244 = vmatmul.mubr.bf16.gmra.mxu0 %v123
  %v245 = vpop.f32.mrf.mxu0
  %v246 = vadd.f32 0.0, %v245
  %v247 = vpop.f32.mrf.mxu0
  %v248 = vpop.f32.mrf.mxu0
  %v249 = vadd.f32 0.0, %v248
  %v250 = vpop.f32.mrf.mxu0
  %251 = vmatprep.mubr.bf16.mxu0 0
  %252 = vmatmul.mubr.bf16.gmra.mxu0 %v126
  %v253 = vpop.f32.mrf.mxu0
  %v254 = vadd.f32 0.0, %v253
  %v255 = vpop.f32.mrf.mxu0
  %v256 = vpop.f32.mrf.mxu0
  %v257 = vadd.f32 0.0, %v256
  %v258 = vpop.f32.mrf.mxu0
  %259 = vmatprep.mubr.bf16.mxu0 0
  %260 = vmatmul.mubr.bf16.gmra.mxu0 %v129
  %v261 = vpop.f32.mrf.mxu0
  %v262 = vadd.f32 0.0, %v261
  %v263 = vpop.f32.mrf.mxu0
  %v264 = vpop.f32.mrf.mxu0
  %v265 = vpop.f32.mrf.mxu0
  %266 = vdwg.mxu0
  %v267 = vadd.f32 %v166, %v169
  %v268 = vadd.f32 %v267, %v174
  %v269 = vadd.f32 %v268, %v177
  %v270 = vadd.f32 %v269, %v182
  %v271 = vadd.f32 %v270, %v185
  %v272 = vadd.f32 %v271, %v190
  %v273 = vadd.f32 %v272, %v193
  %v274 = vadd.f32 %v273, %v198
  %v275 = vadd.f32 %v274, %v201
  %v276 = vadd.f32 %v275, %v206
  %v277 = vadd.f32 %v276, %v209
  %v278 = vadd.f32 %v277, %v214
  %v279 = vadd.f32 %v278, %v217
  %v280 = vadd.f32 %v279, %v222
  %v281 = vadd.f32 %v280, %v225
  %v282 = vadd.f32 %v281, %v230
  %v283 = vadd.f32 %v282, %v233
  %v284 = vadd.f32 %v283, %v238
  %v285 = vadd.f32 %v284, %v241
  %v286 = vadd.f32 %v285, %v246
  %v287 = vadd.f32 %v286, %v249
  %v288 = vadd.f32 %v287, %v254
  %v289 = vadd.f32 %v288, %v257
  %v290 = vadd.f32 %v289, %v262
  %v291 = vrot.slane %v290, 4
  %v292 = vadd.f32 %v290, %v291
  %v293 = vrot.slane %v292, 2
  %v294 = vadd.f32 %v292, %v293
  %v295 = vrot.slane %v294, 1
  %v296 = vadd.f32 %v294, %v295
  %v297 = vrcp.pop 200.0
  %v298 = vmul.f32 %v296, %v297
  %v299 = vsub.f32 %v166, %v298
  %v300 = vsub.f32 %v169, %v298
  %v301 = vsub.f32 %v174, %v298
  %v302 = vsub.f32 %v177, %v298
  %v303 = vsub.f32 %v182, %v298
  %v304 = vsub.f32 %v185, %v298
  %v305 = vsub.f32 %v190, %v298
  %v306 = vsub.f32 %v193, %v298
  %v307 = vsub.f32 %v198, %v298
  %v308 = vsub.f32 %v201, %v298
  %v309 = vsub.f32 %v206, %v298
  %v310 = vsub.f32 %v209, %v298
  %v311 = vsub.f32 %v214, %v298
  %v312 = vsub.f32 %v217, %v298
  %v313 = vsub.f32 %v222, %v298
  %v314 = vsub.f32 %v225, %v298
  %v315 = vsub.f32 %v230, %v298
  %v316 = vsub.f32 %v233, %v298
  %v317 = vsub.f32 %v238, %v298
  %v318 = vsub.f32 %v241, %v298
  %v319 = vsub.f32 %v246, %v298
  %v320 = vsub.f32 %v249, %v298
  %v321 = vsub.f32 %v254, %v298
  %v322 = vsub.f32 %v257, %v298
  %v323 = vsub.f32 %v262, %v298
  %v324 = vmul.f32 %v299, %v299
  %v325 = vmul.f32 %v300, %v300
  %v326 = vmul.f32 %v301, %v301
  %v327 = vmul.f32 %v302, %v302
  %v328 = vmul.f32 %v303, %v303
  %v329 = vmul.f32 %v304, %v304
  %v330 = vmul.f32 %v305, %v305
  %v331 = vmul.f32 %v306, %v306
  %v332 = vmul.f32 %v307, %v307
  %v333 = vmul.f32 %v308, %v308
  %v334 = vmul.f32 %v309, %v309
  %v335 = vmul.f32 %v310, %v310
  %v336 = vmul.f32 %v311, %v311
  %v337 = vmul.f32 %v312, %v312
  %v338 = vmul.f32 %v313, %v313
  %v339 = vmul.f32 %v314, %v314
  %v340 = vmul.f32 %v315, %v315
  %v341 = vmul.f32 %v316, %v316
  %v342 = vmul.f32 %v317, %v317
  %v343 = vmul.f32 %v318, %v318
  %v344 = vmul.f32 %v319, %v319
  %v345 = vmul.f32 %v320, %v320
  %v346 = vmul.f32 %v321, %v321
  %v347 = vmul.f32 %v322, %v322
  %v348 = vmul.f32 %v323, %v323
  %v349 = vadd.f32 %v324, %v325
  %v350 = vadd.f32 %v349, %v326
  %v351 = vadd.f32 %v350, %v327
  %v352 = vadd.f32 %v351, %v328
  %v353 = vadd.f32 %v352, %v329
  %v354 = vadd.f32 %v353, %v330
  %v355 = vadd.f32 %v354, %v331
  %v356 = vadd.f32 %v355, %v332
  %v357 = vadd.f32 %v356, %v333
  %v358 = vadd.f32 %v357, %v334
  %v359 = vadd.f32 %v358, %v335
  %v360 = vadd.f32 %v359, %v336
  %v361 = vadd.f32 %v360, %v337
  %v362 = vadd.f32 %v361, %v338
  %v363 = vadd.f32 %v362, %v339
  %v364 = vadd.f32 %v363, %v340
  %v365 = vadd.f32 %v364, %v341
  %v366 = vadd.f32 %v365, %v342
  %v367 = vadd.f32 %v366, %v343
  %v368 = vadd.f32 %v367, %v344
  %v369 = vadd.f32 %v368, %v345
  %v370 = vadd.f32 %v369, %v346
  %v371 = vadd.f32 %v370, %v347
  %v372 = vadd.f32 %v371, %v348
  %v373 = vrot.slane %v372, 4
  %v374 = vadd.f32 %v372, %v373
  %v375 = vrot.slane %v374, 2
  %v376 = vadd.f32 %v374, %v375
  %v377 = vrot.slane %v376, 1
  %v378 = vadd.f32 %v376, %v377
  %v379 = vmul.f32 %v378, %v297
  %v380 = vadd.f32 %v379, 1e-05
  %v381 = vrsqrt.pop %v380
  %v382 = vmul.f32 %v299, %v381
  %v383 = vmul.f32 %v300, %v381
  %v384 = vmul.f32 %v301, %v381
  %v385 = vmul.f32 %v302, %v381
  %v386 = vmul.f32 %v303, %v381
  %v387 = vmul.f32 %v304, %v381
  %v388 = vmul.f32 %v305, %v381
  %v389 = vmul.f32 %v306, %v381
  %v390 = vmul.f32 %v307, %v381
  %v391 = vmul.f32 %v308, %v381
  %v392 = vmul.f32 %v309, %v381
  %v393 = vmul.f32 %v310, %v381
  %v394 = vmul.f32 %v311, %v381
  %v395 = vmul.f32 %v312, %v381
  %v396 = vmul.f32 %v313, %v381
  %v397 = vmul.f32 %v314, %v381
  %v398 = vmul.f32 %v315, %v381
  %v399 = vmul.f32 %v316, %v381
  %v400 = vmul.f32 %v317, %v381
  %v401 = vmul.f32 %v318, %v381
  %v402 = vmul.f32 %v319, %v381
  %v403 = vmul.f32 %v320, %v381
  %v404 = vmul.f32 %v321, %v381
  %v405 = vmul.f32 %v322, %v381
  %v406 = vmul.f32 %v323, %v381
  %v407 = vld [vmem:[%s2] sm:$0x1]
  %v408 = vlaneseq
  %v409 = vshrl.u32 %v408, 7
  %v410 = vsub.s32 0, %v409
  %v411 = vrot.slane %v407, %v410
  %v412 = vmul.f32 %v382, %v411
  %v413 = vmul.f32 %v383, %v411
  %v414 = vmul.f32 %v384, %v411
  %v415 = vmul.f32 %v385, %v411
  %v416 = vmul.f32 %v386, %v411
  %v417 = vmul.f32 %v387, %v411
  %v418 = vmul.f32 %v388, %v411
  %v419 = vmul.f32 %v389, %v411
  %v420 = vmul.f32 %v390, %v411
  %v421 = vmul.f32 %v391, %v411
  %v422 = vmul.f32 %v392, %v411
  %v423 = vmul.f32 %v393, %v411
  %v424 = vmul.f32 %v394, %v411
  %v425 = vmul.f32 %v395, %v411
  %v426 = vmul.f32 %v396, %v411
  %v427 = vmul.f32 %v397, %v411
  %v428 = vmul.f32 %v398, %v411
  %v429 = vmul.f32 %v399, %v411
  %v430 = vmul.f32 %v400, %v411
  %v431 = vmul.f32 %v401, %v411
  %v432 = vmul.f32 %v402, %v411
  %v433 = vmul.f32 %v403, %v411
  %v434 = vmul.f32 %v404, %v411
  %v435 = vmul.f32 %v405, %v411
  %v436 = vmul.f32 %v406, %v411
  %v437 = vld [vmem:[%s3] sm:$0x1]
  %v438 = vlaneseq
  %v439 = vshrl.u32 %v438, 7
  %v440 = vsub.s32 0, %v439
  %v441 = vrot.slane %v437, %v440
  %v442 = vadd.f32 %v412, %v441
  %v443 = vadd.f32 %v413, %v441
  %v444 = vadd.f32 %v414, %v441
  %v445 = vadd.f32 %v415, %v441
  %v446 = vadd.f32 %v416, %v441
  %v447 = vadd.f32 %v417, %v441
  %v448 = vadd.f32 %v418, %v441
  %v449 = vadd.f32 %v419, %v441
  %v450 = vadd.f32 %v420, %v441
  %v451 = vadd.f32 %v421, %v441
  %v452 = vadd.f32 %v422, %v441
  %v453 = vadd.f32 %v423, %v441
  %v454 = vadd.f32 %v424, %v441
  %v455 = vadd.f32 %v425, %v441
  %v456 = vadd.f32 %v426, %v441
  %v457 = vadd.f32 %v427, %v441
  %v458 = vadd.f32 %v428, %v441
  %v459 = vadd.f32 %v429, %v441
  %v460 = vadd.f32 %v430, %v441
  %v461 = vadd.f32 %v431, %v441
  %v462 = vadd.f32 %v432, %v441
  %v463 = vadd.f32 %v433, %v441
  %v464 = vadd.f32 %v434, %v441
  %v465 = vadd.f32 %v435, %v441
  %v466 = vadd.f32 %v436, %v441
  %v467 = vmax.f32 %v442, 0.0
  %v468 = vmax.f32 %v443, 0.0
  %v469 = vmax.f32 %v444, 0.0
  %v470 = vmax.f32 %v445, 0.0
  %v471 = vmax.f32 %v446, 0.0
  %v472 = vmax.f32 %v447, 0.0
  %v473 = vmax.f32 %v448, 0.0
  %v474 = vmax.f32 %v449, 0.0
  %v475 = vmax.f32 %v450, 0.0
  %v476 = vmax.f32 %v451, 0.0
  %v477 = vmax.f32 %v452, 0.0
  %v478 = vmax.f32 %v453, 0.0
  %v479 = vmax.f32 %v454, 0.0
  %v480 = vmax.f32 %v455, 0.0
  %v481 = vmax.f32 %v456, 0.0
  %v482 = vmax.f32 %v457, 0.0
  %v483 = vmax.f32 %v458, 0.0
  %v484 = vmax.f32 %v459, 0.0
  %v485 = vmax.f32 %v460, 0.0
  %v486 = vmax.f32 %v461, 0.0
  %v487 = vmax.f32 %v462, 0.0
  %v488 = vmax.f32 %v463, 0.0
  %v489 = vmax.f32 %v464, 0.0
  %v490 = vmax.f32 %v465, 0.0
  %v491 = vmax.f32 %v466, 0.0
  %v492 = vld [vmem:[%s4] sm:$0xf]
  %v493 = vld [vmem:[%s4 + $0x4] sm:$0xf]
  %v494 = vld [vmem:[%s4 + $0x8] sm:$0xf]
  %v495 = vld [vmem:[%s4 + $0xc] sm:$0xf]
  %v496 = vld [vmem:[%s4 + $0x10] sm:$0xf]
  %v497 = vld [vmem:[%s4 + $0x14] sm:$0xf]
  %v498 = vld [vmem:[%s4 + $0x18] sm:$0xf]
  %v499 = vld [vmem:[%s4 + $0x1c] sm:$0xf]
  %v500 = vld [vmem:[%s4 + $0x20] sm:$0xf]
  %v501 = vld [vmem:[%s4 + $0x24] sm:$0xf]
  %v502 = vld [vmem:[%s4 + $0x28] sm:$0xf]
  %v503 = vld [vmem:[%s4 + $0x2c] sm:$0xf]
  %v504 = vld [vmem:[%s4 + $0x30] sm:$0xf]
  %v505 = vld [vmem:[%s4 + $0x34] sm:$0xf]
  %v506 = vld [vmem:[%s4 + $0x38] sm:$0xf]
  %v507 = vld [vmem:[%s4 + $0x3c] sm:$0xf]
  %v508 = vld [vmem:[%s4 + $0x40] sm:$0xf]
  %v509 = vld [vmem:[%s4 + $0x44] sm:$0xf]
  %v510 = vld [vmem:[%s4 + $0x48] sm:$0xf]
  %v511 = vld [vmem:[%s4 + $0x4c] sm:$0xf]
  %v512 = vld [vmem:[%s4 + $0x50] sm:$0xf]
  %v513 = vld [vmem:[%s4 + $0x54] sm:$0xf]
  %v514 = vld [vmem:[%s4 + $0x58] sm:$0xf]
  %v515 = vld [vmem:[%s4 + $0x5c] sm:$0xf]
  %v516 = vld [vmem:[%s4 + $0x60] sm:$0xf]
  %v517 = vunpack.c.l.bf16 %v492
  %v518 = vunpack.c.l.bf16 %v493
  %v519 = vunpack.c.l.bf16 %v494
  %v520 = vunpack.c.l.bf16 %v495
  %v521 = vunpack.c.l.bf16 %v496
  %v522 = vunpack.c.l.bf16 %v497
  %v523 = vunpack.c.l.bf16 %v498
  %v524 = vunpack.c.l.bf16 %v499
  %v525 = vunpack.c.l.bf16 %v500
  %v526 = vunpack.c.l.bf16 %v501
  %v527 = vunpack.c.l.bf16 %v502
  %v528 = vunpack.c.l.bf16 %v503
  %v529 = vunpack.c.l.bf16 %v504
  %v530 = vunpack.c.l.bf16 %v505
  %v531 = vunpack.c.l.bf16 %v506
  %v532 = vunpack.c.l.bf16 %v507
  %v533 = vunpack.c.l.bf16 %v508
  %v534 = vunpack.c.l.bf16 %v509
  %v535 = vunpack.c.l.bf16 %v510
  %v536 = vunpack.c.l.bf16 %v511
  %v537 = vunpack.c.l.bf16 %v512
  %v538 = vunpack.c.l.bf16 %v513
  %v539 = vunpack.c.l.bf16 %v514
  %v540 = vunpack.c.l.bf16 %v515
  %v541 = vunpack.c.l.bf16 %v516
  %v542 = vmul.f32 %v467, %v517
  %v543 = vmul.f32 %v468, %v518
  %v544 = vmul.f32 %v469, %v519
  %v545 = vmul.f32 %v470, %v520
  %v546 = vmul.f32 %v471, %v521
  %v547 = vmul.f32 %v472, %v522
  %v548 = vmul.f32 %v473, %v523
  %v549 = vmul.f32 %v474, %v524
  %v550 = vmul.f32 %v475, %v525
  %v551 = vmul.f32 %v476, %v526
  %v552 = vmul.f32 %v477, %v527
  %v553 = vmul.f32 %v478, %v528
  %v554 = vmul.f32 %v479, %v529
  %v555 = vmul.f32 %v480, %v530
  %v556 = vmul.f32 %v481, %v531
  %v557 = vmul.f32 %v482, %v532
  %v558 = vmul.f32 %v483, %v533
  %v559 = vmul.f32 %v484, %v534
  %v560 = vmul.f32 %v485, %v535
  %v561 = vmul.f32 %v486, %v536
  %v562 = vmul.f32 %v487, %v537
  %v563 = vmul.f32 %v488, %v538
  %v564 = vmul.f32 %v489, %v539
  %v565 = vmul.f32 %v490, %v540
  %v566 = vmul.f32 %v491, %v541
  %v567 = vld [vmem:[%s1 + $0x20] sm:$0xf]
  %v568 = vld [vmem:[%s1 + $0x24] sm:$0xf]
  %v569 = vld [vmem:[%s1 + $0x28] sm:$0xf]
  %v570 = vld [vmem:[%s1 + $0x2c] sm:$0xf]
  %v571 = vld [vmem:[%s1 + $0x30] sm:$0xf]
  %v572 = vld [vmem:[%s1 + $0x34] sm:$0xf]
  %v573 = vld [vmem:[%s1 + $0x38] sm:$0xf]
  %v574 = vld [vmem:[%s1 + $0x3c] sm:$0xf]
  %v575 = vpack.c.bf16 %v543, %v542
  %v576 = vpack.c.bf16 %v545, %v544
  %v577 = vpack.c.bf16 %v547, %v546
  %v578 = vpack.c.bf16 %v549, %v548
  %v579 = vpack.c.bf16 %v551, %v550
  %v580 = vpack.c.bf16 %v553, %v552
  %v581 = vpack.c.bf16 %v555, %v554
  %v582 = vpack.c.bf16 %v557, %v556
  %v583 = vpack.c.bf16 %v559, %v558
  %v584 = vpack.c.bf16 %v561, %v560
  %v585 = vpack.c.bf16 %v563, %v562
  %v586 = vpack.c.bf16 %v565, %v564
  %v587 = vpack.c.bf16 %v566, %v566
  %v596 = vunpack.c.l.b16 %v567
  %v597 = vunpack.c.l.b16 %v568
  %v598 = vunpack.c.l.b16 %v569
  %v599 = vunpack.c.l.b16 %v570
  %v600 = vunpack.c.l.b16 %v571
  %v601 = vunpack.c.l.b16 %v572
  %v602 = vunpack.c.l.b16 %v573
  %v603 = vunpack.c.l.b16 %v574
  %v604 = vpack.c.b16 %v597, %v596
  %v605 = vpack.c.b16 %v599, %v598
  %v606 = vpack.c.b16 %v601, %v600
  %v607 = vpack.c.b16 %v603, %v602
  %v613 = vsel %vm91, %v575, 0
  %v616 = vsel %vm91, %v576, 0
  %v619 = vsel %vm91, %v577, 0
  %v622 = vsel %vm91, %v578, 0
  %v625 = vsel %vm91, %v579, 0
  %v628 = vsel %vm91, %v580, 0
  %v631 = vsel %vm91, %v581, 0
  %v634 = vsel %vm91, %v582, 0
  %v637 = vsel %vm91, %v583, 0
  %v640 = vsel %vm91, %v584, 0
  %v643 = vsel %vm91, %v585, 0
  %v646 = vsel %vm91, %v586, 0
  %v649 = vsel %vm91, %v587, 0
  %651 = vmatprep.subr.bf16.mxu0 0
  %652 = vmatpush1.bf16.msra.mxu0 0
  %653 = vmatprep.subr.bf16.mxu0 0
  %654 = vmatpush1.bf16.msra.mxu0 0
  %655 = vmatprep.subr.bf16.mxu0 0
  %656 = vmatpush1.bf16.msra.mxu0 0
  %657 = vmatprep.subr.bf16.mxu0 0
  %658 = vmatpush1.bf16.msra.mxu0 0
  %659 = vmatprep.subr.bf16.mxu0 0
  %660 = vmatpush1.bf16.msra.mxu0 %v607
  %661 = vmatprep.subr.bf16.mxu0 0
  %662 = vmatpush1.bf16.msra.mxu0 %v606
  %663 = vmatprep.subr.bf16.mxu0 0
  %664 = vmatpush1.bf16.msra.mxu0 %v605
  %665 = vmatprep.subr.bf16.mxu0 0
  %666 = vmatpush1.bf16.msra.mxu0 %v604
  %667 = vmatprep.subr.bf16.mxu0 0
  %668 = vmatpush2.bf16.msra.mxu0 0
  %669 = vmatprep.subr.bf16.mxu0 0
  %670 = vmatpush2.bf16.msra.mxu0 0
  %671 = vmatprep.subr.bf16.mxu0 0
  %672 = vmatpush2.bf16.msra.mxu0 0
  %673 = vmatprep.subr.bf16.mxu0 0
  %674 = vmatpush2.bf16.msra.mxu0 0
  %675 = vmatprep.subr.bf16.mxu0 0
  %676 = vmatpush2.bf16.msra.mxu0 0
  %677 = vmatprep.subr.bf16.mxu0 0
  %678 = vmatpush2.bf16.msra.mxu0 0
  %679 = vmatprep.subr.bf16.mxu0 0
  %680 = vmatpush2.bf16.msra.mxu0 0
  %681 = vmatprep.subr.bf16.mxu0 0
  %682 = vmatpush2.bf16.msra.mxu0 0
  %683 = vmatprep.mubr.bf16.mxu0 0
  %684 = vmatmul.mubr.bf16.gmra.mxu0 %v613
  %v685 = vpop.f32.mrf.mxu0
  %v686 = vadd.f32 0.0, %v685
  %v687 = vpop.f32.mrf.mxu0
  %v688 = vpop.f32.mrf.mxu0
  %v689 = vadd.f32 0.0, %v688
  %v690 = vpop.f32.mrf.mxu0
  %691 = vmatprep.mubr.bf16.mxu0 0
  %692 = vmatmul.mubr.bf16.gmra.mxu0 %v616
  %v693 = vpop.f32.mrf.mxu0
  %v694 = vadd.f32 0.0, %v693
  %v695 = vpop.f32.mrf.mxu0
  %v696 = vpop.f32.mrf.mxu0
  %v697 = vadd.f32 0.0, %v696
  %v698 = vpop.f32.mrf.mxu0
  %699 = vmatprep.mubr.bf16.mxu0 0
  %700 = vmatmul.mubr.bf16.gmra.mxu0 %v619
  %v701 = vpop.f32.mrf.mxu0
  %v702 = vadd.f32 0.0, %v701
  %v703 = vpop.f32.mrf.mxu0
  %v704 = vpop.f32.mrf.mxu0
  %v705 = vadd.f32 0.0, %v704
  %v706 = vpop.f32.mrf.mxu0
  %707 = vmatprep.mubr.bf16.mxu0 0
  %708 = vmatmul.mubr.bf16.gmra.mxu0 %v622
  %v709 = vpop.f32.mrf.mxu0
  %v710 = vadd.f32 0.0, %v709
  %v711 = vpop.f32.mrf.mxu0
  %v712 = vpop.f32.mrf.mxu0
  %v713 = vadd.f32 0.0, %v712
  %v714 = vpop.f32.mrf.mxu0
  %715 = vmatprep.mubr.bf16.mxu0 0
  %716 = vmatmul.mubr.bf16.gmra.mxu0 %v625
  %v717 = vpop.f32.mrf.mxu0
  %v718 = vadd.f32 0.0, %v717
  %v719 = vpop.f32.mrf.mxu0
  %v720 = vpop.f32.mrf.mxu0
  %v721 = vadd.f32 0.0, %v720
  %v722 = vpop.f32.mrf.mxu0
  %723 = vmatprep.mubr.bf16.mxu0 0
  %724 = vmatmul.mubr.bf16.gmra.mxu0 %v628
  %v725 = vpop.f32.mrf.mxu0
  %v726 = vadd.f32 0.0, %v725
  %v727 = vpop.f32.mrf.mxu0
  %v728 = vpop.f32.mrf.mxu0
  %v729 = vadd.f32 0.0, %v728
  %v730 = vpop.f32.mrf.mxu0
  %731 = vmatprep.mubr.bf16.mxu0 0
  %732 = vmatmul.mubr.bf16.gmra.mxu0 %v631
  %v733 = vpop.f32.mrf.mxu0
  %v734 = vadd.f32 0.0, %v733
  %v735 = vpop.f32.mrf.mxu0
  %v736 = vpop.f32.mrf.mxu0
  %v737 = vadd.f32 0.0, %v736
  %v738 = vpop.f32.mrf.mxu0
  %739 = vmatprep.mubr.bf16.mxu0 0
  %740 = vmatmul.mubr.bf16.gmra.mxu0 %v634
  %v741 = vpop.f32.mrf.mxu0
  %v742 = vadd.f32 0.0, %v741
  %v743 = vpop.f32.mrf.mxu0
  %v744 = vpop.f32.mrf.mxu0
  %v745 = vadd.f32 0.0, %v744
  %v746 = vpop.f32.mrf.mxu0
  %747 = vmatprep.mubr.bf16.mxu0 0
  %748 = vmatmul.mubr.bf16.gmra.mxu0 %v637
  %v749 = vpop.f32.mrf.mxu0
  %v750 = vadd.f32 0.0, %v749
  %v751 = vpop.f32.mrf.mxu0
  %v752 = vpop.f32.mrf.mxu0
  %v753 = vadd.f32 0.0, %v752
  %v754 = vpop.f32.mrf.mxu0
  %755 = vmatprep.mubr.bf16.mxu0 0
  %756 = vmatmul.mubr.bf16.gmra.mxu0 %v640
  %v757 = vpop.f32.mrf.mxu0
  %v758 = vadd.f32 0.0, %v757
  %v759 = vpop.f32.mrf.mxu0
  %v760 = vpop.f32.mrf.mxu0
  %v761 = vadd.f32 0.0, %v760
  %v762 = vpop.f32.mrf.mxu0
  %763 = vmatprep.mubr.bf16.mxu0 0
  %764 = vmatmul.mubr.bf16.gmra.mxu0 %v643
  %v765 = vpop.f32.mrf.mxu0
  %v766 = vadd.f32 0.0, %v765
  %v767 = vpop.f32.mrf.mxu0
  %v768 = vpop.f32.mrf.mxu0
  %v769 = vadd.f32 0.0, %v768
  %v770 = vpop.f32.mrf.mxu0
  %771 = vmatprep.mubr.bf16.mxu0 0
  %772 = vmatmul.mubr.bf16.gmra.mxu0 %v646
  %v773 = vpop.f32.mrf.mxu0
  %v774 = vadd.f32 0.0, %v773
  %v775 = vpop.f32.mrf.mxu0
  %v776 = vpop.f32.mrf.mxu0
  %v777 = vadd.f32 0.0, %v776
  %v778 = vpop.f32.mrf.mxu0
  %779 = vmatprep.mubr.bf16.mxu0 0
  %780 = vmatmul.mubr.bf16.gmra.mxu0 %v649
  %v781 = vpop.f32.mrf.mxu0
  %v782 = vadd.f32 0.0, %v781
  %v783 = vpop.f32.mrf.mxu0
  %v784 = vpop.f32.mrf.mxu0
  %v785 = vpop.f32.mrf.mxu0
  %786 = vdwg.mxu0
  %v787 = vld [vmem:[%s1 + $0x40] sm:$0xf]
  %v788 = vld [vmem:[%s1 + $0x44] sm:$0xf]
  %v789 = vld [vmem:[%s1 + $0x48] sm:$0xf]
  %v790 = vld [vmem:[%s1 + $0x4c] sm:$0xf]
  %v791 = vpack.c.bf16 %v689, %v686
  %v792 = vpack.c.bf16 %v697, %v694
  %v793 = vpack.c.bf16 %v705, %v702
  %v794 = vpack.c.bf16 %v713, %v710
  %v795 = vpack.c.bf16 %v721, %v718
  %v796 = vpack.c.bf16 %v729, %v726
  %v797 = vpack.c.bf16 %v737, %v734
  %v798 = vpack.c.bf16 %v745, %v742
  %v799 = vpack.c.bf16 %v753, %v750
  %v800 = vpack.c.bf16 %v761, %v758
  %v801 = vpack.c.bf16 %v769, %v766
  %v802 = vpack.c.bf16 %v777, %v774
  %v803 = vpack.c.bf16 %v782, %v782
  %v808 = vunpack.c.l.b16 %v787
  %v809 = vunpack.c.l.b16 %v788
  %v810 = vunpack.c.l.b16 %v789
  %v811 = vunpack.c.l.b16 %v790
  %v812 = vpack.c.b16 %v809, %v808
  %v813 = vpack.c.b16 %v811, %v810
  %vm816 = vcmask 261120
  %v818 = vsel %vm816, %v791, 0
  %v821 = vsel %vm816, %v792, 0
  %v824 = vsel %vm816, %v793, 0
  %v827 = vsel %vm816, %v794, 0
  %v830 = vsel %vm816, %v795, 0
  %v833 = vsel %vm816, %v796, 0
  %v836 = vsel %vm816, %v797, 0
  %v839 = vsel %vm816, %v798, 0
  %v842 = vsel %vm816, %v799, 0
  %v845 = vsel %vm816, %v800, 0
  %v848 = vsel %vm816, %v801, 0
  %v851 = vsel %vm816, %v802, 0
  %v854 = vsel %vm816, %v803, 0
  %856 = vmatprep.subr.bf16.mxu0 0
  %857 = vmatpush1.bf16.msra.mxu0 0
  %858 = vmatprep.subr.bf16.mxu0 0
  %859 = vmatpush1.bf16.msra.mxu0 0
  %860 = vmatprep.subr.bf16.mxu0 0
  %861 = vmatpush1.bf16.msra.mxu0 0
  %862 = vmatprep.subr.bf16.mxu0 0
  %863 = vmatpush1.bf16.msra.mxu0 0
  %864 = vmatprep.subr.bf16.mxu0 0
  %865 = vmatpush1.bf16.msra.mxu0 0
  %866 = vmatprep.subr.bf16.mxu0 0
  %867 = vmatpush1.bf16.msra.mxu0 0
  %868 = vmatprep.subr.bf16.mxu0 0
  %869 = vmatpush1.bf16.msra.mxu0 %v813
  %870 = vmatprep.subr.bf16.mxu0 0
  %871 = vmatpush1.bf16.msra.mxu0 %v812
  %872 = vmatprep.subr.bf16.mxu0 0
  %873 = vmatpush2.bf16.msra.mxu0 0
  %874 = vmatprep.subr.bf16.mxu0 0
  %875 = vmatpush2.bf16.msra.mxu0 0
  %876 = vmatprep.subr.bf16.mxu0 0
  %877 = vmatpush2.bf16.msra.mxu0 0
  %878 = vmatprep.subr.bf16.mxu0 0
  %879 = vmatpush2.bf16.msra.mxu0 0
  %880 = vmatprep.subr.bf16.mxu0 0
  %881 = vmatpush2.bf16.msra.mxu0 0
  %882 = vmatprep.subr.bf16.mxu0 0
  %883 = vmatpush2.bf16.msra.mxu0 0
  %884 = vmatprep.subr.bf16.mxu0 0
  %885 = vmatpush2.bf16.msra.mxu0 0
  %886 = vmatprep.subr.bf16.mxu0 0
  %887 = vmatpush2.bf16.msra.mxu0 0
  %888 = vmatprep.mubr.bf16.mxu0 0
  %889 = vmatmul.mubr.bf16.gmra.mxu0 %v818
  %v890 = vpop.f32.mrf.mxu0
  %v891 = vadd.f32 0.0, %v890
  %v892 = vpop.f32.mrf.mxu0
  %v893 = vpop.f32.mrf.mxu0
  %v894 = vadd.f32 0.0, %v893
  %v895 = vpop.f32.mrf.mxu0
  %896 = vmatprep.mubr.bf16.mxu0 0
  %897 = vmatmul.mubr.bf16.gmra.mxu0 %v821
  %v898 = vpop.f32.mrf.mxu0
  %v899 = vadd.f32 0.0, %v898
  %v900 = vpop.f32.mrf.mxu0
  %v901 = vpop.f32.mrf.mxu0
  %v902 = vadd.f32 0.0, %v901
  %v903 = vpop.f32.mrf.mxu0
  %904 = vmatprep.mubr.bf16.mxu0 0
  %905 = vmatmul.mubr.bf16.gmra.mxu0 %v824
  %v906 = vpop.f32.mrf.mxu0
  %v907 = vadd.f32 0.0, %v906
  %v908 = vpop.f32.mrf.mxu0
  %v909 = vpop.f32.mrf.mxu0
  %v910 = vadd.f32 0.0, %v909
  %v911 = vpop.f32.mrf.mxu0
  %912 = vmatprep.mubr.bf16.mxu0 0
  %913 = vmatmul.mubr.bf16.gmra.mxu0 %v827
  %v914 = vpop.f32.mrf.mxu0
  %v915 = vadd.f32 0.0, %v914
  %v916 = vpop.f32.mrf.mxu0
  %v917 = vpop.f32.mrf.mxu0
  %v918 = vadd.f32 0.0, %v917
  %v919 = vpop.f32.mrf.mxu0
  %920 = vmatprep.mubr.bf16.mxu0 0
  %921 = vmatmul.mubr.bf16.gmra.mxu0 %v830
  %v922 = vpop.f32.mrf.mxu0
  %v923 = vadd.f32 0.0, %v922
  %v924 = vpop.f32.mrf.mxu0
  %v925 = vpop.f32.mrf.mxu0
  %v926 = vadd.f32 0.0, %v925
  %v927 = vpop.f32.mrf.mxu0
  %928 = vmatprep.mubr.bf16.mxu0 0
  %929 = vmatmul.mubr.bf16.gmra.mxu0 %v833
  %v930 = vpop.f32.mrf.mxu0
  %v931 = vadd.f32 0.0, %v930
  %v932 = vpop.f32.mrf.mxu0
  %v933 = vpop.f32.mrf.mxu0
  %v934 = vadd.f32 0.0, %v933
  %v935 = vpop.f32.mrf.mxu0
  %936 = vmatprep.mubr.bf16.mxu0 0
  %937 = vmatmul.mubr.bf16.gmra.mxu0 %v836
  %v938 = vpop.f32.mrf.mxu0
  %v939 = vadd.f32 0.0, %v938
  %v940 = vpop.f32.mrf.mxu0
  %v941 = vpop.f32.mrf.mxu0
  %v942 = vadd.f32 0.0, %v941
  %v943 = vpop.f32.mrf.mxu0
  %944 = vmatprep.mubr.bf16.mxu0 0
  %945 = vmatmul.mubr.bf16.gmra.mxu0 %v839
  %v946 = vpop.f32.mrf.mxu0
  %v947 = vadd.f32 0.0, %v946
  %v948 = vpop.f32.mrf.mxu0
  %v949 = vpop.f32.mrf.mxu0
  %v950 = vadd.f32 0.0, %v949
  %v951 = vpop.f32.mrf.mxu0
  %952 = vmatprep.mubr.bf16.mxu0 0
  %953 = vmatmul.mubr.bf16.gmra.mxu0 %v842
  %v954 = vpop.f32.mrf.mxu0
  %v955 = vadd.f32 0.0, %v954
  %v956 = vpop.f32.mrf.mxu0
  %v957 = vpop.f32.mrf.mxu0
  %v958 = vadd.f32 0.0, %v957
  %v959 = vpop.f32.mrf.mxu0
  %960 = vmatprep.mubr.bf16.mxu0 0
  %961 = vmatmul.mubr.bf16.gmra.mxu0 %v845
  %v962 = vpop.f32.mrf.mxu0
  %v963 = vadd.f32 0.0, %v962
  %v964 = vpop.f32.mrf.mxu0
  %v965 = vpop.f32.mrf.mxu0
  %v966 = vadd.f32 0.0, %v965
  %v967 = vpop.f32.mrf.mxu0
  %968 = vmatprep.mubr.bf16.mxu0 0
  %969 = vmatmul.mubr.bf16.gmra.mxu0 %v848
  %v970 = vpop.f32.mrf.mxu0
  %v971 = vadd.f32 0.0, %v970
  %v972 = vpop.f32.mrf.mxu0
  %v973 = vpop.f32.mrf.mxu0
  %v974 = vadd.f32 0.0, %v973
  %v975 = vpop.f32.mrf.mxu0
  %976 = vmatprep.mubr.bf16.mxu0 0
  %977 = vmatmul.mubr.bf16.gmra.mxu0 %v851
  %v978 = vpop.f32.mrf.mxu0
  %v979 = vadd.f32 0.0, %v978
  %v980 = vpop.f32.mrf.mxu0
  %v981 = vpop.f32.mrf.mxu0
  %v982 = vadd.f32 0.0, %v981
  %v983 = vpop.f32.mrf.mxu0
  %984 = vmatprep.mubr.bf16.mxu0 0
  %985 = vmatmul.mubr.bf16.gmra.mxu0 %v854
  %v986 = vpop.f32.mrf.mxu0
  %v987 = vadd.f32 0.0, %v986
  %v988 = vpop.f32.mrf.mxu0
  %v989 = vpop.f32.mrf.mxu0
  %v990 = vpop.f32.mrf.mxu0
  %991 = vdwg.mxu0
  %v992 = vadd.f32 %v891, %v894
  %v993 = vadd.f32 %v992, %v899
  %v994 = vadd.f32 %v993, %v902
  %v995 = vadd.f32 %v994, %v907
  %v996 = vadd.f32 %v995, %v910
  %v997 = vadd.f32 %v996, %v915
  %v998 = vadd.f32 %v997, %v918
  %v999 = vadd.f32 %v998, %v923
  %v1000 = vadd.f32 %v999, %v926
  %v1001 = vadd.f32 %v1000, %v931
  %v1002 = vadd.f32 %v1001, %v934
  %v1003 = vadd.f32 %v1002, %v939
  %v1004 = vadd.f32 %v1003, %v942
  %v1005 = vadd.f32 %v1004, %v947
  %v1006 = vadd.f32 %v1005, %v950
  %v1007 = vadd.f32 %v1006, %v955
  %v1008 = vadd.f32 %v1007, %v958
  %v1009 = vadd.f32 %v1008, %v963
  %v1010 = vadd.f32 %v1009, %v966
  %v1011 = vadd.f32 %v1010, %v971
  %v1012 = vadd.f32 %v1011, %v974
  %v1013 = vadd.f32 %v1012, %v979
  %v1014 = vadd.f32 %v1013, %v982
  %v1015 = vadd.f32 %v1014, %v987
  %v1016 = vrot.slane %v1015, 4
  %v1017 = vadd.f32 %v1015, %v1016
  %v1018 = vrot.slane %v1017, 2
  %v1019 = vadd.f32 %v1017, %v1018
  %v1020 = vrot.slane %v1019, 1
  %v1021 = vadd.f32 %v1019, %v1020
  %v1022 = vmul.f32 %v1021, %v297
  %v1023 = vsub.f32 %v891, %v1022
  %v1024 = vsub.f32 %v894, %v1022
  %v1025 = vsub.f32 %v899, %v1022
  %v1026 = vsub.f32 %v902, %v1022
  %v1027 = vsub.f32 %v907, %v1022
  %v1028 = vsub.f32 %v910, %v1022
  %v1029 = vsub.f32 %v915, %v1022
  %v1030 = vsub.f32 %v918, %v1022
  %v1031 = vsub.f32 %v923, %v1022
  %v1032 = vsub.f32 %v926, %v1022
  %v1033 = vsub.f32 %v931, %v1022
  %v1034 = vsub.f32 %v934, %v1022
  %v1035 = vsub.f32 %v939, %v1022
  %v1036 = vsub.f32 %v942, %v1022
  %v1037 = vsub.f32 %v947, %v1022
  %v1038 = vsub.f32 %v950, %v1022
  %v1039 = vsub.f32 %v955, %v1022
  %v1040 = vsub.f32 %v958, %v1022
  %v1041 = vsub.f32 %v963, %v1022
  %v1042 = vsub.f32 %v966, %v1022
  %v1043 = vsub.f32 %v971, %v1022
  %v1044 = vsub.f32 %v974, %v1022
  %v1045 = vsub.f32 %v979, %v1022
  %v1046 = vsub.f32 %v982, %v1022
  %v1047 = vsub.f32 %v987, %v1022
  %v1048 = vmul.f32 %v1023, %v1023
  %v1049 = vmul.f32 %v1024, %v1024
  %v1050 = vmul.f32 %v1025, %v1025
  %v1051 = vmul.f32 %v1026, %v1026
  %v1052 = vmul.f32 %v1027, %v1027
  %v1053 = vmul.f32 %v1028, %v1028
  %v1054 = vmul.f32 %v1029, %v1029
  %v1055 = vmul.f32 %v1030, %v1030
  %v1056 = vmul.f32 %v1031, %v1031
  %v1057 = vmul.f32 %v1032, %v1032
  %v1058 = vmul.f32 %v1033, %v1033
  %v1059 = vmul.f32 %v1034, %v1034
  %v1060 = vmul.f32 %v1035, %v1035
  %v1061 = vmul.f32 %v1036, %v1036
  %v1062 = vmul.f32 %v1037, %v1037
  %v1063 = vmul.f32 %v1038, %v1038
  %v1064 = vmul.f32 %v1039, %v1039
  %v1065 = vmul.f32 %v1040, %v1040
  %v1066 = vmul.f32 %v1041, %v1041
  %v1067 = vmul.f32 %v1042, %v1042
  %v1068 = vmul.f32 %v1043, %v1043
  %v1069 = vmul.f32 %v1044, %v1044
  %v1070 = vmul.f32 %v1045, %v1045
  %v1071 = vmul.f32 %v1046, %v1046
  %v1072 = vmul.f32 %v1047, %v1047
  %v1073 = vadd.f32 %v1048, %v1049
  %v1074 = vadd.f32 %v1073, %v1050
  %v1075 = vadd.f32 %v1074, %v1051
  %v1076 = vadd.f32 %v1075, %v1052
  %v1077 = vadd.f32 %v1076, %v1053
  %v1078 = vadd.f32 %v1077, %v1054
  %v1079 = vadd.f32 %v1078, %v1055
  %v1080 = vadd.f32 %v1079, %v1056
  %v1081 = vadd.f32 %v1080, %v1057
  %v1082 = vadd.f32 %v1081, %v1058
  %v1083 = vadd.f32 %v1082, %v1059
  %v1084 = vadd.f32 %v1083, %v1060
  %v1085 = vadd.f32 %v1084, %v1061
  %v1086 = vadd.f32 %v1085, %v1062
  %v1087 = vadd.f32 %v1086, %v1063
  %v1088 = vadd.f32 %v1087, %v1064
  %v1089 = vadd.f32 %v1088, %v1065
  %v1090 = vadd.f32 %v1089, %v1066
  %v1091 = vadd.f32 %v1090, %v1067
  %v1092 = vadd.f32 %v1091, %v1068
  %v1093 = vadd.f32 %v1092, %v1069
  %v1094 = vadd.f32 %v1093, %v1070
  %v1095 = vadd.f32 %v1094, %v1071
  %v1096 = vadd.f32 %v1095, %v1072
  %v1097 = vrot.slane %v1096, 4
  %v1098 = vadd.f32 %v1096, %v1097
  %v1099 = vrot.slane %v1098, 2
  %v1100 = vadd.f32 %v1098, %v1099
  %v1101 = vrot.slane %v1100, 1
  %v1102 = vadd.f32 %v1100, %v1101
  %v1103 = vmul.f32 %v1102, %v297
  %v1104 = vadd.f32 %v1103, 1e-05
  %v1105 = vrsqrt.pop %v1104
  %v1106 = vmul.f32 %v1023, %v1105
  %v1107 = vmul.f32 %v1024, %v1105
  %v1108 = vmul.f32 %v1025, %v1105
  %v1109 = vmul.f32 %v1026, %v1105
  %v1110 = vmul.f32 %v1027, %v1105
  %v1111 = vmul.f32 %v1028, %v1105
  %v1112 = vmul.f32 %v1029, %v1105
  %v1113 = vmul.f32 %v1030, %v1105
  %v1114 = vmul.f32 %v1031, %v1105
  %v1115 = vmul.f32 %v1032, %v1105
  %v1116 = vmul.f32 %v1033, %v1105
  %v1117 = vmul.f32 %v1034, %v1105
  %v1118 = vmul.f32 %v1035, %v1105
  %v1119 = vmul.f32 %v1036, %v1105
  %v1120 = vmul.f32 %v1037, %v1105
  %v1121 = vmul.f32 %v1038, %v1105
  %v1122 = vmul.f32 %v1039, %v1105
  %v1123 = vmul.f32 %v1040, %v1105
  %v1124 = vmul.f32 %v1041, %v1105
  %v1125 = vmul.f32 %v1042, %v1105
  %v1126 = vmul.f32 %v1043, %v1105
  %v1127 = vmul.f32 %v1044, %v1105
  %v1128 = vmul.f32 %v1045, %v1105
  %v1129 = vmul.f32 %v1046, %v1105
  %v1130 = vmul.f32 %v1047, %v1105
  %v1131 = vld [vmem:[%s2 + $0x1] sm:$0x1]
  %v1132 = vlaneseq
  %v1133 = vshrl.u32 %v1132, 7
  %v1134 = vsub.s32 0, %v1133
  %v1135 = vrot.slane %v1131, %v1134
  %v1136 = vmul.f32 %v1106, %v1135
  %v1137 = vmul.f32 %v1107, %v1135
  %v1138 = vmul.f32 %v1108, %v1135
  %v1139 = vmul.f32 %v1109, %v1135
  %v1140 = vmul.f32 %v1110, %v1135
  %v1141 = vmul.f32 %v1111, %v1135
  %v1142 = vmul.f32 %v1112, %v1135
  %v1143 = vmul.f32 %v1113, %v1135
  %v1144 = vmul.f32 %v1114, %v1135
  %v1145 = vmul.f32 %v1115, %v1135
  %v1146 = vmul.f32 %v1116, %v1135
  %v1147 = vmul.f32 %v1117, %v1135
  %v1148 = vmul.f32 %v1118, %v1135
  %v1149 = vmul.f32 %v1119, %v1135
  %v1150 = vmul.f32 %v1120, %v1135
  %v1151 = vmul.f32 %v1121, %v1135
  %v1152 = vmul.f32 %v1122, %v1135
  %v1153 = vmul.f32 %v1123, %v1135
  %v1154 = vmul.f32 %v1124, %v1135
  %v1155 = vmul.f32 %v1125, %v1135
  %v1156 = vmul.f32 %v1126, %v1135
  %v1157 = vmul.f32 %v1127, %v1135
  %v1158 = vmul.f32 %v1128, %v1135
  %v1159 = vmul.f32 %v1129, %v1135
  %v1160 = vmul.f32 %v1130, %v1135
  %v1161 = vld [vmem:[%s3 + $0x1] sm:$0x1]
  %v1162 = vlaneseq
  %v1163 = vshrl.u32 %v1162, 7
  %v1164 = vsub.s32 0, %v1163
  %v1165 = vrot.slane %v1161, %v1164
  %v1166 = vadd.f32 %v1136, %v1165
  %v1167 = vadd.f32 %v1137, %v1165
  %v1168 = vadd.f32 %v1138, %v1165
  %v1169 = vadd.f32 %v1139, %v1165
  %v1170 = vadd.f32 %v1140, %v1165
  %v1171 = vadd.f32 %v1141, %v1165
  %v1172 = vadd.f32 %v1142, %v1165
  %v1173 = vadd.f32 %v1143, %v1165
  %v1174 = vadd.f32 %v1144, %v1165
  %v1175 = vadd.f32 %v1145, %v1165
  %v1176 = vadd.f32 %v1146, %v1165
  %v1177 = vadd.f32 %v1147, %v1165
  %v1178 = vadd.f32 %v1148, %v1165
  %v1179 = vadd.f32 %v1149, %v1165
  %v1180 = vadd.f32 %v1150, %v1165
  %v1181 = vadd.f32 %v1151, %v1165
  %v1182 = vadd.f32 %v1152, %v1165
  %v1183 = vadd.f32 %v1153, %v1165
  %v1184 = vadd.f32 %v1154, %v1165
  %v1185 = vadd.f32 %v1155, %v1165
  %v1186 = vadd.f32 %v1156, %v1165
  %v1187 = vadd.f32 %v1157, %v1165
  %v1188 = vadd.f32 %v1158, %v1165
  %v1189 = vadd.f32 %v1159, %v1165
  %v1190 = vadd.f32 %v1160, %v1165
  %v1191 = vmax.f32 %v1166, 0.0
  %v1192 = vmax.f32 %v1167, 0.0
  %v1193 = vmax.f32 %v1168, 0.0
  %v1194 = vmax.f32 %v1169, 0.0
  %v1195 = vmax.f32 %v1170, 0.0
  %v1196 = vmax.f32 %v1171, 0.0
  %v1197 = vmax.f32 %v1172, 0.0
  %v1198 = vmax.f32 %v1173, 0.0
  %v1199 = vmax.f32 %v1174, 0.0
  %v1200 = vmax.f32 %v1175, 0.0
  %v1201 = vmax.f32 %v1176, 0.0
  %v1202 = vmax.f32 %v1177, 0.0
  %v1203 = vmax.f32 %v1178, 0.0
  %v1204 = vmax.f32 %v1179, 0.0
  %v1205 = vmax.f32 %v1180, 0.0
  %v1206 = vmax.f32 %v1181, 0.0
  %v1207 = vmax.f32 %v1182, 0.0
  %v1208 = vmax.f32 %v1183, 0.0
  %v1209 = vmax.f32 %v1184, 0.0
  %v1210 = vmax.f32 %v1185, 0.0
  %v1211 = vmax.f32 %v1186, 0.0
  %v1212 = vmax.f32 %v1187, 0.0
  %v1213 = vmax.f32 %v1188, 0.0
  %v1214 = vmax.f32 %v1189, 0.0
  %v1215 = vmax.f32 %v1190, 0.0
  %s1216 = scalar_lea.vmem %s4, 100
  %v1217 = vld [vmem:[%s1216] sm:$0xf]
  %v1218 = vld [vmem:[%s1216 + $0x4] sm:$0xf]
  %v1219 = vld [vmem:[%s1216 + $0x8] sm:$0xf]
  %v1220 = vld [vmem:[%s1216 + $0xc] sm:$0xf]
  %v1221 = vld [vmem:[%s1216 + $0x10] sm:$0xf]
  %v1222 = vld [vmem:[%s1216 + $0x14] sm:$0xf]
  %v1223 = vld [vmem:[%s1216 + $0x18] sm:$0xf]
  %v1224 = vld [vmem:[%s1216 + $0x1c] sm:$0xf]
  %v1225 = vld [vmem:[%s1216 + $0x20] sm:$0xf]
  %v1226 = vld [vmem:[%s1216 + $0x24] sm:$0xf]
  %v1227 = vld [vmem:[%s1216 + $0x28] sm:$0xf]
  %v1228 = vld [vmem:[%s1216 + $0x2c] sm:$0xf]
  %v1229 = vld [vmem:[%s1216 + $0x30] sm:$0xf]
  %v1230 = vld [vmem:[%s1216 + $0x34] sm:$0xf]
  %v1231 = vld [vmem:[%s1216 + $0x38] sm:$0xf]
  %v1232 = vld [vmem:[%s1216 + $0x3c] sm:$0xf]
  %v1233 = vld [vmem:[%s1216 + $0x40] sm:$0xf]
  %v1234 = vld [vmem:[%s1216 + $0x44] sm:$0xf]
  %v1235 = vld [vmem:[%s1216 + $0x48] sm:$0xf]
  %v1236 = vld [vmem:[%s1216 + $0x4c] sm:$0xf]
  %v1237 = vld [vmem:[%s1216 + $0x50] sm:$0xf]
  %v1238 = vld [vmem:[%s1216 + $0x54] sm:$0xf]
  %v1239 = vld [vmem:[%s1216 + $0x58] sm:$0xf]
  %v1240 = vld [vmem:[%s1216 + $0x5c] sm:$0xf]
  %v1241 = vld [vmem:[%s1216 + $0x60] sm:$0xf]
  %v1242 = vunpack.c.l.bf16 %v1217
  %v1243 = vunpack.c.l.bf16 %v1218
  %v1244 = vunpack.c.l.bf16 %v1219
  %v1245 = vunpack.c.l.bf16 %v1220
  %v1246 = vunpack.c.l.bf16 %v1221
  %v1247 = vunpack.c.l.bf16 %v1222
  %v1248 = vunpack.c.l.bf16 %v1223
  %v1249 = vunpack.c.l.bf16 %v1224
  %v1250 = vunpack.c.l.bf16 %v1225
  %v1251 = vunpack.c.l.bf16 %v1226
  %v1252 = vunpack.c.l.bf16 %v1227
  %v1253 = vunpack.c.l.bf16 %v1228
  %v1254 = vunpack.c.l.bf16 %v1229
  %v1255 = vunpack.c.l.bf16 %v1230
  %v1256 = vunpack.c.l.bf16 %v1231
  %v1257 = vunpack.c.l.bf16 %v1232
  %v1258 = vunpack.c.l.bf16 %v1233
  %v1259 = vunpack.c.l.bf16 %v1234
  %v1260 = vunpack.c.l.bf16 %v1235
  %v1261 = vunpack.c.l.bf16 %v1236
  %v1262 = vunpack.c.l.bf16 %v1237
  %v1263 = vunpack.c.l.bf16 %v1238
  %v1264 = vunpack.c.l.bf16 %v1239
  %v1265 = vunpack.c.l.bf16 %v1240
  %v1266 = vunpack.c.l.bf16 %v1241
  %v1267 = vmul.f32 %v1191, %v1242
  %v1268 = vmul.f32 %v1192, %v1243
  %v1269 = vmul.f32 %v1193, %v1244
  %v1270 = vmul.f32 %v1194, %v1245
  %v1271 = vmul.f32 %v1195, %v1246
  %v1272 = vmul.f32 %v1196, %v1247
  %v1273 = vmul.f32 %v1197, %v1248
  %v1274 = vmul.f32 %v1198, %v1249
  %v1275 = vmul.f32 %v1199, %v1250
  %v1276 = vmul.f32 %v1200, %v1251
  %v1277 = vmul.f32 %v1201, %v1252
  %v1278 = vmul.f32 %v1202, %v1253
  %v1279 = vmul.f32 %v1203, %v1254
  %v1280 = vmul.f32 %v1204, %v1255
  %v1281 = vmul.f32 %v1205, %v1256
  %v1282 = vmul.f32 %v1206, %v1257
  %v1283 = vmul.f32 %v1207, %v1258
  %v1284 = vmul.f32 %v1208, %v1259
  %v1285 = vmul.f32 %v1209, %v1260
  %v1286 = vmul.f32 %v1210, %v1261
  %v1287 = vmul.f32 %v1211, %v1262
  %v1288 = vmul.f32 %v1212, %v1263
  %v1289 = vmul.f32 %v1213, %v1264
  %v1290 = vmul.f32 %v1214, %v1265
  %v1291 = vmul.f32 %v1215, %v1266
  %v1292 = vld [vmem:[%s1 + $0x50] sm:$0xf]
  %v1293 = vld [vmem:[%s1 + $0x54] sm:$0xf]
  %v1294 = vld [vmem:[%s1 + $0x58] sm:$0xf]
  %v1295 = vld [vmem:[%s1 + $0x5c] sm:$0xf]
  %v1296 = vpack.c.bf16 %v1268, %v1267
  %v1297 = vpack.c.bf16 %v1270, %v1269
  %v1298 = vpack.c.bf16 %v1272, %v1271
  %v1299 = vpack.c.bf16 %v1274, %v1273
  %v1300 = vpack.c.bf16 %v1276, %v1275
  %v1301 = vpack.c.bf16 %v1278, %v1277
  %v1302 = vpack.c.bf16 %v1280, %v1279
  %v1303 = vpack.c.bf16 %v1282, %v1281
  %v1304 = vpack.c.bf16 %v1284, %v1283
  %v1305 = vpack.c.bf16 %v1286, %v1285
  %v1306 = vpack.c.bf16 %v1288, %v1287
  %v1307 = vpack.c.bf16 %v1290, %v1289
  %v1308 = vpack.c.bf16 %v1291, %v1291
  %v1313 = vunpack.c.l.b16 %v1292
  %v1314 = vunpack.c.l.b16 %v1293
  %v1315 = vunpack.c.l.b16 %v1294
  %v1316 = vunpack.c.l.b16 %v1295
  %v1317 = vpack.c.b16 %v1314, %v1313
  %v1318 = vpack.c.b16 %v1316, %v1315
  %v1322 = vsel %vm816, %v1296, 0
  %v1325 = vsel %vm816, %v1297, 0
  %v1328 = vsel %vm816, %v1298, 0
  %v1331 = vsel %vm816, %v1299, 0
  %v1334 = vsel %vm816, %v1300, 0
  %v1337 = vsel %vm816, %v1301, 0
  %v1340 = vsel %vm816, %v1302, 0
  %v1343 = vsel %vm816, %v1303, 0
  %v1346 = vsel %vm816, %v1304, 0
  %v1349 = vsel %vm816, %v1305, 0
  %v1352 = vsel %vm816, %v1306, 0
  %v1355 = vsel %vm816, %v1307, 0
  %v1358 = vsel %vm816, %v1308, 0
  %1360 = vmatprep.subr.bf16.mxu0 0
  %1361 = vmatpush1.bf16.msra.mxu0 0
  %1362 = vmatprep.subr.bf16.mxu0 0
  %1363 = vmatpush1.bf16.msra.mxu0 0
  %1364 = vmatprep.subr.bf16.mxu0 0
  %1365 = vmatpush1.bf16.msra.mxu0 0
  %1366 = vmatprep.subr.bf16.mxu0 0
  %1367 = vmatpush1.bf16.msra.mxu0 0
  %1368 = vmatprep.subr.bf16.mxu0 0
  %1369 = vmatpush1.bf16.msra.mxu0 0
  %1370 = vmatprep.subr.bf16.mxu0 0
  %1371 = vmatpush1.bf16.msra.mxu0 0
  %1372 = vmatprep.subr.bf16.mxu0 0
  %1373 = vmatpush1.bf16.msra.mxu0 %v1318
  %1374 = vmatprep.subr.bf16.mxu0 0
  %1375 = vmatpush1.bf16.msra.mxu0 %v1317
  %1376 = vmatprep.subr.bf16.mxu0 0
  %1377 = vmatpush2.bf16.msra.mxu0 0
  %1378 = vmatprep.subr.bf16.mxu0 0
  %1379 = vmatpush2.bf16.msra.mxu0 0
  %1380 = vmatprep.subr.bf16.mxu0 0
  %1381 = vmatpush2.bf16.msra.mxu0 0
  %1382 = vmatprep.subr.bf16.mxu0 0
  %1383 = vmatpush2.bf16.msra.mxu0 0
  %1384 = vmatprep.subr.bf16.mxu0 0
  %1385 = vmatpush2.bf16.msra.mxu0 0
  %1386 = vmatprep.subr.bf16.mxu0 0
  %1387 = vmatpush2.bf16.msra.mxu0 0
  %1388 = vmatprep.subr.bf16.mxu0 0
  %1389 = vmatpush2.bf16.msra.mxu0 0
  %1390 = vmatprep.subr.bf16.mxu0 0
  %1391 = vmatpush2.bf16.msra.mxu0 0
  %1392 = vmatprep.mubr.bf16.mxu0 0
  %1393 = vmatmul.mubr.bf16.gmra.mxu0 %v1322
  %v1394 = vpop.f32.mrf.mxu0
  %v1395 = vadd.f32 0.0, %v1394
  %v1396 = vpop.f32.mrf.mxu0
  %v1397 = vpop.f32.mrf.mxu0
  %v1398 = vadd.f32 0.0, %v1397
  %v1399 = vpop.f32.mrf.mxu0
  %1400 = vmatprep.mubr.bf16.mxu0 0
  %1401 = vmatmul.mubr.bf16.gmra.mxu0 %v1325
  %v1402 = vpop.f32.mrf.mxu0
  %v1403 = vadd.f32 0.0, %v1402
  %v1404 = vpop.f32.mrf.mxu0
  %v1405 = vpop.f32.mrf.mxu0
  %v1406 = vadd.f32 0.0, %v1405
  %v1407 = vpop.f32.mrf.mxu0
  %1408 = vmatprep.mubr.bf16.mxu0 0
  %1409 = vmatmul.mubr.bf16.gmra.mxu0 %v1328
  %v1410 = vpop.f32.mrf.mxu0
  %v1411 = vadd.f32 0.0, %v1410
  %v1412 = vpop.f32.mrf.mxu0
  %v1413 = vpop.f32.mrf.mxu0
  %v1414 = vadd.f32 0.0, %v1413
  %v1415 = vpop.f32.mrf.mxu0
  %1416 = vmatprep.mubr.bf16.mxu0 0
  %1417 = vmatmul.mubr.bf16.gmra.mxu0 %v1331
  %v1418 = vpop.f32.mrf.mxu0
  %v1419 = vadd.f32 0.0, %v1418
  %v1420 = vpop.f32.mrf.mxu0
  %v1421 = vpop.f32.mrf.mxu0
  %v1422 = vadd.f32 0.0, %v1421
  %v1423 = vpop.f32.mrf.mxu0
  %1424 = vmatprep.mubr.bf16.mxu0 0
  %1425 = vmatmul.mubr.bf16.gmra.mxu0 %v1334
  %v1426 = vpop.f32.mrf.mxu0
  %v1427 = vadd.f32 0.0, %v1426
  %v1428 = vpop.f32.mrf.mxu0
  %v1429 = vpop.f32.mrf.mxu0
  %v1430 = vadd.f32 0.0, %v1429
  %v1431 = vpop.f32.mrf.mxu0
  %1432 = vmatprep.mubr.bf16.mxu0 0
  %1433 = vmatmul.mubr.bf16.gmra.mxu0 %v1337
  %v1434 = vpop.f32.mrf.mxu0
  %v1435 = vadd.f32 0.0, %v1434
  %v1436 = vpop.f32.mrf.mxu0
  %v1437 = vpop.f32.mrf.mxu0
  %v1438 = vadd.f32 0.0, %v1437
  %v1439 = vpop.f32.mrf.mxu0
  %1440 = vmatprep.mubr.bf16.mxu0 0
  %1441 = vmatmul.mubr.bf16.gmra.mxu0 %v1340
  %v1442 = vpop.f32.mrf.mxu0
  %v1443 = vadd.f32 0.0, %v1442
  %v1444 = vpop.f32.mrf.mxu0
  %v1445 = vpop.f32.mrf.mxu0
  %v1446 = vadd.f32 0.0, %v1445
  %v1447 = vpop.f32.mrf.mxu0
  %1448 = vmatprep.mubr.bf16.mxu0 0
  %1449 = vmatmul.mubr.bf16.gmra.mxu0 %v1343
  %v1450 = vpop.f32.mrf.mxu0
  %v1451 = vadd.f32 0.0, %v1450
  %v1452 = vpop.f32.mrf.mxu0
  %v1453 = vpop.f32.mrf.mxu0
  %v1454 = vadd.f32 0.0, %v1453
  %v1455 = vpop.f32.mrf.mxu0
  %1456 = vmatprep.mubr.bf16.mxu0 0
  %1457 = vmatmul.mubr.bf16.gmra.mxu0 %v1346
  %v1458 = vpop.f32.mrf.mxu0
  %v1459 = vadd.f32 0.0, %v1458
  %v1460 = vpop.f32.mrf.mxu0
  %v1461 = vpop.f32.mrf.mxu0
  %v1462 = vadd.f32 0.0, %v1461
  %v1463 = vpop.f32.mrf.mxu0
  %1464 = vmatprep.mubr.bf16.mxu0 0
  %1465 = vmatmul.mubr.bf16.gmra.mxu0 %v1349
  %v1466 = vpop.f32.mrf.mxu0
  %v1467 = vadd.f32 0.0, %v1466
  %v1468 = vpop.f32.mrf.mxu0
  %v1469 = vpop.f32.mrf.mxu0
  %v1470 = vadd.f32 0.0, %v1469
  %v1471 = vpop.f32.mrf.mxu0
  %1472 = vmatprep.mubr.bf16.mxu0 0
  %1473 = vmatmul.mubr.bf16.gmra.mxu0 %v1352
  %v1474 = vpop.f32.mrf.mxu0
  %v1475 = vadd.f32 0.0, %v1474
  %v1476 = vpop.f32.mrf.mxu0
  %v1477 = vpop.f32.mrf.mxu0
  %v1478 = vadd.f32 0.0, %v1477
  %v1479 = vpop.f32.mrf.mxu0
  %1480 = vmatprep.mubr.bf16.mxu0 0
  %1481 = vmatmul.mubr.bf16.gmra.mxu0 %v1355
  %v1482 = vpop.f32.mrf.mxu0
  %v1483 = vadd.f32 0.0, %v1482
  %v1484 = vpop.f32.mrf.mxu0
  %v1485 = vpop.f32.mrf.mxu0
  %v1486 = vadd.f32 0.0, %v1485
  %v1487 = vpop.f32.mrf.mxu0
  %1488 = vmatprep.mubr.bf16.mxu0 0
  %1489 = vmatmul.mubr.bf16.gmra.mxu0 %v1358
  %v1490 = vpop.f32.mrf.mxu0
  %v1491 = vadd.f32 0.0, %v1490
  %v1492 = vpop.f32.mrf.mxu0
  %v1493 = vpop.f32.mrf.mxu0
  %v1494 = vpop.f32.mrf.mxu0
  %1495 = vdwg.mxu0
  %v1496 = vld [vmem:[%s1 + $0x60] sm:$0xf]
  %v1497 = vld [vmem:[%s1 + $0x64] sm:$0xf]
  %v1498 = vld [vmem:[%s1 + $0x68] sm:$0xf]
  %v1499 = vld [vmem:[%s1 + $0x6c] sm:$0xf]
  %v1500 = vpack.c.bf16 %v1398, %v1395
  %v1501 = vpack.c.bf16 %v1406, %v1403
  %v1502 = vpack.c.bf16 %v1414, %v1411
  %v1503 = vpack.c.bf16 %v1422, %v1419
  %v1504 = vpack.c.bf16 %v1430, %v1427
  %v1505 = vpack.c.bf16 %v1438, %v1435
  %v1506 = vpack.c.bf16 %v1446, %v1443
  %v1507 = vpack.c.bf16 %v1454, %v1451
  %v1508 = vpack.c.bf16 %v1462, %v1459
  %v1509 = vpack.c.bf16 %v1470, %v1467
  %v1510 = vpack.c.bf16 %v1478, %v1475
  %v1511 = vpack.c.bf16 %v1486, %v1483
  %v1512 = vpack.c.bf16 %v1491, %v1491
  %v1517 = vunpack.c.l.b16 %v1496
  %v1518 = vunpack.c.l.b16 %v1497
  %v1519 = vunpack.c.l.b16 %v1498
  %v1520 = vunpack.c.l.b16 %v1499
  %v1521 = vpack.c.b16 %v1518, %v1517
  %v1522 = vpack.c.b16 %v1520, %v1519
  %v1526 = vsel %vm816, %v1500, 0
  %v1529 = vsel %vm816, %v1501, 0
  %v1532 = vsel %vm816, %v1502, 0
  %v1535 = vsel %vm816, %v1503, 0
  %v1538 = vsel %vm816, %v1504, 0
  %v1541 = vsel %vm816, %v1505, 0
  %v1544 = vsel %vm816, %v1506, 0
  %v1547 = vsel %vm816, %v1507, 0
  %v1550 = vsel %vm816, %v1508, 0
  %v1553 = vsel %vm816, %v1509, 0
  %v1556 = vsel %vm816, %v1510, 0
  %v1559 = vsel %vm816, %v1511, 0
  %v1562 = vsel %vm816, %v1512, 0
  %1564 = vmatprep.subr.bf16.mxu0 0
  %1565 = vmatpush1.bf16.msra.mxu0 0
  %1566 = vmatprep.subr.bf16.mxu0 0
  %1567 = vmatpush1.bf16.msra.mxu0 0
  %1568 = vmatprep.subr.bf16.mxu0 0
  %1569 = vmatpush1.bf16.msra.mxu0 0
  %1570 = vmatprep.subr.bf16.mxu0 0
  %1571 = vmatpush1.bf16.msra.mxu0 0
  %1572 = vmatprep.subr.bf16.mxu0 0
  %1573 = vmatpush1.bf16.msra.mxu0 0
  %1574 = vmatprep.subr.bf16.mxu0 0
  %1575 = vmatpush1.bf16.msra.mxu0 0
  %1576 = vmatprep.subr.bf16.mxu0 0
  %1577 = vmatpush1.bf16.msra.mxu0 %v1522
  %1578 = vmatprep.subr.bf16.mxu0 0
  %1579 = vmatpush1.bf16.msra.mxu0 %v1521
  %1580 = vmatprep.subr.bf16.mxu0 0
  %1581 = vmatpush2.bf16.msra.mxu0 0
  %1582 = vmatprep.subr.bf16.mxu0 0
  %1583 = vmatpush2.bf16.msra.mxu0 0
  %1584 = vmatprep.subr.bf16.mxu0 0
  %1585 = vmatpush2.bf16.msra.mxu0 0
  %1586 = vmatprep.subr.bf16.mxu0 0
  %1587 = vmatpush2.bf16.msra.mxu0 0
  %1588 = vmatprep.subr.bf16.mxu0 0
  %1589 = vmatpush2.bf16.msra.mxu0 0
  %1590 = vmatprep.subr.bf16.mxu0 0
  %1591 = vmatpush2.bf16.msra.mxu0 0
  %1592 = vmatprep.subr.bf16.mxu0 0
  %1593 = vmatpush2.bf16.msra.mxu0 0
  %1594 = vmatprep.subr.bf16.mxu0 0
  %1595 = vmatpush2.bf16.msra.mxu0 0
  %1596 = vmatprep.mubr.bf16.mxu0 0
  %1597 = vmatmul.mubr.bf16.gmra.mxu0 %v1526
  %v1598 = vpop.f32.mrf.mxu0
  %v1599 = vadd.f32 0.0, %v1598
  %v1600 = vpop.f32.mrf.mxu0
  %v1601 = vpop.f32.mrf.mxu0
  %v1602 = vadd.f32 0.0, %v1601
  %v1603 = vpop.f32.mrf.mxu0
  %1604 = vmatprep.mubr.bf16.mxu0 0
  %1605 = vmatmul.mubr.bf16.gmra.mxu0 %v1529
  %v1606 = vpop.f32.mrf.mxu0
  %v1607 = vadd.f32 0.0, %v1606
  %v1608 = vpop.f32.mrf.mxu0
  %v1609 = vpop.f32.mrf.mxu0
  %v1610 = vadd.f32 0.0, %v1609
  %v1611 = vpop.f32.mrf.mxu0
  %1612 = vmatprep.mubr.bf16.mxu0 0
  %1613 = vmatmul.mubr.bf16.gmra.mxu0 %v1532
  %v1614 = vpop.f32.mrf.mxu0
  %v1615 = vadd.f32 0.0, %v1614
  %v1616 = vpop.f32.mrf.mxu0
  %v1617 = vpop.f32.mrf.mxu0
  %v1618 = vadd.f32 0.0, %v1617
  %v1619 = vpop.f32.mrf.mxu0
  %1620 = vmatprep.mubr.bf16.mxu0 0
  %1621 = vmatmul.mubr.bf16.gmra.mxu0 %v1535
  %v1622 = vpop.f32.mrf.mxu0
  %v1623 = vadd.f32 0.0, %v1622
  %v1624 = vpop.f32.mrf.mxu0
  %v1625 = vpop.f32.mrf.mxu0
  %v1626 = vadd.f32 0.0, %v1625
  %v1627 = vpop.f32.mrf.mxu0
  %1628 = vmatprep.mubr.bf16.mxu0 0
  %1629 = vmatmul.mubr.bf16.gmra.mxu0 %v1538
  %v1630 = vpop.f32.mrf.mxu0
  %v1631 = vadd.f32 0.0, %v1630
  %v1632 = vpop.f32.mrf.mxu0
  %v1633 = vpop.f32.mrf.mxu0
  %v1634 = vadd.f32 0.0, %v1633
  %v1635 = vpop.f32.mrf.mxu0
  %1636 = vmatprep.mubr.bf16.mxu0 0
  %1637 = vmatmul.mubr.bf16.gmra.mxu0 %v1541
  %v1638 = vpop.f32.mrf.mxu0
  %v1639 = vadd.f32 0.0, %v1638
  %v1640 = vpop.f32.mrf.mxu0
  %v1641 = vpop.f32.mrf.mxu0
  %v1642 = vadd.f32 0.0, %v1641
  %v1643 = vpop.f32.mrf.mxu0
  %1644 = vmatprep.mubr.bf16.mxu0 0
  %1645 = vmatmul.mubr.bf16.gmra.mxu0 %v1544
  %v1646 = vpop.f32.mrf.mxu0
  %v1647 = vadd.f32 0.0, %v1646
  %v1648 = vpop.f32.mrf.mxu0
  %v1649 = vpop.f32.mrf.mxu0
  %v1650 = vadd.f32 0.0, %v1649
  %v1651 = vpop.f32.mrf.mxu0
  %1652 = vmatprep.mubr.bf16.mxu0 0
  %1653 = vmatmul.mubr.bf16.gmra.mxu0 %v1547
  %v1654 = vpop.f32.mrf.mxu0
  %v1655 = vadd.f32 0.0, %v1654
  %v1656 = vpop.f32.mrf.mxu0
  %v1657 = vpop.f32.mrf.mxu0
  %v1658 = vadd.f32 0.0, %v1657
  %v1659 = vpop.f32.mrf.mxu0
  %1660 = vmatprep.mubr.bf16.mxu0 0
  %1661 = vmatmul.mubr.bf16.gmra.mxu0 %v1550
  %v1662 = vpop.f32.mrf.mxu0
  %v1663 = vadd.f32 0.0, %v1662
  %v1664 = vpop.f32.mrf.mxu0
  %v1665 = vpop.f32.mrf.mxu0
  %v1666 = vadd.f32 0.0, %v1665
  %v1667 = vpop.f32.mrf.mxu0
  %1668 = vmatprep.mubr.bf16.mxu0 0
  %1669 = vmatmul.mubr.bf16.gmra.mxu0 %v1553
  %v1670 = vpop.f32.mrf.mxu0
  %v1671 = vadd.f32 0.0, %v1670
  %v1672 = vpop.f32.mrf.mxu0
  %v1673 = vpop.f32.mrf.mxu0
  %v1674 = vadd.f32 0.0, %v1673
  %v1675 = vpop.f32.mrf.mxu0
  %1676 = vmatprep.mubr.bf16.mxu0 0
  %1677 = vmatmul.mubr.bf16.gmra.mxu0 %v1556
  %v1678 = vpop.f32.mrf.mxu0
  %v1679 = vadd.f32 0.0, %v1678
  %v1680 = vpop.f32.mrf.mxu0
  %v1681 = vpop.f32.mrf.mxu0
  %v1682 = vadd.f32 0.0, %v1681
  %v1683 = vpop.f32.mrf.mxu0
  %1684 = vmatprep.mubr.bf16.mxu0 0
  %1685 = vmatmul.mubr.bf16.gmra.mxu0 %v1559
  %v1686 = vpop.f32.mrf.mxu0
  %v1687 = vadd.f32 0.0, %v1686
  %v1688 = vpop.f32.mrf.mxu0
  %v1689 = vpop.f32.mrf.mxu0
  %v1690 = vadd.f32 0.0, %v1689
  %v1691 = vpop.f32.mrf.mxu0
  %1692 = vmatprep.mubr.bf16.mxu0 0
  %1693 = vmatmul.mubr.bf16.gmra.mxu0 %v1562
  %v1694 = vpop.f32.mrf.mxu0
  %v1695 = vadd.f32 0.0, %v1694
  %v1696 = vpop.f32.mrf.mxu0
  %v1697 = vpop.f32.mrf.mxu0
  %v1698 = vpop.f32.mrf.mxu0
  %1699 = vdwg.mxu0
  %v1700 = vadd.f32 %v1599, %v1602
  %v1701 = vadd.f32 %v1700, %v1607
  %v1702 = vadd.f32 %v1701, %v1610
  %v1703 = vadd.f32 %v1702, %v1615
  %v1704 = vadd.f32 %v1703, %v1618
  %v1705 = vadd.f32 %v1704, %v1623
  %v1706 = vadd.f32 %v1705, %v1626
  %v1707 = vadd.f32 %v1706, %v1631
  %v1708 = vadd.f32 %v1707, %v1634
  %v1709 = vadd.f32 %v1708, %v1639
  %v1710 = vadd.f32 %v1709, %v1642
  %v1711 = vadd.f32 %v1710, %v1647
  %v1712 = vadd.f32 %v1711, %v1650
  %v1713 = vadd.f32 %v1712, %v1655
  %v1714 = vadd.f32 %v1713, %v1658
  %v1715 = vadd.f32 %v1714, %v1663
  %v1716 = vadd.f32 %v1715, %v1666
  %v1717 = vadd.f32 %v1716, %v1671
  %v1718 = vadd.f32 %v1717, %v1674
  %v1719 = vadd.f32 %v1718, %v1679
  %v1720 = vadd.f32 %v1719, %v1682
  %v1721 = vadd.f32 %v1720, %v1687
  %v1722 = vadd.f32 %v1721, %v1690
  %v1723 = vadd.f32 %v1722, %v1695
  %v1724 = vrot.slane %v1723, 4
  %v1725 = vadd.f32 %v1723, %v1724
  %v1726 = vrot.slane %v1725, 2
  %v1727 = vadd.f32 %v1725, %v1726
  %v1728 = vrot.slane %v1727, 1
  %v1729 = vadd.f32 %v1727, %v1728
  %v1730 = vmul.f32 %v1729, %v297
  %v1731 = vsub.f32 %v1599, %v1730
  %v1732 = vsub.f32 %v1602, %v1730
  %v1733 = vsub.f32 %v1607, %v1730
  %v1734 = vsub.f32 %v1610, %v1730
  %v1735 = vsub.f32 %v1615, %v1730
  %v1736 = vsub.f32 %v1618, %v1730
  %v1737 = vsub.f32 %v1623, %v1730
  %v1738 = vsub.f32 %v1626, %v1730
  %v1739 = vsub.f32 %v1631, %v1730
  %v1740 = vsub.f32 %v1634, %v1730
  %v1741 = vsub.f32 %v1639, %v1730
  %v1742 = vsub.f32 %v1642, %v1730
  %v1743 = vsub.f32 %v1647, %v1730
  %v1744 = vsub.f32 %v1650, %v1730
  %v1745 = vsub.f32 %v1655, %v1730
  %v1746 = vsub.f32 %v1658, %v1730
  %v1747 = vsub.f32 %v1663, %v1730
  %v1748 = vsub.f32 %v1666, %v1730
  %v1749 = vsub.f32 %v1671, %v1730
  %v1750 = vsub.f32 %v1674, %v1730
  %v1751 = vsub.f32 %v1679, %v1730
  %v1752 = vsub.f32 %v1682, %v1730
  %v1753 = vsub.f32 %v1687, %v1730
  %v1754 = vsub.f32 %v1690, %v1730
  %v1755 = vsub.f32 %v1695, %v1730
  %v1756 = vmul.f32 %v1731, %v1731
  %v1757 = vmul.f32 %v1732, %v1732
  %v1758 = vmul.f32 %v1733, %v1733
  %v1759 = vmul.f32 %v1734, %v1734
  %v1760 = vmul.f32 %v1735, %v1735
  %v1761 = vmul.f32 %v1736, %v1736
  %v1762 = vmul.f32 %v1737, %v1737
  %v1763 = vmul.f32 %v1738, %v1738
  %v1764 = vmul.f32 %v1739, %v1739
  %v1765 = vmul.f32 %v1740, %v1740
  %v1766 = vmul.f32 %v1741, %v1741
  %v1767 = vmul.f32 %v1742, %v1742
  %v1768 = vmul.f32 %v1743, %v1743
  %v1769 = vmul.f32 %v1744, %v1744
  %v1770 = vmul.f32 %v1745, %v1745
  %v1771 = vmul.f32 %v1746, %v1746
  %v1772 = vmul.f32 %v1747, %v1747
  %v1773 = vmul.f32 %v1748, %v1748
  %v1774 = vmul.f32 %v1749, %v1749
  %v1775 = vmul.f32 %v1750, %v1750
  %v1776 = vmul.f32 %v1751, %v1751
  %v1777 = vmul.f32 %v1752, %v1752
  %v1778 = vmul.f32 %v1753, %v1753
  %v1779 = vmul.f32 %v1754, %v1754
  %v1780 = vmul.f32 %v1755, %v1755
  %v1781 = vadd.f32 %v1756, %v1757
  %v1782 = vadd.f32 %v1781, %v1758
  %v1783 = vadd.f32 %v1782, %v1759
  %v1784 = vadd.f32 %v1783, %v1760
  %v1785 = vadd.f32 %v1784, %v1761
  %v1786 = vadd.f32 %v1785, %v1762
  %v1787 = vadd.f32 %v1786, %v1763
  %v1788 = vadd.f32 %v1787, %v1764
  %v1789 = vadd.f32 %v1788, %v1765
  %v1790 = vadd.f32 %v1789, %v1766
  %v1791 = vadd.f32 %v1790, %v1767
  %v1792 = vadd.f32 %v1791, %v1768
  %v1793 = vadd.f32 %v1792, %v1769
  %v1794 = vadd.f32 %v1793, %v1770
  %v1795 = vadd.f32 %v1794, %v1771
  %v1796 = vadd.f32 %v1795, %v1772
  %v1797 = vadd.f32 %v1796, %v1773
  %v1798 = vadd.f32 %v1797, %v1774
  %v1799 = vadd.f32 %v1798, %v1775
  %v1800 = vadd.f32 %v1799, %v1776
  %v1801 = vadd.f32 %v1800, %v1777
  %v1802 = vadd.f32 %v1801, %v1778
  %v1803 = vadd.f32 %v1802, %v1779
  %v1804 = vadd.f32 %v1803, %v1780
  %v1805 = vrot.slane %v1804, 4
  %v1806 = vadd.f32 %v1804, %v1805
  %v1807 = vrot.slane %v1806, 2
  %v1808 = vadd.f32 %v1806, %v1807
  %v1809 = vrot.slane %v1808, 1
  %v1810 = vadd.f32 %v1808, %v1809
  %v1811 = vmul.f32 %v1810, %v297
  %v1812 = vadd.f32 %v1811, 1e-05
  %v1813 = vrsqrt.pop %v1812
  %v1814 = vmul.f32 %v1731, %v1813
  %v1815 = vmul.f32 %v1732, %v1813
  %v1816 = vmul.f32 %v1733, %v1813
  %v1817 = vmul.f32 %v1734, %v1813
  %v1818 = vmul.f32 %v1735, %v1813
  %v1819 = vmul.f32 %v1736, %v1813
  %v1820 = vmul.f32 %v1737, %v1813
  %v1821 = vmul.f32 %v1738, %v1813
  %v1822 = vmul.f32 %v1739, %v1813
  %v1823 = vmul.f32 %v1740, %v1813
  %v1824 = vmul.f32 %v1741, %v1813
  %v1825 = vmul.f32 %v1742, %v1813
  %v1826 = vmul.f32 %v1743, %v1813
  %v1827 = vmul.f32 %v1744, %v1813
  %v1828 = vmul.f32 %v1745, %v1813
  %v1829 = vmul.f32 %v1746, %v1813
  %v1830 = vmul.f32 %v1747, %v1813
  %v1831 = vmul.f32 %v1748, %v1813
  %v1832 = vmul.f32 %v1749, %v1813
  %v1833 = vmul.f32 %v1750, %v1813
  %v1834 = vmul.f32 %v1751, %v1813
  %v1835 = vmul.f32 %v1752, %v1813
  %v1836 = vmul.f32 %v1753, %v1813
  %v1837 = vmul.f32 %v1754, %v1813
  %v1838 = vmul.f32 %v1755, %v1813
  %v1839 = vld [vmem:[%s2 + $0x2] sm:$0x1]
  %v1840 = vlaneseq
  %v1841 = vshrl.u32 %v1840, 7
  %v1842 = vsub.s32 0, %v1841
  %v1843 = vrot.slane %v1839, %v1842
  %v1844 = vmul.f32 %v1814, %v1843
  %v1845 = vmul.f32 %v1815, %v1843
  %v1846 = vmul.f32 %v1816, %v1843
  %v1847 = vmul.f32 %v1817, %v1843
  %v1848 = vmul.f32 %v1818, %v1843
  %v1849 = vmul.f32 %v1819, %v1843
  %v1850 = vmul.f32 %v1820, %v1843
  %v1851 = vmul.f32 %v1821, %v1843
  %v1852 = vmul.f32 %v1822, %v1843
  %v1853 = vmul.f32 %v1823, %v1843
  %v1854 = vmul.f32 %v1824, %v1843
  %v1855 = vmul.f32 %v1825, %v1843
  %v1856 = vmul.f32 %v1826, %v1843
  %v1857 = vmul.f32 %v1827, %v1843
  %v1858 = vmul.f32 %v1828, %v1843
  %v1859 = vmul.f32 %v1829, %v1843
  %v1860 = vmul.f32 %v1830, %v1843
  %v1861 = vmul.f32 %v1831, %v1843
  %v1862 = vmul.f32 %v1832, %v1843
  %v1863 = vmul.f32 %v1833, %v1843
  %v1864 = vmul.f32 %v1834, %v1843
  %v1865 = vmul.f32 %v1835, %v1843
  %v1866 = vmul.f32 %v1836, %v1843
  %v1867 = vmul.f32 %v1837, %v1843
  %v1868 = vmul.f32 %v1838, %v1843
  %v1869 = vld [vmem:[%s3 + $0x2] sm:$0x1]
  %v1870 = vlaneseq
  %v1871 = vshrl.u32 %v1870, 7
  %v1872 = vsub.s32 0, %v1871
  %v1873 = vrot.slane %v1869, %v1872
  %v1874 = vadd.f32 %v1844, %v1873
  %v1875 = vadd.f32 %v1845, %v1873
  %v1876 = vadd.f32 %v1846, %v1873
  %v1877 = vadd.f32 %v1847, %v1873
  %v1878 = vadd.f32 %v1848, %v1873
  %v1879 = vadd.f32 %v1849, %v1873
  %v1880 = vadd.f32 %v1850, %v1873
  %v1881 = vadd.f32 %v1851, %v1873
  %v1882 = vadd.f32 %v1852, %v1873
  %v1883 = vadd.f32 %v1853, %v1873
  %v1884 = vadd.f32 %v1854, %v1873
  %v1885 = vadd.f32 %v1855, %v1873
  %v1886 = vadd.f32 %v1856, %v1873
  %v1887 = vadd.f32 %v1857, %v1873
  %v1888 = vadd.f32 %v1858, %v1873
  %v1889 = vadd.f32 %v1859, %v1873
  %v1890 = vadd.f32 %v1860, %v1873
  %v1891 = vadd.f32 %v1861, %v1873
  %v1892 = vadd.f32 %v1862, %v1873
  %v1893 = vadd.f32 %v1863, %v1873
  %v1894 = vadd.f32 %v1864, %v1873
  %v1895 = vadd.f32 %v1865, %v1873
  %v1896 = vadd.f32 %v1866, %v1873
  %v1897 = vadd.f32 %v1867, %v1873
  %v1898 = vadd.f32 %v1868, %v1873
  %v1899 = vmax.f32 %v1874, 0.0
  %v1900 = vmax.f32 %v1875, 0.0
  %v1901 = vmax.f32 %v1876, 0.0
  %v1902 = vmax.f32 %v1877, 0.0
  %v1903 = vmax.f32 %v1878, 0.0
  %v1904 = vmax.f32 %v1879, 0.0
  %v1905 = vmax.f32 %v1880, 0.0
  %v1906 = vmax.f32 %v1881, 0.0
  %v1907 = vmax.f32 %v1882, 0.0
  %v1908 = vmax.f32 %v1883, 0.0
  %v1909 = vmax.f32 %v1884, 0.0
  %v1910 = vmax.f32 %v1885, 0.0
  %v1911 = vmax.f32 %v1886, 0.0
  %v1912 = vmax.f32 %v1887, 0.0
  %v1913 = vmax.f32 %v1888, 0.0
  %v1914 = vmax.f32 %v1889, 0.0
  %v1915 = vmax.f32 %v1890, 0.0
  %v1916 = vmax.f32 %v1891, 0.0
  %v1917 = vmax.f32 %v1892, 0.0
  %v1918 = vmax.f32 %v1893, 0.0
  %v1919 = vmax.f32 %v1894, 0.0
  %v1920 = vmax.f32 %v1895, 0.0
  %v1921 = vmax.f32 %v1896, 0.0
  %v1922 = vmax.f32 %v1897, 0.0
  %v1923 = vmax.f32 %v1898, 0.0
  %s1924 = scalar_lea.vmem %s4, 200
  %v1925 = vld [vmem:[%s1924] sm:$0xf]
  %v1926 = vld [vmem:[%s1924 + $0x4] sm:$0xf]
  %v1927 = vld [vmem:[%s1924 + $0x8] sm:$0xf]
  %v1928 = vld [vmem:[%s1924 + $0xc] sm:$0xf]
  %v1929 = vld [vmem:[%s1924 + $0x10] sm:$0xf]
  %v1930 = vld [vmem:[%s1924 + $0x14] sm:$0xf]
  %v1931 = vld [vmem:[%s1924 + $0x18] sm:$0xf]
  %v1932 = vld [vmem:[%s1924 + $0x1c] sm:$0xf]
  %v1933 = vld [vmem:[%s1924 + $0x20] sm:$0xf]
  %v1934 = vld [vmem:[%s1924 + $0x24] sm:$0xf]
  %v1935 = vld [vmem:[%s1924 + $0x28] sm:$0xf]
  %v1936 = vld [vmem:[%s1924 + $0x2c] sm:$0xf]
  %v1937 = vld [vmem:[%s1924 + $0x30] sm:$0xf]
  %v1938 = vld [vmem:[%s1924 + $0x34] sm:$0xf]
  %v1939 = vld [vmem:[%s1924 + $0x38] sm:$0xf]
  %v1940 = vld [vmem:[%s1924 + $0x3c] sm:$0xf]
  %v1941 = vld [vmem:[%s1924 + $0x40] sm:$0xf]
  %v1942 = vld [vmem:[%s1924 + $0x44] sm:$0xf]
  %v1943 = vld [vmem:[%s1924 + $0x48] sm:$0xf]
  %v1944 = vld [vmem:[%s1924 + $0x4c] sm:$0xf]
  %v1945 = vld [vmem:[%s1924 + $0x50] sm:$0xf]
  %v1946 = vld [vmem:[%s1924 + $0x54] sm:$0xf]
  %v1947 = vld [vmem:[%s1924 + $0x58] sm:$0xf]
  %v1948 = vld [vmem:[%s1924 + $0x5c] sm:$0xf]
  %v1949 = vld [vmem:[%s1924 + $0x60] sm:$0xf]
  %v1950 = vunpack.c.l.bf16 %v1925
  %v1951 = vunpack.c.l.bf16 %v1926
  %v1952 = vunpack.c.l.bf16 %v1927
  %v1953 = vunpack.c.l.bf16 %v1928
  %v1954 = vunpack.c.l.bf16 %v1929
  %v1955 = vunpack.c.l.bf16 %v1930
  %v1956 = vunpack.c.l.bf16 %v1931
  %v1957 = vunpack.c.l.bf16 %v1932
  %v1958 = vunpack.c.l.bf16 %v1933
  %v1959 = vunpack.c.l.bf16 %v1934
  %v1960 = vunpack.c.l.bf16 %v1935
  %v1961 = vunpack.c.l.bf16 %v1936
  %v1962 = vunpack.c.l.bf16 %v1937
  %v1963 = vunpack.c.l.bf16 %v1938
  %v1964 = vunpack.c.l.bf16 %v1939
  %v1965 = vunpack.c.l.bf16 %v1940
  %v1966 = vunpack.c.l.bf16 %v1941
  %v1967 = vunpack.c.l.bf16 %v1942
  %v1968 = vunpack.c.l.bf16 %v1943
  %v1969 = vunpack.c.l.bf16 %v1944
  %v1970 = vunpack.c.l.bf16 %v1945
  %v1971 = vunpack.c.l.bf16 %v1946
  %v1972 = vunpack.c.l.bf16 %v1947
  %v1973 = vunpack.c.l.bf16 %v1948
  %v1974 = vunpack.c.l.bf16 %v1949
  %v1975 = vmul.f32 %v1899, %v1950
  %v1976 = vmul.f32 %v1900, %v1951
  %v1977 = vmul.f32 %v1901, %v1952
  %v1978 = vmul.f32 %v1902, %v1953
  %v1979 = vmul.f32 %v1903, %v1954
  %v1980 = vmul.f32 %v1904, %v1955
  %v1981 = vmul.f32 %v1905, %v1956
  %v1982 = vmul.f32 %v1906, %v1957
  %v1983 = vmul.f32 %v1907, %v1958
  %v1984 = vmul.f32 %v1908, %v1959
  %v1985 = vmul.f32 %v1909, %v1960
  %v1986 = vmul.f32 %v1910, %v1961
  %v1987 = vmul.f32 %v1911, %v1962
  %v1988 = vmul.f32 %v1912, %v1963
  %v1989 = vmul.f32 %v1913, %v1964
  %v1990 = vmul.f32 %v1914, %v1965
  %v1991 = vmul.f32 %v1915, %v1966
  %v1992 = vmul.f32 %v1916, %v1967
  %v1993 = vmul.f32 %v1917, %v1968
  %v1994 = vmul.f32 %v1918, %v1969
  %v1995 = vmul.f32 %v1919, %v1970
  %v1996 = vmul.f32 %v1920, %v1971
  %v1997 = vmul.f32 %v1921, %v1972
  %v1998 = vmul.f32 %v1922, %v1973
  %v1999 = vmul.f32 %v1923, %v1974
  %v2000 = vld [vmem:[%s1 + $0x70] sm:$0xf]
  %v2001 = vld [vmem:[%s1 + $0x74] sm:$0xf]
  %v2002 = vld [vmem:[%s1 + $0x78] sm:$0xf]
  %v2003 = vld [vmem:[%s1 + $0x7c] sm:$0xf]
  %v2004 = vpack.c.bf16 %v1976, %v1975
  %v2005 = vpack.c.bf16 %v1978, %v1977
  %v2006 = vpack.c.bf16 %v1980, %v1979
  %v2007 = vpack.c.bf16 %v1982, %v1981
  %v2008 = vpack.c.bf16 %v1984, %v1983
  %v2009 = vpack.c.bf16 %v1986, %v1985
  %v2010 = vpack.c.bf16 %v1988, %v1987
  %v2011 = vpack.c.bf16 %v1990, %v1989
  %v2012 = vpack.c.bf16 %v1992, %v1991
  %v2013 = vpack.c.bf16 %v1994, %v1993
  %v2014 = vpack.c.bf16 %v1996, %v1995
  %v2015 = vpack.c.bf16 %v1998, %v1997
  %v2016 = vpack.c.bf16 %v1999, %v1999
  %v2021 = vunpack.c.l.b16 %v2000
  %v2022 = vunpack.c.l.b16 %v2001
  %v2023 = vunpack.c.l.b16 %v2002
  %v2024 = vunpack.c.l.b16 %v2003
  %v2025 = vpack.c.b16 %v2022, %v2021
  %v2026 = vpack.c.b16 %v2024, %v2023
  %v2030 = vsel %vm816, %v2004, 0
  %v2033 = vsel %vm816, %v2005, 0
  %v2036 = vsel %vm816, %v2006, 0
  %v2039 = vsel %vm816, %v2007, 0
  %v2042 = vsel %vm816, %v2008, 0
  %v2045 = vsel %vm816, %v2009, 0
  %v2048 = vsel %vm816, %v2010, 0
  %v2051 = vsel %vm816, %v2011, 0
  %v2054 = vsel %vm816, %v2012, 0
  %v2057 = vsel %vm816, %v2013, 0
  %v2060 = vsel %vm816, %v2014, 0
  %v2063 = vsel %vm816, %v2015, 0
  %v2066 = vsel %vm816, %v2016, 0
  %2068 = vmatprep.subr.bf16.mxu0 0
  %2069 = vmatpush1.bf16.msra.mxu0 0
  %2070 = vmatprep.subr.bf16.mxu0 0
  %2071 = vmatpush1.bf16.msra.mxu0 0
  %2072 = vmatprep.subr.bf16.mxu0 0
  %2073 = vmatpush1.bf16.msra.mxu0 0
  %2074 = vmatprep.subr.bf16.mxu0 0
  %2075 = vmatpush1.bf16.msra.mxu0 0
  %2076 = vmatprep.subr.bf16.mxu0 0
  %2077 = vmatpush1.bf16.msra.mxu0 0
  %2078 = vmatprep.subr.bf16.mxu0 0
  %2079 = vmatpush1.bf16.msra.mxu0 0
  %2080 = vmatprep.subr.bf16.mxu0 0
  %2081 = vmatpush1.bf16.msra.mxu0 %v2026
  %2082 = vmatprep.subr.bf16.mxu0 0
  %2083 = vmatpush1.bf16.msra.mxu0 %v2025
  %2084 = vmatprep.subr.bf16.mxu0 0
  %2085 = vmatpush2.bf16.msra.mxu0 0
  %2086 = vmatprep.subr.bf16.mxu0 0
  %2087 = vmatpush2.bf16.msra.mxu0 0
  %2088 = vmatprep.subr.bf16.mxu0 0
  %2089 = vmatpush2.bf16.msra.mxu0 0
  %2090 = vmatprep.subr.bf16.mxu0 0
  %2091 = vmatpush2.bf16.msra.mxu0 0
  %2092 = vmatprep.subr.bf16.mxu0 0
  %2093 = vmatpush2.bf16.msra.mxu0 0
  %2094 = vmatprep.subr.bf16.mxu0 0
  %2095 = vmatpush2.bf16.msra.mxu0 0
  %2096 = vmatprep.subr.bf16.mxu0 0
  %2097 = vmatpush2.bf16.msra.mxu0 0
  %2098 = vmatprep.subr.bf16.mxu0 0
  %2099 = vmatpush2.bf16.msra.mxu0 0
  %2100 = vmatprep.mubr.bf16.mxu0 0
  %2101 = vmatmul.mubr.bf16.gmra.mxu0 %v2030
  %v2102 = vpop.f32.mrf.mxu0
  %v2103 = vadd.f32 0.0, %v2102
  %v2104 = vpop.f32.mrf.mxu0
  %v2105 = vpop.f32.mrf.mxu0
  %v2106 = vadd.f32 0.0, %v2105
  %v2107 = vpop.f32.mrf.mxu0
  %2108 = vmatprep.mubr.bf16.mxu0 0
  %2109 = vmatmul.mubr.bf16.gmra.mxu0 %v2033
  %v2110 = vpop.f32.mrf.mxu0
  %v2111 = vadd.f32 0.0, %v2110
  %v2112 = vpop.f32.mrf.mxu0
  %v2113 = vpop.f32.mrf.mxu0
  %v2114 = vadd.f32 0.0, %v2113
  %v2115 = vpop.f32.mrf.mxu0
  %2116 = vmatprep.mubr.bf16.mxu0 0
  %2117 = vmatmul.mubr.bf16.gmra.mxu0 %v2036
  %v2118 = vpop.f32.mrf.mxu0
  %v2119 = vadd.f32 0.0, %v2118
  %v2120 = vpop.f32.mrf.mxu0
  %v2121 = vpop.f32.mrf.mxu0
  %v2122 = vadd.f32 0.0, %v2121
  %v2123 = vpop.f32.mrf.mxu0
  %2124 = vmatprep.mubr.bf16.mxu0 0
  %2125 = vmatmul.mubr.bf16.gmra.mxu0 %v2039
  %v2126 = vpop.f32.mrf.mxu0
  %v2127 = vadd.f32 0.0, %v2126
  %v2128 = vpop.f32.mrf.mxu0
  %v2129 = vpop.f32.mrf.mxu0
  %v2130 = vadd.f32 0.0, %v2129
  %v2131 = vpop.f32.mrf.mxu0
  %2132 = vmatprep.mubr.bf16.mxu0 0
  %2133 = vmatmul.mubr.bf16.gmra.mxu0 %v2042
  %v2134 = vpop.f32.mrf.mxu0
  %v2135 = vadd.f32 0.0, %v2134
  %v2136 = vpop.f32.mrf.mxu0
  %v2137 = vpop.f32.mrf.mxu0
  %v2138 = vadd.f32 0.0, %v2137
  %v2139 = vpop.f32.mrf.mxu0
  %2140 = vmatprep.mubr.bf16.mxu0 0
  %2141 = vmatmul.mubr.bf16.gmra.mxu0 %v2045
  %v2142 = vpop.f32.mrf.mxu0
  %v2143 = vadd.f32 0.0, %v2142
  %v2144 = vpop.f32.mrf.mxu0
  %v2145 = vpop.f32.mrf.mxu0
  %v2146 = vadd.f32 0.0, %v2145
  %v2147 = vpop.f32.mrf.mxu0
  %2148 = vmatprep.mubr.bf16.mxu0 0
  %2149 = vmatmul.mubr.bf16.gmra.mxu0 %v2048
  %v2150 = vpop.f32.mrf.mxu0
  %v2151 = vadd.f32 0.0, %v2150
  %v2152 = vpop.f32.mrf.mxu0
  %v2153 = vpop.f32.mrf.mxu0
  %v2154 = vadd.f32 0.0, %v2153
  %v2155 = vpop.f32.mrf.mxu0
  %2156 = vmatprep.mubr.bf16.mxu0 0
  %2157 = vmatmul.mubr.bf16.gmra.mxu0 %v2051
  %v2158 = vpop.f32.mrf.mxu0
  %v2159 = vadd.f32 0.0, %v2158
  %v2160 = vpop.f32.mrf.mxu0
  %v2161 = vpop.f32.mrf.mxu0
  %v2162 = vadd.f32 0.0, %v2161
  %v2163 = vpop.f32.mrf.mxu0
  %2164 = vmatprep.mubr.bf16.mxu0 0
  %2165 = vmatmul.mubr.bf16.gmra.mxu0 %v2054
  %v2166 = vpop.f32.mrf.mxu0
  %v2167 = vadd.f32 0.0, %v2166
  %v2168 = vpop.f32.mrf.mxu0
  %v2169 = vpop.f32.mrf.mxu0
  %v2170 = vadd.f32 0.0, %v2169
  %v2171 = vpop.f32.mrf.mxu0
  %2172 = vmatprep.mubr.bf16.mxu0 0
  %2173 = vmatmul.mubr.bf16.gmra.mxu0 %v2057
  %v2174 = vpop.f32.mrf.mxu0
  %v2175 = vadd.f32 0.0, %v2174
  %v2176 = vpop.f32.mrf.mxu0
  %v2177 = vpop.f32.mrf.mxu0
  %v2178 = vadd.f32 0.0, %v2177
  %v2179 = vpop.f32.mrf.mxu0
  %2180 = vmatprep.mubr.bf16.mxu0 0
  %2181 = vmatmul.mubr.bf16.gmra.mxu0 %v2060
  %v2182 = vpop.f32.mrf.mxu0
  %v2183 = vadd.f32 0.0, %v2182
  %v2184 = vpop.f32.mrf.mxu0
  %v2185 = vpop.f32.mrf.mxu0
  %v2186 = vadd.f32 0.0, %v2185
  %v2187 = vpop.f32.mrf.mxu0
  %2188 = vmatprep.mubr.bf16.mxu0 0
  %2189 = vmatmul.mubr.bf16.gmra.mxu0 %v2063
  %v2190 = vpop.f32.mrf.mxu0
  %v2191 = vadd.f32 0.0, %v2190
  %v2192 = vpop.f32.mrf.mxu0
  %v2193 = vpop.f32.mrf.mxu0
  %v2194 = vadd.f32 0.0, %v2193
  %v2195 = vpop.f32.mrf.mxu0
  %2196 = vmatprep.mubr.bf16.mxu0 0
  %2197 = vmatmul.mubr.bf16.gmra.mxu0 %v2066
  %v2198 = vpop.f32.mrf.mxu0
  %v2199 = vadd.f32 0.0, %v2198
  %v2200 = vpop.f32.mrf.mxu0
  %v2201 = vpop.f32.mrf.mxu0
  %v2202 = vpop.f32.mrf.mxu0
  %2203 = vdwg.mxu0
  %v2204 = vld [vmem:[%s1 + $0x80] sm:$0xf]
  %v2205 = vld [vmem:[%s1 + $0x84] sm:$0xf]
  %v2206 = vpack.c.bf16 %v2106, %v2103
  %v2207 = vpack.c.bf16 %v2114, %v2111
  %v2208 = vpack.c.bf16 %v2122, %v2119
  %v2209 = vpack.c.bf16 %v2130, %v2127
  %v2210 = vpack.c.bf16 %v2138, %v2135
  %v2211 = vpack.c.bf16 %v2146, %v2143
  %v2212 = vpack.c.bf16 %v2154, %v2151
  %v2213 = vpack.c.bf16 %v2162, %v2159
  %v2214 = vpack.c.bf16 %v2170, %v2167
  %v2215 = vpack.c.bf16 %v2178, %v2175
  %v2216 = vpack.c.bf16 %v2186, %v2183
  %v2217 = vpack.c.bf16 %v2194, %v2191
  %v2218 = vpack.c.bf16 %v2199, %v2199
  %v2221 = vunpack.c.l.b16 %v2204
  %v2222 = vunpack.c.l.b16 %v2205
  %v2223 = vpack.c.b16 %v2222, %v2221
  %vm2225 = vcmask 130048
  %v2227 = vsel %vm2225, %v2206, 0
  %v2230 = vsel %vm2225, %v2207, 0
  %v2233 = vsel %vm2225, %v2208, 0
  %v2236 = vsel %vm2225, %v2209, 0
  %v2239 = vsel %vm2225, %v2210, 0
  %v2242 = vsel %vm2225, %v2211, 0
  %v2245 = vsel %vm2225, %v2212, 0
  %v2248 = vsel %vm2225, %v2213, 0
  %v2251 = vsel %vm2225, %v2214, 0
  %v2254 = vsel %vm2225, %v2215, 0
  %v2257 = vsel %vm2225, %v2216, 0
  %v2260 = vsel %vm2225, %v2217, 0
  %v2263 = vsel %vm2225, %v2218, 0
  %2265 = vmatprep.subr.bf16.mxu0 0
  %2266 = vmatpush1.bf16.msra.mxu0 0
  %2267 = vmatprep.subr.bf16.mxu0 0
  %2268 = vmatpush1.bf16.msra.mxu0 0
  %2269 = vmatprep.subr.bf16.mxu0 0
  %2270 = vmatpush1.bf16.msra.mxu0 0
  %2271 = vmatprep.subr.bf16.mxu0 0
  %2272 = vmatpush1.bf16.msra.mxu0 0
  %2273 = vmatprep.subr.bf16.mxu0 0
  %2274 = vmatpush1.bf16.msra.mxu0 0
  %2275 = vmatprep.subr.bf16.mxu0 0
  %2276 = vmatpush1.bf16.msra.mxu0 0
  %2277 = vmatprep.subr.bf16.mxu0 0
  %2278 = vmatpush1.bf16.msra.mxu0 0
  %2279 = vmatprep.subr.bf16.mxu0 0
  %2280 = vmatpush1.bf16.msra.mxu0 %v2223
  %2281 = vmatprep.subr.bf16.mxu0 0
  %2282 = vmatpush2.bf16.msra.mxu0 0
  %2283 = vmatprep.subr.bf16.mxu0 0
  %2284 = vmatpush2.bf16.msra.mxu0 0
  %2285 = vmatprep.subr.bf16.mxu0 0
  %2286 = vmatpush2.bf16.msra.mxu0 0
  %2287 = vmatprep.subr.bf16.mxu0 0
  %2288 = vmatpush2.bf16.msra.mxu0 0
  %2289 = vmatprep.subr.bf16.mxu0 0
  %2290 = vmatpush2.bf16.msra.mxu0 0
  %2291 = vmatprep.subr.bf16.mxu0 0
  %2292 = vmatpush2.bf16.msra.mxu0 0
  %2293 = vmatprep.subr.bf16.mxu0 0
  %2294 = vmatpush2.bf16.msra.mxu0 0
  %2295 = vmatprep.subr.bf16.mxu0 0
  %2296 = vmatpush2.bf16.msra.mxu0 0
  %2297 = vmatprep.mubr.bf16.mxu0 0
  %2298 = vmatmul.mubr.bf16.gmra.mxu0 %v2227
  %v2299 = vpop.f32.mrf.mxu0
  %v2300 = vadd.f32 0.0, %v2299
  %v2301 = vpop.f32.mrf.mxu0
  %v2302 = vpop.f32.mrf.mxu0
  %v2303 = vadd.f32 0.0, %v2302
  %v2304 = vpop.f32.mrf.mxu0
  %2305 = vmatprep.mubr.bf16.mxu0 0
  %2306 = vmatmul.mubr.bf16.gmra.mxu0 %v2230
  %v2307 = vpop.f32.mrf.mxu0
  %v2308 = vadd.f32 0.0, %v2307
  %v2309 = vpop.f32.mrf.mxu0
  %v2310 = vpop.f32.mrf.mxu0
  %v2311 = vadd.f32 0.0, %v2310
  %v2312 = vpop.f32.mrf.mxu0
  %2313 = vmatprep.mubr.bf16.mxu0 0
  %2314 = vmatmul.mubr.bf16.gmra.mxu0 %v2233
  %v2315 = vpop.f32.mrf.mxu0
  %v2316 = vadd.f32 0.0, %v2315
  %v2317 = vpop.f32.mrf.mxu0
  %v2318 = vpop.f32.mrf.mxu0
  %v2319 = vadd.f32 0.0, %v2318
  %v2320 = vpop.f32.mrf.mxu0
  %2321 = vmatprep.mubr.bf16.mxu0 0
  %2322 = vmatmul.mubr.bf16.gmra.mxu0 %v2236
  %v2323 = vpop.f32.mrf.mxu0
  %v2324 = vadd.f32 0.0, %v2323
  %v2325 = vpop.f32.mrf.mxu0
  %v2326 = vpop.f32.mrf.mxu0
  %v2327 = vadd.f32 0.0, %v2326
  %v2328 = vpop.f32.mrf.mxu0
  %2329 = vmatprep.mubr.bf16.mxu0 0
  %2330 = vmatmul.mubr.bf16.gmra.mxu0 %v2239
  %v2331 = vpop.f32.mrf.mxu0
  %v2332 = vadd.f32 0.0, %v2331
  %v2333 = vpop.f32.mrf.mxu0
  %v2334 = vpop.f32.mrf.mxu0
  %v2335 = vadd.f32 0.0, %v2334
  %v2336 = vpop.f32.mrf.mxu0
  %2337 = vmatprep.mubr.bf16.mxu0 0
  %2338 = vmatmul.mubr.bf16.gmra.mxu0 %v2242
  %v2339 = vpop.f32.mrf.mxu0
  %v2340 = vadd.f32 0.0, %v2339
  %v2341 = vpop.f32.mrf.mxu0
  %v2342 = vpop.f32.mrf.mxu0
  %v2343 = vadd.f32 0.0, %v2342
  %v2344 = vpop.f32.mrf.mxu0
  %2345 = vmatprep.mubr.bf16.mxu0 0
  %2346 = vmatmul.mubr.bf16.gmra.mxu0 %v2245
  %v2347 = vpop.f32.mrf.mxu0
  %v2348 = vadd.f32 0.0, %v2347
  %v2349 = vpop.f32.mrf.mxu0
  %v2350 = vpop.f32.mrf.mxu0
  %v2351 = vadd.f32 0.0, %v2350
  %v2352 = vpop.f32.mrf.mxu0
  %2353 = vmatprep.mubr.bf16.mxu0 0
  %2354 = vmatmul.mubr.bf16.gmra.mxu0 %v2248
  %v2355 = vpop.f32.mrf.mxu0
  %v2356 = vadd.f32 0.0, %v2355
  %v2357 = vpop.f32.mrf.mxu0
  %v2358 = vpop.f32.mrf.mxu0
  %v2359 = vadd.f32 0.0, %v2358
  %v2360 = vpop.f32.mrf.mxu0
  %2361 = vmatprep.mubr.bf16.mxu0 0
  %2362 = vmatmul.mubr.bf16.gmra.mxu0 %v2251
  %v2363 = vpop.f32.mrf.mxu0
  %v2364 = vadd.f32 0.0, %v2363
  %v2365 = vpop.f32.mrf.mxu0
  %v2366 = vpop.f32.mrf.mxu0
  %v2367 = vadd.f32 0.0, %v2366
  %v2368 = vpop.f32.mrf.mxu0
  %2369 = vmatprep.mubr.bf16.mxu0 0
  %2370 = vmatmul.mubr.bf16.gmra.mxu0 %v2254
  %v2371 = vpop.f32.mrf.mxu0
  %v2372 = vadd.f32 0.0, %v2371
  %v2373 = vpop.f32.mrf.mxu0
  %v2374 = vpop.f32.mrf.mxu0
  %v2375 = vadd.f32 0.0, %v2374
  %v2376 = vpop.f32.mrf.mxu0
  %2377 = vmatprep.mubr.bf16.mxu0 0
  %2378 = vmatmul.mubr.bf16.gmra.mxu0 %v2257
  %v2379 = vpop.f32.mrf.mxu0
  %v2380 = vadd.f32 0.0, %v2379
  %v2381 = vpop.f32.mrf.mxu0
  %v2382 = vpop.f32.mrf.mxu0
  %v2383 = vadd.f32 0.0, %v2382
  %v2384 = vpop.f32.mrf.mxu0
  %2385 = vmatprep.mubr.bf16.mxu0 0
  %2386 = vmatmul.mubr.bf16.gmra.mxu0 %v2260
  %v2387 = vpop.f32.mrf.mxu0
  %v2388 = vadd.f32 0.0, %v2387
  %v2389 = vpop.f32.mrf.mxu0
  %v2390 = vpop.f32.mrf.mxu0
  %v2391 = vadd.f32 0.0, %v2390
  %v2392 = vpop.f32.mrf.mxu0
  %2393 = vmatprep.mubr.bf16.mxu0 0
  %2394 = vmatmul.mubr.bf16.gmra.mxu0 %v2263
  %v2395 = vpop.f32.mrf.mxu0
  %v2396 = vadd.f32 0.0, %v2395
  %v2397 = vpop.f32.mrf.mxu0
  %v2398 = vpop.f32.mrf.mxu0
  %v2399 = vpop.f32.mrf.mxu0
  %2400 = vdwg.mxu0
  %v2401 = vadd.f32 %v2300, %v2303
  %v2402 = vadd.f32 %v2401, %v2308
  %v2403 = vadd.f32 %v2402, %v2311
  %v2404 = vadd.f32 %v2403, %v2316
  %v2405 = vadd.f32 %v2404, %v2319
  %v2406 = vadd.f32 %v2405, %v2324
  %v2407 = vadd.f32 %v2406, %v2327
  %v2408 = vadd.f32 %v2407, %v2332
  %v2409 = vadd.f32 %v2408, %v2335
  %v2410 = vadd.f32 %v2409, %v2340
  %v2411 = vadd.f32 %v2410, %v2343
  %v2412 = vadd.f32 %v2411, %v2348
  %v2413 = vadd.f32 %v2412, %v2351
  %v2414 = vadd.f32 %v2413, %v2356
  %v2415 = vadd.f32 %v2414, %v2359
  %v2416 = vadd.f32 %v2415, %v2364
  %v2417 = vadd.f32 %v2416, %v2367
  %v2418 = vadd.f32 %v2417, %v2372
  %v2419 = vadd.f32 %v2418, %v2375
  %v2420 = vadd.f32 %v2419, %v2380
  %v2421 = vadd.f32 %v2420, %v2383
  %v2422 = vadd.f32 %v2421, %v2388
  %v2423 = vadd.f32 %v2422, %v2391
  %v2424 = vadd.f32 %v2423, %v2396
  %v2425 = vrot.slane %v2424, 4
  %v2426 = vadd.f32 %v2424, %v2425
  %v2427 = vrot.slane %v2426, 2
  %v2428 = vadd.f32 %v2426, %v2427
  %v2429 = vrot.slane %v2428, 1
  %v2430 = vadd.f32 %v2428, %v2429
  %v2431 = vmul.f32 %v2430, %v297
  %v2432 = vsub.f32 %v2300, %v2431
  %v2433 = vsub.f32 %v2303, %v2431
  %v2434 = vsub.f32 %v2308, %v2431
  %v2435 = vsub.f32 %v2311, %v2431
  %v2436 = vsub.f32 %v2316, %v2431
  %v2437 = vsub.f32 %v2319, %v2431
  %v2438 = vsub.f32 %v2324, %v2431
  %v2439 = vsub.f32 %v2327, %v2431
  %v2440 = vsub.f32 %v2332, %v2431
  %v2441 = vsub.f32 %v2335, %v2431
  %v2442 = vsub.f32 %v2340, %v2431
  %v2443 = vsub.f32 %v2343, %v2431
  %v2444 = vsub.f32 %v2348, %v2431
  %v2445 = vsub.f32 %v2351, %v2431
  %v2446 = vsub.f32 %v2356, %v2431
  %v2447 = vsub.f32 %v2359, %v2431
  %v2448 = vsub.f32 %v2364, %v2431
  %v2449 = vsub.f32 %v2367, %v2431
  %v2450 = vsub.f32 %v2372, %v2431
  %v2451 = vsub.f32 %v2375, %v2431
  %v2452 = vsub.f32 %v2380, %v2431
  %v2453 = vsub.f32 %v2383, %v2431
  %v2454 = vsub.f32 %v2388, %v2431
  %v2455 = vsub.f32 %v2391, %v2431
  %v2456 = vsub.f32 %v2396, %v2431
  %v2457 = vmul.f32 %v2432, %v2432
  %v2458 = vmul.f32 %v2433, %v2433
  %v2459 = vmul.f32 %v2434, %v2434
  %v2460 = vmul.f32 %v2435, %v2435
  %v2461 = vmul.f32 %v2436, %v2436
  %v2462 = vmul.f32 %v2437, %v2437
  %v2463 = vmul.f32 %v2438, %v2438
  %v2464 = vmul.f32 %v2439, %v2439
  %v2465 = vmul.f32 %v2440, %v2440
  %v2466 = vmul.f32 %v2441, %v2441
  %v2467 = vmul.f32 %v2442, %v2442
  %v2468 = vmul.f32 %v2443, %v2443
  %v2469 = vmul.f32 %v2444, %v2444
  %v2470 = vmul.f32 %v2445, %v2445
  %v2471 = vmul.f32 %v2446, %v2446
  %v2472 = vmul.f32 %v2447, %v2447
  %v2473 = vmul.f32 %v2448, %v2448
  %v2474 = vmul.f32 %v2449, %v2449
  %v2475 = vmul.f32 %v2450, %v2450
  %v2476 = vmul.f32 %v2451, %v2451
  %v2477 = vmul.f32 %v2452, %v2452
  %v2478 = vmul.f32 %v2453, %v2453
  %v2479 = vmul.f32 %v2454, %v2454
  %v2480 = vmul.f32 %v2455, %v2455
  %v2481 = vmul.f32 %v2456, %v2456
  %v2482 = vadd.f32 %v2457, %v2458
  %v2483 = vadd.f32 %v2482, %v2459
  %v2484 = vadd.f32 %v2483, %v2460
  %v2485 = vadd.f32 %v2484, %v2461
  %v2486 = vadd.f32 %v2485, %v2462
  %v2487 = vadd.f32 %v2486, %v2463
  %v2488 = vadd.f32 %v2487, %v2464
  %v2489 = vadd.f32 %v2488, %v2465
  %v2490 = vadd.f32 %v2489, %v2466
  %v2491 = vadd.f32 %v2490, %v2467
  %v2492 = vadd.f32 %v2491, %v2468
  %v2493 = vadd.f32 %v2492, %v2469
  %v2494 = vadd.f32 %v2493, %v2470
  %v2495 = vadd.f32 %v2494, %v2471
  %v2496 = vadd.f32 %v2495, %v2472
  %v2497 = vadd.f32 %v2496, %v2473
  %v2498 = vadd.f32 %v2497, %v2474
  %v2499 = vadd.f32 %v2498, %v2475
  %v2500 = vadd.f32 %v2499, %v2476
  %v2501 = vadd.f32 %v2500, %v2477
  %v2502 = vadd.f32 %v2501, %v2478
  %v2503 = vadd.f32 %v2502, %v2479
  %v2504 = vadd.f32 %v2503, %v2480
  %v2505 = vadd.f32 %v2504, %v2481
  %v2506 = vrot.slane %v2505, 4
  %v2507 = vadd.f32 %v2505, %v2506
  %v2508 = vrot.slane %v2507, 2
  %v2509 = vadd.f32 %v2507, %v2508
  %v2510 = vrot.slane %v2509, 1
  %v2511 = vadd.f32 %v2509, %v2510
  %v2512 = vmul.f32 %v2511, %v297
  %v2513 = vadd.f32 %v2512, 1e-05
  %v2514 = vrsqrt.pop %v2513
  %v2515 = vmul.f32 %v2432, %v2514
  %v2516 = vmul.f32 %v2433, %v2514
  %v2517 = vmul.f32 %v2434, %v2514
  %v2518 = vmul.f32 %v2435, %v2514
  %v2519 = vmul.f32 %v2436, %v2514
  %v2520 = vmul.f32 %v2437, %v2514
  %v2521 = vmul.f32 %v2438, %v2514
  %v2522 = vmul.f32 %v2439, %v2514
  %v2523 = vmul.f32 %v2440, %v2514
  %v2524 = vmul.f32 %v2441, %v2514
  %v2525 = vmul.f32 %v2442, %v2514
  %v2526 = vmul.f32 %v2443, %v2514
  %v2527 = vmul.f32 %v2444, %v2514
  %v2528 = vmul.f32 %v2445, %v2514
  %v2529 = vmul.f32 %v2446, %v2514
  %v2530 = vmul.f32 %v2447, %v2514
  %v2531 = vmul.f32 %v2448, %v2514
  %v2532 = vmul.f32 %v2449, %v2514
  %v2533 = vmul.f32 %v2450, %v2514
  %v2534 = vmul.f32 %v2451, %v2514
  %v2535 = vmul.f32 %v2452, %v2514
  %v2536 = vmul.f32 %v2453, %v2514
  %v2537 = vmul.f32 %v2454, %v2514
  %v2538 = vmul.f32 %v2455, %v2514
  %v2539 = vmul.f32 %v2456, %v2514
  %v2540 = vld [vmem:[%s2 + $0x3] sm:$0x1]
  %v2541 = vlaneseq
  %v2542 = vshrl.u32 %v2541, 7
  %v2543 = vsub.s32 0, %v2542
  %v2544 = vrot.slane %v2540, %v2543
  %v2545 = vmul.f32 %v2515, %v2544
  %v2546 = vmul.f32 %v2516, %v2544
  %v2547 = vmul.f32 %v2517, %v2544
  %v2548 = vmul.f32 %v2518, %v2544
  %v2549 = vmul.f32 %v2519, %v2544
  %v2550 = vmul.f32 %v2520, %v2544
  %v2551 = vmul.f32 %v2521, %v2544
  %v2552 = vmul.f32 %v2522, %v2544
  %v2553 = vmul.f32 %v2523, %v2544
  %v2554 = vmul.f32 %v2524, %v2544
  %v2555 = vmul.f32 %v2525, %v2544
  %v2556 = vmul.f32 %v2526, %v2544
  %v2557 = vmul.f32 %v2527, %v2544
  %v2558 = vmul.f32 %v2528, %v2544
  %v2559 = vmul.f32 %v2529, %v2544
  %v2560 = vmul.f32 %v2530, %v2544
  %v2561 = vmul.f32 %v2531, %v2544
  %v2562 = vmul.f32 %v2532, %v2544
  %v2563 = vmul.f32 %v2533, %v2544
  %v2564 = vmul.f32 %v2534, %v2544
  %v2565 = vmul.f32 %v2535, %v2544
  %v2566 = vmul.f32 %v2536, %v2544
  %v2567 = vmul.f32 %v2537, %v2544
  %v2568 = vmul.f32 %v2538, %v2544
  %v2569 = vmul.f32 %v2539, %v2544
  %v2570 = vld [vmem:[%s3 + $0x3] sm:$0x1]
  %v2571 = vlaneseq
  %v2572 = vshrl.u32 %v2571, 7
  %v2573 = vsub.s32 0, %v2572
  %v2574 = vrot.slane %v2570, %v2573
  %v2575 = vadd.f32 %v2545, %v2574
  %v2576 = vadd.f32 %v2546, %v2574
  %v2577 = vadd.f32 %v2547, %v2574
  %v2578 = vadd.f32 %v2548, %v2574
  %v2579 = vadd.f32 %v2549, %v2574
  %v2580 = vadd.f32 %v2550, %v2574
  %v2581 = vadd.f32 %v2551, %v2574
  %v2582 = vadd.f32 %v2552, %v2574
  %v2583 = vadd.f32 %v2553, %v2574
  %v2584 = vadd.f32 %v2554, %v2574
  %v2585 = vadd.f32 %v2555, %v2574
  %v2586 = vadd.f32 %v2556, %v2574
  %v2587 = vadd.f32 %v2557, %v2574
  %v2588 = vadd.f32 %v2558, %v2574
  %v2589 = vadd.f32 %v2559, %v2574
  %v2590 = vadd.f32 %v2560, %v2574
  %v2591 = vadd.f32 %v2561, %v2574
  %v2592 = vadd.f32 %v2562, %v2574
  %v2593 = vadd.f32 %v2563, %v2574
  %v2594 = vadd.f32 %v2564, %v2574
  %v2595 = vadd.f32 %v2565, %v2574
  %v2596 = vadd.f32 %v2566, %v2574
  %v2597 = vadd.f32 %v2567, %v2574
  %v2598 = vadd.f32 %v2568, %v2574
  %v2599 = vadd.f32 %v2569, %v2574
  %v2600 = vmax.f32 %v2575, 0.0
  %v2601 = vmax.f32 %v2576, 0.0
  %v2602 = vmax.f32 %v2577, 0.0
  %v2603 = vmax.f32 %v2578, 0.0
  %v2604 = vmax.f32 %v2579, 0.0
  %v2605 = vmax.f32 %v2580, 0.0
  %v2606 = vmax.f32 %v2581, 0.0
  %v2607 = vmax.f32 %v2582, 0.0
  %v2608 = vmax.f32 %v2583, 0.0
  %v2609 = vmax.f32 %v2584, 0.0
  %v2610 = vmax.f32 %v2585, 0.0
  %v2611 = vmax.f32 %v2586, 0.0
  %v2612 = vmax.f32 %v2587, 0.0
  %v2613 = vmax.f32 %v2588, 0.0
  %v2614 = vmax.f32 %v2589, 0.0
  %v2615 = vmax.f32 %v2590, 0.0
  %v2616 = vmax.f32 %v2591, 0.0
  %v2617 = vmax.f32 %v2592, 0.0
  %v2618 = vmax.f32 %v2593, 0.0
  %v2619 = vmax.f32 %v2594, 0.0
  %v2620 = vmax.f32 %v2595, 0.0
  %v2621 = vmax.f32 %v2596, 0.0
  %v2622 = vmax.f32 %v2597, 0.0
  %v2623 = vmax.f32 %v2598, 0.0
  %v2624 = vmax.f32 %v2599, 0.0
  %s2625 = scalar_lea.vmem %s4, 300
  %v2626 = vld [vmem:[%s2625] sm:$0xf]
  %v2627 = vld [vmem:[%s2625 + $0x4] sm:$0xf]
  %v2628 = vld [vmem:[%s2625 + $0x8] sm:$0xf]
  %v2629 = vld [vmem:[%s2625 + $0xc] sm:$0xf]
  %v2630 = vld [vmem:[%s2625 + $0x10] sm:$0xf]
  %v2631 = vld [vmem:[%s2625 + $0x14] sm:$0xf]
  %v2632 = vld [vmem:[%s2625 + $0x18] sm:$0xf]
  %v2633 = vld [vmem:[%s2625 + $0x1c] sm:$0xf]
  %v2634 = vld [vmem:[%s2625 + $0x20] sm:$0xf]
  %v2635 = vld [vmem:[%s2625 + $0x24] sm:$0xf]
  %v2636 = vld [vmem:[%s2625 + $0x28] sm:$0xf]
  %v2637 = vld [vmem:[%s2625 + $0x2c] sm:$0xf]
  %v2638 = vld [vmem:[%s2625 + $0x30] sm:$0xf]
  %v2639 = vld [vmem:[%s2625 + $0x34] sm:$0xf]
  %v2640 = vld [vmem:[%s2625 + $0x38] sm:$0xf]
  %v2641 = vld [vmem:[%s2625 + $0x3c] sm:$0xf]
  %v2642 = vld [vmem:[%s2625 + $0x40] sm:$0xf]
  %v2643 = vld [vmem:[%s2625 + $0x44] sm:$0xf]
  %v2644 = vld [vmem:[%s2625 + $0x48] sm:$0xf]
  %v2645 = vld [vmem:[%s2625 + $0x4c] sm:$0xf]
  %v2646 = vld [vmem:[%s2625 + $0x50] sm:$0xf]
  %v2647 = vld [vmem:[%s2625 + $0x54] sm:$0xf]
  %v2648 = vld [vmem:[%s2625 + $0x58] sm:$0xf]
  %v2649 = vld [vmem:[%s2625 + $0x5c] sm:$0xf]
  %v2650 = vld [vmem:[%s2625 + $0x60] sm:$0xf]
  %v2651 = vunpack.c.l.bf16 %v2626
  %v2652 = vunpack.c.l.bf16 %v2627
  %v2653 = vunpack.c.l.bf16 %v2628
  %v2654 = vunpack.c.l.bf16 %v2629
  %v2655 = vunpack.c.l.bf16 %v2630
  %v2656 = vunpack.c.l.bf16 %v2631
  %v2657 = vunpack.c.l.bf16 %v2632
  %v2658 = vunpack.c.l.bf16 %v2633
  %v2659 = vunpack.c.l.bf16 %v2634
  %v2660 = vunpack.c.l.bf16 %v2635
  %v2661 = vunpack.c.l.bf16 %v2636
  %v2662 = vunpack.c.l.bf16 %v2637
  %v2663 = vunpack.c.l.bf16 %v2638
  %v2664 = vunpack.c.l.bf16 %v2639
  %v2665 = vunpack.c.l.bf16 %v2640
  %v2666 = vunpack.c.l.bf16 %v2641
  %v2667 = vunpack.c.l.bf16 %v2642
  %v2668 = vunpack.c.l.bf16 %v2643
  %v2669 = vunpack.c.l.bf16 %v2644
  %v2670 = vunpack.c.l.bf16 %v2645
  %v2671 = vunpack.c.l.bf16 %v2646
  %v2672 = vunpack.c.l.bf16 %v2647
  %v2673 = vunpack.c.l.bf16 %v2648
  %v2674 = vunpack.c.l.bf16 %v2649
  %v2675 = vunpack.c.l.bf16 %v2650
  %v2676 = vmul.f32 %v2600, %v2651
  %v2677 = vmul.f32 %v2601, %v2652
  %v2678 = vmul.f32 %v2602, %v2653
  %v2679 = vmul.f32 %v2603, %v2654
  %v2680 = vmul.f32 %v2604, %v2655
  %v2681 = vmul.f32 %v2605, %v2656
  %v2682 = vmul.f32 %v2606, %v2657
  %v2683 = vmul.f32 %v2607, %v2658
  %v2684 = vmul.f32 %v2608, %v2659
  %v2685 = vmul.f32 %v2609, %v2660
  %v2686 = vmul.f32 %v2610, %v2661
  %v2687 = vmul.f32 %v2611, %v2662
  %v2688 = vmul.f32 %v2612, %v2663
  %v2689 = vmul.f32 %v2613, %v2664
  %v2690 = vmul.f32 %v2614, %v2665
  %v2691 = vmul.f32 %v2615, %v2666
  %v2692 = vmul.f32 %v2616, %v2667
  %v2693 = vmul.f32 %v2617, %v2668
  %v2694 = vmul.f32 %v2618, %v2669
  %v2695 = vmul.f32 %v2619, %v2670
  %v2696 = vmul.f32 %v2620, %v2671
  %v2697 = vmul.f32 %v2621, %v2672
  %v2698 = vmul.f32 %v2622, %v2673
  %v2699 = vmul.f32 %v2623, %v2674
  %v2700 = vmul.f32 %v2624, %v2675
  %v2701 = vld [vmem:[%s1 + $0x88] sm:$0xf]
  %v2702 = vld [vmem:[%s1 + $0x8c] sm:$0xf]
  %v2703 = vpack.c.bf16 %v2677, %v2676
  %v2704 = vpack.c.bf16 %v2679, %v2678
  %v2705 = vpack.c.bf16 %v2681, %v2680
  %v2706 = vpack.c.bf16 %v2683, %v2682
  %v2707 = vpack.c.bf16 %v2685, %v2684
  %v2708 = vpack.c.bf16 %v2687, %v2686
  %v2709 = vpack.c.bf16 %v2689, %v2688
  %v2710 = vpack.c.bf16 %v2691, %v2690
  %v2711 = vpack.c.bf16 %v2693, %v2692
  %v2712 = vpack.c.bf16 %v2695, %v2694
  %v2713 = vpack.c.bf16 %v2697, %v2696
  %v2714 = vpack.c.bf16 %v2699, %v2698
  %v2715 = vpack.c.bf16 %v2700, %v2700
  %v2718 = vunpack.c.l.b16 %v2701
  %v2719 = vunpack.c.l.b16 %v2702
  %v2720 = vpack.c.b16 %v2719, %v2718
  %v2723 = vsel %vm2225, %v2703, 0
  %v2726 = vsel %vm2225, %v2704, 0
  %v2729 = vsel %vm2225, %v2705, 0
  %v2732 = vsel %vm2225, %v2706, 0
  %v2735 = vsel %vm2225, %v2707, 0
  %v2738 = vsel %vm2225, %v2708, 0
  %v2741 = vsel %vm2225, %v2709, 0
  %v2744 = vsel %vm2225, %v2710, 0
  %v2747 = vsel %vm2225, %v2711, 0
  %v2750 = vsel %vm2225, %v2712, 0
  %v2753 = vsel %vm2225, %v2713, 0
  %v2756 = vsel %vm2225, %v2714, 0
  %v2759 = vsel %vm2225, %v2715, 0
  %2761 = vmatprep.subr.bf16.mxu0 0
  %2762 = vmatpush1.bf16.msra.mxu0 0
  %2763 = vmatprep.subr.bf16.mxu0 0
  %2764 = vmatpush1.bf16.msra.mxu0 0
  %2765 = vmatprep.subr.bf16.mxu0 0
  %2766 = vmatpush1.bf16.msra.mxu0 0
  %2767 = vmatprep.subr.bf16.mxu0 0
  %2768 = vmatpush1.bf16.msra.mxu0 0
  %2769 = vmatprep.subr.bf16.mxu0 0
  %2770 = vmatpush1.bf16.msra.mxu0 0
  %2771 = vmatprep.subr.bf16.mxu0 0
  %2772 = vmatpush1.bf16.msra.mxu0 0
  %2773 = vmatprep.subr.bf16.mxu0 0
  %2774 = vmatpush1.bf16.msra.mxu0 0
  %2775 = vmatprep.subr.bf16.mxu0 0
  %2776 = vmatpush1.bf16.msra.mxu0 %v2720
  %2777 = vmatprep.subr.bf16.mxu0 0
  %2778 = vmatpush2.bf16.msra.mxu0 0
  %2779 = vmatprep.subr.bf16.mxu0 0
  %2780 = vmatpush2.bf16.msra.mxu0 0
  %2781 = vmatprep.subr.bf16.mxu0 0
  %2782 = vmatpush2.bf16.msra.mxu0 0
  %2783 = vmatprep.subr.bf16.mxu0 0
  %2784 = vmatpush2.bf16.msra.mxu0 0
  %2785 = vmatprep.subr.bf16.mxu0 0
  %2786 = vmatpush2.bf16.msra.mxu0 0
  %2787 = vmatprep.subr.bf16.mxu0 0
  %2788 = vmatpush2.bf16.msra.mxu0 0
  %2789 = vmatprep.subr.bf16.mxu0 0
  %2790 = vmatpush2.bf16.msra.mxu0 0
  %2791 = vmatprep.subr.bf16.mxu0 0
  %2792 = vmatpush2.bf16.msra.mxu0 0
  %2793 = vmatprep.mubr.bf16.mxu0 0
  %2794 = vmatmul.mubr.bf16.gmra.mxu0 %v2723
  %v2795 = vpop.f32.mrf.mxu0
  %v2796 = vadd.f32 0.0, %v2795
  %v2797 = vpop.f32.mrf.mxu0
  %v2798 = vpop.f32.mrf.mxu0
  %v2799 = vadd.f32 0.0, %v2798
  %v2800 = vpop.f32.mrf.mxu0
  %2801 = vmatprep.mubr.bf16.mxu0 0
  %2802 = vmatmul.mubr.bf16.gmra.mxu0 %v2726
  %v2803 = vpop.f32.mrf.mxu0
  %v2804 = vadd.f32 0.0, %v2803
  %v2805 = vpop.f32.mrf.mxu0
  %v2806 = vpop.f32.mrf.mxu0
  %v2807 = vadd.f32 0.0, %v2806
  %v2808 = vpop.f32.mrf.mxu0
  %2809 = vmatprep.mubr.bf16.mxu0 0
  %2810 = vmatmul.mubr.bf16.gmra.mxu0 %v2729
  %v2811 = vpop.f32.mrf.mxu0
  %v2812 = vadd.f32 0.0, %v2811
  %v2813 = vpop.f32.mrf.mxu0
  %v2814 = vpop.f32.mrf.mxu0
  %v2815 = vadd.f32 0.0, %v2814
  %v2816 = vpop.f32.mrf.mxu0
  %2817 = vmatprep.mubr.bf16.mxu0 0
  %2818 = vmatmul.mubr.bf16.gmra.mxu0 %v2732
  %v2819 = vpop.f32.mrf.mxu0
  %v2820 = vadd.f32 0.0, %v2819
  %v2821 = vpop.f32.mrf.mxu0
  %v2822 = vpop.f32.mrf.mxu0
  %v2823 = vadd.f32 0.0, %v2822
  %v2824 = vpop.f32.mrf.mxu0
  %2825 = vmatprep.mubr.bf16.mxu0 0
  %2826 = vmatmul.mubr.bf16.gmra.mxu0 %v2735
  %v2827 = vpop.f32.mrf.mxu0
  %v2828 = vadd.f32 0.0, %v2827
  %v2829 = vpop.f32.mrf.mxu0
  %v2830 = vpop.f32.mrf.mxu0
  %v2831 = vadd.f32 0.0, %v2830
  %v2832 = vpop.f32.mrf.mxu0
  %2833 = vmatprep.mubr.bf16.mxu0 0
  %2834 = vmatmul.mubr.bf16.gmra.mxu0 %v2738
  %v2835 = vpop.f32.mrf.mxu0
  %v2836 = vadd.f32 0.0, %v2835
  %v2837 = vpop.f32.mrf.mxu0
  %v2838 = vpop.f32.mrf.mxu0
  %v2839 = vadd.f32 0.0, %v2838
  %v2840 = vpop.f32.mrf.mxu0
  %2841 = vmatprep.mubr.bf16.mxu0 0
  %2842 = vmatmul.mubr.bf16.gmra.mxu0 %v2741
  %v2843 = vpop.f32.mrf.mxu0
  %v2844 = vadd.f32 0.0, %v2843
  %v2845 = vpop.f32.mrf.mxu0
  %v2846 = vpop.f32.mrf.mxu0
  %v2847 = vadd.f32 0.0, %v2846
  %v2848 = vpop.f32.mrf.mxu0
  %2849 = vmatprep.mubr.bf16.mxu0 0
  %2850 = vmatmul.mubr.bf16.gmra.mxu0 %v2744
  %v2851 = vpop.f32.mrf.mxu0
  %v2852 = vadd.f32 0.0, %v2851
  %v2853 = vpop.f32.mrf.mxu0
  %v2854 = vpop.f32.mrf.mxu0
  %v2855 = vadd.f32 0.0, %v2854
  %v2856 = vpop.f32.mrf.mxu0
  %2857 = vmatprep.mubr.bf16.mxu0 0
  %2858 = vmatmul.mubr.bf16.gmra.mxu0 %v2747
  %v2859 = vpop.f32.mrf.mxu0
  %v2860 = vadd.f32 0.0, %v2859
  %v2861 = vpop.f32.mrf.mxu0
  %v2862 = vpop.f32.mrf.mxu0
  %v2863 = vadd.f32 0.0, %v2862
  %v2864 = vpop.f32.mrf.mxu0
  %2865 = vmatprep.mubr.bf16.mxu0 0
  %2866 = vmatmul.mubr.bf16.gmra.mxu0 %v2750
  %v2867 = vpop.f32.mrf.mxu0
  %v2868 = vadd.f32 0.0, %v2867
  %v2869 = vpop.f32.mrf.mxu0
  %v2870 = vpop.f32.mrf.mxu0
  %v2871 = vadd.f32 0.0, %v2870
  %v2872 = vpop.f32.mrf.mxu0
  %2873 = vmatprep.mubr.bf16.mxu0 0
  %2874 = vmatmul.mubr.bf16.gmra.mxu0 %v2753
  %v2875 = vpop.f32.mrf.mxu0
  %v2876 = vadd.f32 0.0, %v2875
  %v2877 = vpop.f32.mrf.mxu0
  %v2878 = vpop.f32.mrf.mxu0
  %v2879 = vadd.f32 0.0, %v2878
  %v2880 = vpop.f32.mrf.mxu0
  %2881 = vmatprep.mubr.bf16.mxu0 0
  %2882 = vmatmul.mubr.bf16.gmra.mxu0 %v2756
  %v2883 = vpop.f32.mrf.mxu0
  %v2884 = vadd.f32 0.0, %v2883
  %v2885 = vpop.f32.mrf.mxu0
  %v2886 = vpop.f32.mrf.mxu0
  %v2887 = vadd.f32 0.0, %v2886
  %v2888 = vpop.f32.mrf.mxu0
  %2889 = vmatprep.mubr.bf16.mxu0 0
  %2890 = vmatmul.mubr.bf16.gmra.mxu0 %v2759
  %v2891 = vpop.f32.mrf.mxu0
  %v2892 = vadd.f32 0.0, %v2891
  %v2893 = vpop.f32.mrf.mxu0
  %v2894 = vpop.f32.mrf.mxu0
  %v2895 = vpop.f32.mrf.mxu0
  %2896 = vdwg.mxu0
  %v2897 = vld [vmem:[%s1 + $0x90] sm:$0xf]
  %v2898 = vld [vmem:[%s1 + $0x94] sm:$0xf]
  %v2899 = vpack.c.bf16 %v2799, %v2796
  %v2900 = vpack.c.bf16 %v2807, %v2804
  %v2901 = vpack.c.bf16 %v2815, %v2812
  %v2902 = vpack.c.bf16 %v2823, %v2820
  %v2903 = vpack.c.bf16 %v2831, %v2828
  %v2904 = vpack.c.bf16 %v2839, %v2836
  %v2905 = vpack.c.bf16 %v2847, %v2844
  %v2906 = vpack.c.bf16 %v2855, %v2852
  %v2907 = vpack.c.bf16 %v2863, %v2860
  %v2908 = vpack.c.bf16 %v2871, %v2868
  %v2909 = vpack.c.bf16 %v2879, %v2876
  %v2910 = vpack.c.bf16 %v2887, %v2884
  %v2911 = vpack.c.bf16 %v2892, %v2892
  %v2914 = vunpack.c.l.b16 %v2897
  %v2915 = vunpack.c.l.b16 %v2898
  %v2916 = vpack.c.b16 %v2915, %v2914
  %v2919 = vsel %vm2225, %v2899, 0
  %v2922 = vsel %vm2225, %v2900, 0
  %v2925 = vsel %vm2225, %v2901, 0
  %v2928 = vsel %vm2225, %v2902, 0
  %v2931 = vsel %vm2225, %v2903, 0
  %v2934 = vsel %vm2225, %v2904, 0
  %v2937 = vsel %vm2225, %v2905, 0
  %v2940 = vsel %vm2225, %v2906, 0
  %v2943 = vsel %vm2225, %v2907, 0
  %v2946 = vsel %vm2225, %v2908, 0
  %v2949 = vsel %vm2225, %v2909, 0
  %v2952 = vsel %vm2225, %v2910, 0
  %v2955 = vsel %vm2225, %v2911, 0
  %2957 = vmatprep.subr.bf16.mxu0 0
  %2958 = vmatpush1.bf16.msra.mxu0 0
  %2959 = vmatprep.subr.bf16.mxu0 0
  %2960 = vmatpush1.bf16.msra.mxu0 0
  %2961 = vmatprep.subr.bf16.mxu0 0
  %2962 = vmatpush1.bf16.msra.mxu0 0
  %2963 = vmatprep.subr.bf16.mxu0 0
  %2964 = vmatpush1.bf16.msra.mxu0 0
  %2965 = vmatprep.subr.bf16.mxu0 0
  %2966 = vmatpush1.bf16.msra.mxu0 0
  %2967 = vmatprep.subr.bf16.mxu0 0
  %2968 = vmatpush1.bf16.msra.mxu0 0
  %2969 = vmatprep.subr.bf16.mxu0 0
  %2970 = vmatpush1.bf16.msra.mxu0 0
  %2971 = vmatprep.subr.bf16.mxu0 0
  %2972 = vmatpush1.bf16.msra.mxu0 %v2916
  %2973 = vmatprep.subr.bf16.mxu0 0
  %2974 = vmatpush2.bf16.msra.mxu0 0
  %2975 = vmatprep.subr.bf16.mxu0 0
  %2976 = vmatpush2.bf16.msra.mxu0 0
  %2977 = vmatprep.subr.bf16.mxu0 0
  %2978 = vmatpush2.bf16.msra.mxu0 0
  %2979 = vmatprep.subr.bf16.mxu0 0
  %2980 = vmatpush2.bf16.msra.mxu0 0
  %2981 = vmatprep.subr.bf16.mxu0 0
  %2982 = vmatpush2.bf16.msra.mxu0 0
  %2983 = vmatprep.subr.bf16.mxu0 0
  %2984 = vmatpush2.bf16.msra.mxu0 0
  %2985 = vmatprep.subr.bf16.mxu0 0
  %2986 = vmatpush2.bf16.msra.mxu0 0
  %2987 = vmatprep.subr.bf16.mxu0 0
  %2988 = vmatpush2.bf16.msra.mxu0 0
  %2989 = vmatprep.mubr.bf16.mxu0 0
  %2990 = vmatmul.mubr.bf16.gmra.mxu0 %v2919
  %v2991 = vpop.f32.mrf.mxu0
  %v2992 = vadd.f32 0.0, %v2991
  %v2993 = vpop.f32.mrf.mxu0
  %v2994 = vpop.f32.mrf.mxu0
  %v2995 = vadd.f32 0.0, %v2994
  %v2996 = vpop.f32.mrf.mxu0
  %2997 = vmatprep.mubr.bf16.mxu0 0
  %2998 = vmatmul.mubr.bf16.gmra.mxu0 %v2922
  %v2999 = vpop.f32.mrf.mxu0
  %v3000 = vadd.f32 0.0, %v2999
  %v3001 = vpop.f32.mrf.mxu0
  %v3002 = vpop.f32.mrf.mxu0
  %v3003 = vadd.f32 0.0, %v3002
  %v3004 = vpop.f32.mrf.mxu0
  %3005 = vmatprep.mubr.bf16.mxu0 0
  %3006 = vmatmul.mubr.bf16.gmra.mxu0 %v2925
  %v3007 = vpop.f32.mrf.mxu0
  %v3008 = vadd.f32 0.0, %v3007
  %v3009 = vpop.f32.mrf.mxu0
  %v3010 = vpop.f32.mrf.mxu0
  %v3011 = vadd.f32 0.0, %v3010
  %v3012 = vpop.f32.mrf.mxu0
  %3013 = vmatprep.mubr.bf16.mxu0 0
  %3014 = vmatmul.mubr.bf16.gmra.mxu0 %v2928
  %v3015 = vpop.f32.mrf.mxu0
  %v3016 = vadd.f32 0.0, %v3015
  %v3017 = vpop.f32.mrf.mxu0
  %v3018 = vpop.f32.mrf.mxu0
  %v3019 = vadd.f32 0.0, %v3018
  %v3020 = vpop.f32.mrf.mxu0
  %3021 = vmatprep.mubr.bf16.mxu0 0
  %3022 = vmatmul.mubr.bf16.gmra.mxu0 %v2931
  %v3023 = vpop.f32.mrf.mxu0
  %v3024 = vadd.f32 0.0, %v3023
  %v3025 = vpop.f32.mrf.mxu0
  %v3026 = vpop.f32.mrf.mxu0
  %v3027 = vadd.f32 0.0, %v3026
  %v3028 = vpop.f32.mrf.mxu0
  %3029 = vmatprep.mubr.bf16.mxu0 0
  %3030 = vmatmul.mubr.bf16.gmra.mxu0 %v2934
  %v3031 = vpop.f32.mrf.mxu0
  %v3032 = vadd.f32 0.0, %v3031
  %v3033 = vpop.f32.mrf.mxu0
  %v3034 = vpop.f32.mrf.mxu0
  %v3035 = vadd.f32 0.0, %v3034
  %v3036 = vpop.f32.mrf.mxu0
  %3037 = vmatprep.mubr.bf16.mxu0 0
  %3038 = vmatmul.mubr.bf16.gmra.mxu0 %v2937
  %v3039 = vpop.f32.mrf.mxu0
  %v3040 = vadd.f32 0.0, %v3039
  %v3041 = vpop.f32.mrf.mxu0
  %v3042 = vpop.f32.mrf.mxu0
  %v3043 = vadd.f32 0.0, %v3042
  %v3044 = vpop.f32.mrf.mxu0
  %3045 = vmatprep.mubr.bf16.mxu0 0
  %3046 = vmatmul.mubr.bf16.gmra.mxu0 %v2940
  %v3047 = vpop.f32.mrf.mxu0
  %v3048 = vadd.f32 0.0, %v3047
  %v3049 = vpop.f32.mrf.mxu0
  %v3050 = vpop.f32.mrf.mxu0
  %v3051 = vadd.f32 0.0, %v3050
  %v3052 = vpop.f32.mrf.mxu0
  %3053 = vmatprep.mubr.bf16.mxu0 0
  %3054 = vmatmul.mubr.bf16.gmra.mxu0 %v2943
  %v3055 = vpop.f32.mrf.mxu0
  %v3056 = vadd.f32 0.0, %v3055
  %v3057 = vpop.f32.mrf.mxu0
  %v3058 = vpop.f32.mrf.mxu0
  %v3059 = vadd.f32 0.0, %v3058
  %v3060 = vpop.f32.mrf.mxu0
  %3061 = vmatprep.mubr.bf16.mxu0 0
  %3062 = vmatmul.mubr.bf16.gmra.mxu0 %v2946
  %v3063 = vpop.f32.mrf.mxu0
  %v3064 = vadd.f32 0.0, %v3063
  %v3065 = vpop.f32.mrf.mxu0
  %v3066 = vpop.f32.mrf.mxu0
  %v3067 = vadd.f32 0.0, %v3066
  %v3068 = vpop.f32.mrf.mxu0
  %3069 = vmatprep.mubr.bf16.mxu0 0
  %3070 = vmatmul.mubr.bf16.gmra.mxu0 %v2949
  %v3071 = vpop.f32.mrf.mxu0
  %v3072 = vadd.f32 0.0, %v3071
  %v3073 = vpop.f32.mrf.mxu0
  %v3074 = vpop.f32.mrf.mxu0
  %v3075 = vadd.f32 0.0, %v3074
  %v3076 = vpop.f32.mrf.mxu0
  %3077 = vmatprep.mubr.bf16.mxu0 0
  %3078 = vmatmul.mubr.bf16.gmra.mxu0 %v2952
  %v3079 = vpop.f32.mrf.mxu0
  %v3080 = vadd.f32 0.0, %v3079
  %v3081 = vpop.f32.mrf.mxu0
  %v3082 = vpop.f32.mrf.mxu0
  %v3083 = vadd.f32 0.0, %v3082
  %v3084 = vpop.f32.mrf.mxu0
  %3085 = vmatprep.mubr.bf16.mxu0 0
  %3086 = vmatmul.mubr.bf16.gmra.mxu0 %v2955
  %v3087 = vpop.f32.mrf.mxu0
  %v3088 = vadd.f32 0.0, %v3087
  %v3089 = vpop.f32.mrf.mxu0
  %v3090 = vpop.f32.mrf.mxu0
  %v3091 = vpop.f32.mrf.mxu0
  %3092 = vdwg.mxu0
  %v3093 = vadd.f32 %v2992, %v2995
  %v3094 = vadd.f32 %v3093, %v3000
  %v3095 = vadd.f32 %v3094, %v3003
  %v3096 = vadd.f32 %v3095, %v3008
  %v3097 = vadd.f32 %v3096, %v3011
  %v3098 = vadd.f32 %v3097, %v3016
  %v3099 = vadd.f32 %v3098, %v3019
  %v3100 = vadd.f32 %v3099, %v3024
  %v3101 = vadd.f32 %v3100, %v3027
  %v3102 = vadd.f32 %v3101, %v3032
  %v3103 = vadd.f32 %v3102, %v3035
  %v3104 = vadd.f32 %v3103, %v3040
  %v3105 = vadd.f32 %v3104, %v3043
  %v3106 = vadd.f32 %v3105, %v3048
  %v3107 = vadd.f32 %v3106, %v3051
  %v3108 = vadd.f32 %v3107, %v3056
  %v3109 = vadd.f32 %v3108, %v3059
  %v3110 = vadd.f32 %v3109, %v3064
  %v3111 = vadd.f32 %v3110, %v3067
  %v3112 = vadd.f32 %v3111, %v3072
  %v3113 = vadd.f32 %v3112, %v3075
  %v3114 = vadd.f32 %v3113, %v3080
  %v3115 = vadd.f32 %v3114, %v3083
  %v3116 = vadd.f32 %v3115, %v3088
  %v3117 = vrot.slane %v3116, 4
  %v3118 = vadd.f32 %v3116, %v3117
  %v3119 = vrot.slane %v3118, 2
  %v3120 = vadd.f32 %v3118, %v3119
  %v3121 = vrot.slane %v3120, 1
  %v3122 = vadd.f32 %v3120, %v3121
  %v3123 = vmul.f32 %v3122, %v297
  %v3124 = vsub.f32 %v2992, %v3123
  %v3125 = vsub.f32 %v2995, %v3123
  %v3126 = vsub.f32 %v3000, %v3123
  %v3127 = vsub.f32 %v3003, %v3123
  %v3128 = vsub.f32 %v3008, %v3123
  %v3129 = vsub.f32 %v3011, %v3123
  %v3130 = vsub.f32 %v3016, %v3123
  %v3131 = vsub.f32 %v3019, %v3123
  %v3132 = vsub.f32 %v3024, %v3123
  %v3133 = vsub.f32 %v3027, %v3123
  %v3134 = vsub.f32 %v3032, %v3123
  %v3135 = vsub.f32 %v3035, %v3123
  %v3136 = vsub.f32 %v3040, %v3123
  %v3137 = vsub.f32 %v3043, %v3123
  %v3138 = vsub.f32 %v3048, %v3123
  %v3139 = vsub.f32 %v3051, %v3123
  %v3140 = vsub.f32 %v3056, %v3123
  %v3141 = vsub.f32 %v3059, %v3123
  %v3142 = vsub.f32 %v3064, %v3123
  %v3143 = vsub.f32 %v3067, %v3123
  %v3144 = vsub.f32 %v3072, %v3123
  %v3145 = vsub.f32 %v3075, %v3123
  %v3146 = vsub.f32 %v3080, %v3123
  %v3147 = vsub.f32 %v3083, %v3123
  %v3148 = vsub.f32 %v3088, %v3123
  %v3149 = vmul.f32 %v3124, %v3124
  %v3150 = vmul.f32 %v3125, %v3125
  %v3151 = vmul.f32 %v3126, %v3126
  %v3152 = vmul.f32 %v3127, %v3127
  %v3153 = vmul.f32 %v3128, %v3128
  %v3154 = vmul.f32 %v3129, %v3129
  %v3155 = vmul.f32 %v3130, %v3130
  %v3156 = vmul.f32 %v3131, %v3131
  %v3157 = vmul.f32 %v3132, %v3132
  %v3158 = vmul.f32 %v3133, %v3133
  %v3159 = vmul.f32 %v3134, %v3134
  %v3160 = vmul.f32 %v3135, %v3135
  %v3161 = vmul.f32 %v3136, %v3136
  %v3162 = vmul.f32 %v3137, %v3137
  %v3163 = vmul.f32 %v3138, %v3138
  %v3164 = vmul.f32 %v3139, %v3139
  %v3165 = vmul.f32 %v3140, %v3140
  %v3166 = vmul.f32 %v3141, %v3141
  %v3167 = vmul.f32 %v3142, %v3142
  %v3168 = vmul.f32 %v3143, %v3143
  %v3169 = vmul.f32 %v3144, %v3144
  %v3170 = vmul.f32 %v3145, %v3145
  %v3171 = vmul.f32 %v3146, %v3146
  %v3172 = vmul.f32 %v3147, %v3147
  %v3173 = vmul.f32 %v3148, %v3148
  %v3174 = vadd.f32 %v3149, %v3150
  %v3175 = vadd.f32 %v3174, %v3151
  %v3176 = vadd.f32 %v3175, %v3152
  %v3177 = vadd.f32 %v3176, %v3153
  %v3178 = vadd.f32 %v3177, %v3154
  %v3179 = vadd.f32 %v3178, %v3155
  %v3180 = vadd.f32 %v3179, %v3156
  %v3181 = vadd.f32 %v3180, %v3157
  %v3182 = vadd.f32 %v3181, %v3158
  %v3183 = vadd.f32 %v3182, %v3159
  %v3184 = vadd.f32 %v3183, %v3160
  %v3185 = vadd.f32 %v3184, %v3161
  %v3186 = vadd.f32 %v3185, %v3162
  %v3187 = vadd.f32 %v3186, %v3163
  %v3188 = vadd.f32 %v3187, %v3164
  %v3189 = vadd.f32 %v3188, %v3165
  %v3190 = vadd.f32 %v3189, %v3166
  %v3191 = vadd.f32 %v3190, %v3167
  %v3192 = vadd.f32 %v3191, %v3168
  %v3193 = vadd.f32 %v3192, %v3169
  %v3194 = vadd.f32 %v3193, %v3170
  %v3195 = vadd.f32 %v3194, %v3171
  %v3196 = vadd.f32 %v3195, %v3172
  %v3197 = vadd.f32 %v3196, %v3173
  %v3198 = vrot.slane %v3197, 4
  %v3199 = vadd.f32 %v3197, %v3198
  %v3200 = vrot.slane %v3199, 2
  %v3201 = vadd.f32 %v3199, %v3200
  %v3202 = vrot.slane %v3201, 1
  %v3203 = vadd.f32 %v3201, %v3202
  %v3204 = vmul.f32 %v3203, %v297
  %v3205 = vadd.f32 %v3204, 1e-05
  %v3206 = vrsqrt.pop %v3205
  %v3207 = vmul.f32 %v3124, %v3206
  %v3208 = vmul.f32 %v3125, %v3206
  %v3209 = vmul.f32 %v3126, %v3206
  %v3210 = vmul.f32 %v3127, %v3206
  %v3211 = vmul.f32 %v3128, %v3206
  %v3212 = vmul.f32 %v3129, %v3206
  %v3213 = vmul.f32 %v3130, %v3206
  %v3214 = vmul.f32 %v3131, %v3206
  %v3215 = vmul.f32 %v3132, %v3206
  %v3216 = vmul.f32 %v3133, %v3206
  %v3217 = vmul.f32 %v3134, %v3206
  %v3218 = vmul.f32 %v3135, %v3206
  %v3219 = vmul.f32 %v3136, %v3206
  %v3220 = vmul.f32 %v3137, %v3206
  %v3221 = vmul.f32 %v3138, %v3206
  %v3222 = vmul.f32 %v3139, %v3206
  %v3223 = vmul.f32 %v3140, %v3206
  %v3224 = vmul.f32 %v3141, %v3206
  %v3225 = vmul.f32 %v3142, %v3206
  %v3226 = vmul.f32 %v3143, %v3206
  %v3227 = vmul.f32 %v3144, %v3206
  %v3228 = vmul.f32 %v3145, %v3206
  %v3229 = vmul.f32 %v3146, %v3206
  %v3230 = vmul.f32 %v3147, %v3206
  %v3231 = vmul.f32 %v3148, %v3206
  %v3232 = vld [vmem:[%s2 + $0x4] sm:$0x1]
  %v3233 = vlaneseq
  %v3234 = vshrl.u32 %v3233, 7
  %v3235 = vsub.s32 0, %v3234
  %v3236 = vrot.slane %v3232, %v3235
  %v3237 = vmul.f32 %v3207, %v3236
  %v3238 = vmul.f32 %v3208, %v3236
  %v3239 = vmul.f32 %v3209, %v3236
  %v3240 = vmul.f32 %v3210, %v3236
  %v3241 = vmul.f32 %v3211, %v3236
  %v3242 = vmul.f32 %v3212, %v3236
  %v3243 = vmul.f32 %v3213, %v3236
  %v3244 = vmul.f32 %v3214, %v3236
  %v3245 = vmul.f32 %v3215, %v3236
  %v3246 = vmul.f32 %v3216, %v3236
  %v3247 = vmul.f32 %v3217, %v3236
  %v3248 = vmul.f32 %v3218, %v3236
  %v3249 = vmul.f32 %v3219, %v3236
  %v3250 = vmul.f32 %v3220, %v3236
  %v3251 = vmul.f32 %v3221, %v3236
  %v3252 = vmul.f32 %v3222, %v3236
  %v3253 = vmul.f32 %v3223, %v3236
  %v3254 = vmul.f32 %v3224, %v3236
  %v3255 = vmul.f32 %v3225, %v3236
  %v3256 = vmul.f32 %v3226, %v3236
  %v3257 = vmul.f32 %v3227, %v3236
  %v3258 = vmul.f32 %v3228, %v3236
  %v3259 = vmul.f32 %v3229, %v3236
  %v3260 = vmul.f32 %v3230, %v3236
  %v3261 = vmul.f32 %v3231, %v3236
  %v3262 = vld [vmem:[%s3 + $0x4] sm:$0x1]
  %v3263 = vlaneseq
  %v3264 = vshrl.u32 %v3263, 7
  %v3265 = vsub.s32 0, %v3264
  %v3266 = vrot.slane %v3262, %v3265
  %v3267 = vadd.f32 %v3237, %v3266
  %v3268 = vadd.f32 %v3238, %v3266
  %v3269 = vadd.f32 %v3239, %v3266
  %v3270 = vadd.f32 %v3240, %v3266
  %v3271 = vadd.f32 %v3241, %v3266
  %v3272 = vadd.f32 %v3242, %v3266
  %v3273 = vadd.f32 %v3243, %v3266
  %v3274 = vadd.f32 %v3244, %v3266
  %v3275 = vadd.f32 %v3245, %v3266
  %v3276 = vadd.f32 %v3246, %v3266
  %v3277 = vadd.f32 %v3247, %v3266
  %v3278 = vadd.f32 %v3248, %v3266
  %v3279 = vadd.f32 %v3249, %v3266
  %v3280 = vadd.f32 %v3250, %v3266
  %v3281 = vadd.f32 %v3251, %v3266
  %v3282 = vadd.f32 %v3252, %v3266
  %v3283 = vadd.f32 %v3253, %v3266
  %v3284 = vadd.f32 %v3254, %v3266
  %v3285 = vadd.f32 %v3255, %v3266
  %v3286 = vadd.f32 %v3256, %v3266
  %v3287 = vadd.f32 %v3257, %v3266
  %v3288 = vadd.f32 %v3258, %v3266
  %v3289 = vadd.f32 %v3259, %v3266
  %v3290 = vadd.f32 %v3260, %v3266
  %v3291 = vadd.f32 %v3261, %v3266
  %v3292 = vmax.f32 %v3267, 0.0
  %v3293 = vmax.f32 %v3268, 0.0
  %v3294 = vmax.f32 %v3269, 0.0
  %v3295 = vmax.f32 %v3270, 0.0
  %v3296 = vmax.f32 %v3271, 0.0
  %v3297 = vmax.f32 %v3272, 0.0
  %v3298 = vmax.f32 %v3273, 0.0
  %v3299 = vmax.f32 %v3274, 0.0
  %v3300 = vmax.f32 %v3275, 0.0
  %v3301 = vmax.f32 %v3276, 0.0
  %v3302 = vmax.f32 %v3277, 0.0
  %v3303 = vmax.f32 %v3278, 0.0
  %v3304 = vmax.f32 %v3279, 0.0
  %v3305 = vmax.f32 %v3280, 0.0
  %v3306 = vmax.f32 %v3281, 0.0
  %v3307 = vmax.f32 %v3282, 0.0
  %v3308 = vmax.f32 %v3283, 0.0
  %v3309 = vmax.f32 %v3284, 0.0
  %v3310 = vmax.f32 %v3285, 0.0
  %v3311 = vmax.f32 %v3286, 0.0
  %v3312 = vmax.f32 %v3287, 0.0
  %v3313 = vmax.f32 %v3288, 0.0
  %v3314 = vmax.f32 %v3289, 0.0
  %v3315 = vmax.f32 %v3290, 0.0
  %v3316 = vmax.f32 %v3291, 0.0
  %s3317 = scalar_lea.vmem %s4, 400
  %v3318 = vld [vmem:[%s3317] sm:$0xf]
  %v3319 = vld [vmem:[%s3317 + $0x4] sm:$0xf]
  %v3320 = vld [vmem:[%s3317 + $0x8] sm:$0xf]
  %v3321 = vld [vmem:[%s3317 + $0xc] sm:$0xf]
  %v3322 = vld [vmem:[%s3317 + $0x10] sm:$0xf]
  %v3323 = vld [vmem:[%s3317 + $0x14] sm:$0xf]
  %v3324 = vld [vmem:[%s3317 + $0x18] sm:$0xf]
  %v3325 = vld [vmem:[%s3317 + $0x1c] sm:$0xf]
  %v3326 = vld [vmem:[%s3317 + $0x20] sm:$0xf]
  %v3327 = vld [vmem:[%s3317 + $0x24] sm:$0xf]
  %v3328 = vld [vmem:[%s3317 + $0x28] sm:$0xf]
  %v3329 = vld [vmem:[%s3317 + $0x2c] sm:$0xf]
  %v3330 = vld [vmem:[%s3317 + $0x30] sm:$0xf]
  %v3331 = vld [vmem:[%s3317 + $0x34] sm:$0xf]
  %v3332 = vld [vmem:[%s3317 + $0x38] sm:$0xf]
  %v3333 = vld [vmem:[%s3317 + $0x3c] sm:$0xf]
  %v3334 = vld [vmem:[%s3317 + $0x40] sm:$0xf]
  %v3335 = vld [vmem:[%s3317 + $0x44] sm:$0xf]
  %v3336 = vld [vmem:[%s3317 + $0x48] sm:$0xf]
  %v3337 = vld [vmem:[%s3317 + $0x4c] sm:$0xf]
  %v3338 = vld [vmem:[%s3317 + $0x50] sm:$0xf]
  %v3339 = vld [vmem:[%s3317 + $0x54] sm:$0xf]
  %v3340 = vld [vmem:[%s3317 + $0x58] sm:$0xf]
  %v3341 = vld [vmem:[%s3317 + $0x5c] sm:$0xf]
  %v3342 = vld [vmem:[%s3317 + $0x60] sm:$0xf]
  %v3343 = vunpack.c.l.bf16 %v3318
  %v3344 = vunpack.c.l.bf16 %v3319
  %v3345 = vunpack.c.l.bf16 %v3320
  %v3346 = vunpack.c.l.bf16 %v3321
  %v3347 = vunpack.c.l.bf16 %v3322
  %v3348 = vunpack.c.l.bf16 %v3323
  %v3349 = vunpack.c.l.bf16 %v3324
  %v3350 = vunpack.c.l.bf16 %v3325
  %v3351 = vunpack.c.l.bf16 %v3326
  %v3352 = vunpack.c.l.bf16 %v3327
  %v3353 = vunpack.c.l.bf16 %v3328
  %v3354 = vunpack.c.l.bf16 %v3329
  %v3355 = vunpack.c.l.bf16 %v3330
  %v3356 = vunpack.c.l.bf16 %v3331
  %v3357 = vunpack.c.l.bf16 %v3332
  %v3358 = vunpack.c.l.bf16 %v3333
  %v3359 = vunpack.c.l.bf16 %v3334
  %v3360 = vunpack.c.l.bf16 %v3335
  %v3361 = vunpack.c.l.bf16 %v3336
  %v3362 = vunpack.c.l.bf16 %v3337
  %v3363 = vunpack.c.l.bf16 %v3338
  %v3364 = vunpack.c.l.bf16 %v3339
  %v3365 = vunpack.c.l.bf16 %v3340
  %v3366 = vunpack.c.l.bf16 %v3341
  %v3367 = vunpack.c.l.bf16 %v3342
  %v3368 = vmul.f32 %v3292, %v3343
  %v3369 = vmul.f32 %v3293, %v3344
  %v3370 = vmul.f32 %v3294, %v3345
  %v3371 = vmul.f32 %v3295, %v3346
  %v3372 = vmul.f32 %v3296, %v3347
  %v3373 = vmul.f32 %v3297, %v3348
  %v3374 = vmul.f32 %v3298, %v3349
  %v3375 = vmul.f32 %v3299, %v3350
  %v3376 = vmul.f32 %v3300, %v3351
  %v3377 = vmul.f32 %v3301, %v3352
  %v3378 = vmul.f32 %v3302, %v3353
  %v3379 = vmul.f32 %v3303, %v3354
  %v3380 = vmul.f32 %v3304, %v3355
  %v3381 = vmul.f32 %v3305, %v3356
  %v3382 = vmul.f32 %v3306, %v3357
  %v3383 = vmul.f32 %v3307, %v3358
  %v3384 = vmul.f32 %v3308, %v3359
  %v3385 = vmul.f32 %v3309, %v3360
  %v3386 = vmul.f32 %v3310, %v3361
  %v3387 = vmul.f32 %v3311, %v3362
  %v3388 = vmul.f32 %v3312, %v3363
  %v3389 = vmul.f32 %v3313, %v3364
  %v3390 = vmul.f32 %v3314, %v3365
  %v3391 = vmul.f32 %v3315, %v3366
  %v3392 = vmul.f32 %v3316, %v3367
  %v3393 = vld [vmem:[%s1 + $0x98] sm:$0xf]
  %v3394 = vld [vmem:[%s1 + $0x9c] sm:$0xf]
  %v3395 = vpack.c.bf16 %v3369, %v3368
  %v3396 = vpack.c.bf16 %v3371, %v3370
  %v3397 = vpack.c.bf16 %v3373, %v3372
  %v3398 = vpack.c.bf16 %v3375, %v3374
  %v3399 = vpack.c.bf16 %v3377, %v3376
  %v3400 = vpack.c.bf16 %v3379, %v3378
  %v3401 = vpack.c.bf16 %v3381, %v3380
  %v3402 = vpack.c.bf16 %v3383, %v3382
  %v3403 = vpack.c.bf16 %v3385, %v3384
  %v3404 = vpack.c.bf16 %v3387, %v3386
  %v3405 = vpack.c.bf16 %v3389, %v3388
  %v3406 = vpack.c.bf16 %v3391, %v3390
  %v3407 = vpack.c.bf16 %v3392, %v3392
  %v3410 = vunpack.c.l.b16 %v3393
  %v3411 = vunpack.c.l.b16 %v3394
  %v3412 = vpack.c.b16 %v3411, %v3410
  %v3415 = vsel %vm2225, %v3395, 0
  %v3418 = vsel %vm2225, %v3396, 0
  %v3421 = vsel %vm2225, %v3397, 0
  %v3424 = vsel %vm2225, %v3398, 0
  %v3427 = vsel %vm2225, %v3399, 0
  %v3430 = vsel %vm2225, %v3400, 0
  %v3433 = vsel %vm2225, %v3401, 0
  %v3436 = vsel %vm2225, %v3402, 0
  %v3439 = vsel %vm2225, %v3403, 0
  %v3442 = vsel %vm2225, %v3404, 0
  %v3445 = vsel %vm2225, %v3405, 0
  %v3448 = vsel %vm2225, %v3406, 0
  %v3451 = vsel %vm2225, %v3407, 0
  %3453 = vmatprep.subr.bf16.mxu0 0
  %3454 = vmatpush1.bf16.msra.mxu0 0
  %3455 = vmatprep.subr.bf16.mxu0 0
  %3456 = vmatpush1.bf16.msra.mxu0 0
  %3457 = vmatprep.subr.bf16.mxu0 0
  %3458 = vmatpush1.bf16.msra.mxu0 0
  %3459 = vmatprep.subr.bf16.mxu0 0
  %3460 = vmatpush1.bf16.msra.mxu0 0
  %3461 = vmatprep.subr.bf16.mxu0 0
  %3462 = vmatpush1.bf16.msra.mxu0 0
  %3463 = vmatprep.subr.bf16.mxu0 0
  %3464 = vmatpush1.bf16.msra.mxu0 0
  %3465 = vmatprep.subr.bf16.mxu0 0
  %3466 = vmatpush1.bf16.msra.mxu0 0
  %3467 = vmatprep.subr.bf16.mxu0 0
  %3468 = vmatpush1.bf16.msra.mxu0 %v3412
  %3469 = vmatprep.subr.bf16.mxu0 0
  %3470 = vmatpush2.bf16.msra.mxu0 0
  %3471 = vmatprep.subr.bf16.mxu0 0
  %3472 = vmatpush2.bf16.msra.mxu0 0
  %3473 = vmatprep.subr.bf16.mxu0 0
  %3474 = vmatpush2.bf16.msra.mxu0 0
  %3475 = vmatprep.subr.bf16.mxu0 0
  %3476 = vmatpush2.bf16.msra.mxu0 0
  %3477 = vmatprep.subr.bf16.mxu0 0
  %3478 = vmatpush2.bf16.msra.mxu0 0
  %3479 = vmatprep.subr.bf16.mxu0 0
  %3480 = vmatpush2.bf16.msra.mxu0 0
  %3481 = vmatprep.subr.bf16.mxu0 0
  %3482 = vmatpush2.bf16.msra.mxu0 0
  %3483 = vmatprep.subr.bf16.mxu0 0
  %3484 = vmatpush2.bf16.msra.mxu0 0
  %3485 = vmatprep.mubr.bf16.mxu0 0
  %3486 = vmatmul.mubr.bf16.gmra.mxu0 %v3415
  %v3487 = vpop.f32.mrf.mxu0
  %v3488 = vadd.f32 0.0, %v3487
  %v3489 = vpop.f32.mrf.mxu0
  %v3490 = vpop.f32.mrf.mxu0
  %v3491 = vadd.f32 0.0, %v3490
  %v3492 = vpop.f32.mrf.mxu0
  %3493 = vmatprep.mubr.bf16.mxu0 0
  %3494 = vmatmul.mubr.bf16.gmra.mxu0 %v3418
  %v3495 = vpop.f32.mrf.mxu0
  %v3496 = vadd.f32 0.0, %v3495
  %v3497 = vpop.f32.mrf.mxu0
  %v3498 = vpop.f32.mrf.mxu0
  %v3499 = vadd.f32 0.0, %v3498
  %v3500 = vpop.f32.mrf.mxu0
  %3501 = vmatprep.mubr.bf16.mxu0 0
  %3502 = vmatmul.mubr.bf16.gmra.mxu0 %v3421
  %v3503 = vpop.f32.mrf.mxu0
  %v3504 = vadd.f32 0.0, %v3503
  %v3505 = vpop.f32.mrf.mxu0
  %v3506 = vpop.f32.mrf.mxu0
  %v3507 = vadd.f32 0.0, %v3506
  %v3508 = vpop.f32.mrf.mxu0
  %3509 = vmatprep.mubr.bf16.mxu0 0
  %3510 = vmatmul.mubr.bf16.gmra.mxu0 %v3424
  %v3511 = vpop.f32.mrf.mxu0
  %v3512 = vadd.f32 0.0, %v3511
  %v3513 = vpop.f32.mrf.mxu0
  %v3514 = vpop.f32.mrf.mxu0
  %v3515 = vadd.f32 0.0, %v3514
  %v3516 = vpop.f32.mrf.mxu0
  %3517 = vmatprep.mubr.bf16.mxu0 0
  %3518 = vmatmul.mubr.bf16.gmra.mxu0 %v3427
  %v3519 = vpop.f32.mrf.mxu0
  %v3520 = vadd.f32 0.0, %v3519
  %v3521 = vpop.f32.mrf.mxu0
  %v3522 = vpop.f32.mrf.mxu0
  %v3523 = vadd.f32 0.0, %v3522
  %v3524 = vpop.f32.mrf.mxu0
  %3525 = vmatprep.mubr.bf16.mxu0 0
  %3526 = vmatmul.mubr.bf16.gmra.mxu0 %v3430
  %v3527 = vpop.f32.mrf.mxu0
  %v3528 = vadd.f32 0.0, %v3527
  %v3529 = vpop.f32.mrf.mxu0
  %v3530 = vpop.f32.mrf.mxu0
  %v3531 = vadd.f32 0.0, %v3530
  %v3532 = vpop.f32.mrf.mxu0
  %3533 = vmatprep.mubr.bf16.mxu0 0
  %3534 = vmatmul.mubr.bf16.gmra.mxu0 %v3433
  %v3535 = vpop.f32.mrf.mxu0
  %v3536 = vadd.f32 0.0, %v3535
  %v3537 = vpop.f32.mrf.mxu0
  %v3538 = vpop.f32.mrf.mxu0
  %v3539 = vadd.f32 0.0, %v3538
  %v3540 = vpop.f32.mrf.mxu0
  %3541 = vmatprep.mubr.bf16.mxu0 0
  %3542 = vmatmul.mubr.bf16.gmra.mxu0 %v3436
  %v3543 = vpop.f32.mrf.mxu0
  %v3544 = vadd.f32 0.0, %v3543
  %v3545 = vpop.f32.mrf.mxu0
  %v3546 = vpop.f32.mrf.mxu0
  %v3547 = vadd.f32 0.0, %v3546
  %v3548 = vpop.f32.mrf.mxu0
  %3549 = vmatprep.mubr.bf16.mxu0 0
  %3550 = vmatmul.mubr.bf16.gmra.mxu0 %v3439
  %v3551 = vpop.f32.mrf.mxu0
  %v3552 = vadd.f32 0.0, %v3551
  %v3553 = vpop.f32.mrf.mxu0
  %v3554 = vpop.f32.mrf.mxu0
  %v3555 = vadd.f32 0.0, %v3554
  %v3556 = vpop.f32.mrf.mxu0
  %3557 = vmatprep.mubr.bf16.mxu0 0
  %3558 = vmatmul.mubr.bf16.gmra.mxu0 %v3442
  %v3559 = vpop.f32.mrf.mxu0
  %v3560 = vadd.f32 0.0, %v3559
  %v3561 = vpop.f32.mrf.mxu0
  %v3562 = vpop.f32.mrf.mxu0
  %v3563 = vadd.f32 0.0, %v3562
  %v3564 = vpop.f32.mrf.mxu0
  %3565 = vmatprep.mubr.bf16.mxu0 0
  %3566 = vmatmul.mubr.bf16.gmra.mxu0 %v3445
  %v3567 = vpop.f32.mrf.mxu0
  %v3568 = vadd.f32 0.0, %v3567
  %v3569 = vpop.f32.mrf.mxu0
  %v3570 = vpop.f32.mrf.mxu0
  %v3571 = vadd.f32 0.0, %v3570
  %v3572 = vpop.f32.mrf.mxu0
  %3573 = vmatprep.mubr.bf16.mxu0 0
  %3574 = vmatmul.mubr.bf16.gmra.mxu0 %v3448
  %v3575 = vpop.f32.mrf.mxu0
  %v3576 = vadd.f32 0.0, %v3575
  %v3577 = vpop.f32.mrf.mxu0
  %v3578 = vpop.f32.mrf.mxu0
  %v3579 = vadd.f32 0.0, %v3578
  %v3580 = vpop.f32.mrf.mxu0
  %3581 = vmatprep.mubr.bf16.mxu0 0
  %3582 = vmatmul.mubr.bf16.gmra.mxu0 %v3451
  %v3583 = vpop.f32.mrf.mxu0
  %v3584 = vadd.f32 0.0, %v3583
  %v3585 = vpop.f32.mrf.mxu0
  %v3586 = vpop.f32.mrf.mxu0
  %v3587 = vpop.f32.mrf.mxu0
  %3588 = vdwg.mxu0
  %v3589 = vld [vmem:[%s1 + $0xa0] sm:$0xf]
  %v3590 = vld [vmem:[%s1 + $0xa4] sm:$0xf]
  %v3591 = vpack.c.bf16 %v3491, %v3488
  %v3592 = vpack.c.bf16 %v3499, %v3496
  %v3593 = vpack.c.bf16 %v3507, %v3504
  %v3594 = vpack.c.bf16 %v3515, %v3512
  %v3595 = vpack.c.bf16 %v3523, %v3520
  %v3596 = vpack.c.bf16 %v3531, %v3528
  %v3597 = vpack.c.bf16 %v3539, %v3536
  %v3598 = vpack.c.bf16 %v3547, %v3544
  %v3599 = vpack.c.bf16 %v3555, %v3552
  %v3600 = vpack.c.bf16 %v3563, %v3560
  %v3601 = vpack.c.bf16 %v3571, %v3568
  %v3602 = vpack.c.bf16 %v3579, %v3576
  %v3603 = vpack.c.bf16 %v3584, %v3584
  %v3606 = vunpack.c.l.b16 %v3589
  %v3607 = vunpack.c.l.b16 %v3590
  %v3608 = vpack.c.b16 %v3607, %v3606
  %v3611 = vsel %vm2225, %v3591, 0
  %v3614 = vsel %vm2225, %v3592, 0
  %v3617 = vsel %vm2225, %v3593, 0
  %v3620 = vsel %vm2225, %v3594, 0
  %v3623 = vsel %vm2225, %v3595, 0
  %v3626 = vsel %vm2225, %v3596, 0
  %v3629 = vsel %vm2225, %v3597, 0
  %v3632 = vsel %vm2225, %v3598, 0
  %v3635 = vsel %vm2225, %v3599, 0
  %v3638 = vsel %vm2225, %v3600, 0
  %v3641 = vsel %vm2225, %v3601, 0
  %v3644 = vsel %vm2225, %v3602, 0
  %v3647 = vsel %vm2225, %v3603, 0
  %3649 = vmatprep.subr.bf16.mxu0 0
  %3650 = vmatpush1.bf16.msra.mxu0 0
  %3651 = vmatprep.subr.bf16.mxu0 0
  %3652 = vmatpush1.bf16.msra.mxu0 0
  %3653 = vmatprep.subr.bf16.mxu0 0
  %3654 = vmatpush1.bf16.msra.mxu0 0
  %3655 = vmatprep.subr.bf16.mxu0 0
  %3656 = vmatpush1.bf16.msra.mxu0 0
  %3657 = vmatprep.subr.bf16.mxu0 0
  %3658 = vmatpush1.bf16.msra.mxu0 0
  %3659 = vmatprep.subr.bf16.mxu0 0
  %3660 = vmatpush1.bf16.msra.mxu0 0
  %3661 = vmatprep.subr.bf16.mxu0 0
  %3662 = vmatpush1.bf16.msra.mxu0 0
  %3663 = vmatprep.subr.bf16.mxu0 0
  %3664 = vmatpush1.bf16.msra.mxu0 %v3608
  %3665 = vmatprep.subr.bf16.mxu0 0
  %3666 = vmatpush2.bf16.msra.mxu0 0
  %3667 = vmatprep.subr.bf16.mxu0 0
  %3668 = vmatpush2.bf16.msra.mxu0 0
  %3669 = vmatprep.subr.bf16.mxu0 0
  %3670 = vmatpush2.bf16.msra.mxu0 0
  %3671 = vmatprep.subr.bf16.mxu0 0
  %3672 = vmatpush2.bf16.msra.mxu0 0
  %3673 = vmatprep.subr.bf16.mxu0 0
  %3674 = vmatpush2.bf16.msra.mxu0 0
  %3675 = vmatprep.subr.bf16.mxu0 0
  %3676 = vmatpush2.bf16.msra.mxu0 0
  %3677 = vmatprep.subr.bf16.mxu0 0
  %3678 = vmatpush2.bf16.msra.mxu0 0
  %3679 = vmatprep.subr.bf16.mxu0 0
  %3680 = vmatpush2.bf16.msra.mxu0 0
  %3681 = vmatprep.mubr.bf16.mxu0 0
  %3682 = vmatmul.mubr.bf16.gmra.mxu0 %v3611
  %v3683 = vpop.f32.mrf.mxu0
  %v3684 = vadd.f32 0.0, %v3683
  %v3685 = vpop.f32.mrf.mxu0
  %v3686 = vpop.f32.mrf.mxu0
  %v3687 = vadd.f32 0.0, %v3686
  %v3688 = vpop.f32.mrf.mxu0
  %3689 = vmatprep.mubr.bf16.mxu0 0
  %3690 = vmatmul.mubr.bf16.gmra.mxu0 %v3614
  %v3691 = vpop.f32.mrf.mxu0
  %v3692 = vadd.f32 0.0, %v3691
  %v3693 = vpop.f32.mrf.mxu0
  %v3694 = vpop.f32.mrf.mxu0
  %v3695 = vadd.f32 0.0, %v3694
  %v3696 = vpop.f32.mrf.mxu0
  %3697 = vmatprep.mubr.bf16.mxu0 0
  %3698 = vmatmul.mubr.bf16.gmra.mxu0 %v3617
  %v3699 = vpop.f32.mrf.mxu0
  %v3700 = vadd.f32 0.0, %v3699
  %v3701 = vpop.f32.mrf.mxu0
  %v3702 = vpop.f32.mrf.mxu0
  %v3703 = vadd.f32 0.0, %v3702
  %v3704 = vpop.f32.mrf.mxu0
  %3705 = vmatprep.mubr.bf16.mxu0 0
  %3706 = vmatmul.mubr.bf16.gmra.mxu0 %v3620
  %v3707 = vpop.f32.mrf.mxu0
  %v3708 = vadd.f32 0.0, %v3707
  %v3709 = vpop.f32.mrf.mxu0
  %v3710 = vpop.f32.mrf.mxu0
  %v3711 = vadd.f32 0.0, %v3710
  %v3712 = vpop.f32.mrf.mxu0
  %3713 = vmatprep.mubr.bf16.mxu0 0
  %3714 = vmatmul.mubr.bf16.gmra.mxu0 %v3623
  %v3715 = vpop.f32.mrf.mxu0
  %v3716 = vadd.f32 0.0, %v3715
  %v3717 = vpop.f32.mrf.mxu0
  %v3718 = vpop.f32.mrf.mxu0
  %v3719 = vadd.f32 0.0, %v3718
  %v3720 = vpop.f32.mrf.mxu0
  %3721 = vmatprep.mubr.bf16.mxu0 0
  %3722 = vmatmul.mubr.bf16.gmra.mxu0 %v3626
  %v3723 = vpop.f32.mrf.mxu0
  %v3724 = vadd.f32 0.0, %v3723
  %v3725 = vpop.f32.mrf.mxu0
  %v3726 = vpop.f32.mrf.mxu0
  %v3727 = vadd.f32 0.0, %v3726
  %v3728 = vpop.f32.mrf.mxu0
  %3729 = vmatprep.mubr.bf16.mxu0 0
  %3730 = vmatmul.mubr.bf16.gmra.mxu0 %v3629
  %v3731 = vpop.f32.mrf.mxu0
  %v3732 = vadd.f32 0.0, %v3731
  %v3733 = vpop.f32.mrf.mxu0
  %v3734 = vpop.f32.mrf.mxu0
  %v3735 = vadd.f32 0.0, %v3734
  %v3736 = vpop.f32.mrf.mxu0
  %3737 = vmatprep.mubr.bf16.mxu0 0
  %3738 = vmatmul.mubr.bf16.gmra.mxu0 %v3632
  %v3739 = vpop.f32.mrf.mxu0
  %v3740 = vadd.f32 0.0, %v3739
  %v3741 = vpop.f32.mrf.mxu0
  %v3742 = vpop.f32.mrf.mxu0
  %v3743 = vadd.f32 0.0, %v3742
  %v3744 = vpop.f32.mrf.mxu0
  %3745 = vmatprep.mubr.bf16.mxu0 0
  %3746 = vmatmul.mubr.bf16.gmra.mxu0 %v3635
  %v3747 = vpop.f32.mrf.mxu0
  %v3748 = vadd.f32 0.0, %v3747
  %v3749 = vpop.f32.mrf.mxu0
  %v3750 = vpop.f32.mrf.mxu0
  %v3751 = vadd.f32 0.0, %v3750
  %v3752 = vpop.f32.mrf.mxu0
  %3753 = vmatprep.mubr.bf16.mxu0 0
  %3754 = vmatmul.mubr.bf16.gmra.mxu0 %v3638
  %v3755 = vpop.f32.mrf.mxu0
  %v3756 = vadd.f32 0.0, %v3755
  %v3757 = vpop.f32.mrf.mxu0
  %v3758 = vpop.f32.mrf.mxu0
  %v3759 = vadd.f32 0.0, %v3758
  %v3760 = vpop.f32.mrf.mxu0
  %3761 = vmatprep.mubr.bf16.mxu0 0
  %3762 = vmatmul.mubr.bf16.gmra.mxu0 %v3641
  %v3763 = vpop.f32.mrf.mxu0
  %v3764 = vadd.f32 0.0, %v3763
  %v3765 = vpop.f32.mrf.mxu0
  %v3766 = vpop.f32.mrf.mxu0
  %v3767 = vadd.f32 0.0, %v3766
  %v3768 = vpop.f32.mrf.mxu0
  %3769 = vmatprep.mubr.bf16.mxu0 0
  %3770 = vmatmul.mubr.bf16.gmra.mxu0 %v3644
  %v3771 = vpop.f32.mrf.mxu0
  %v3772 = vadd.f32 0.0, %v3771
  %v3773 = vpop.f32.mrf.mxu0
  %v3774 = vpop.f32.mrf.mxu0
  %v3775 = vadd.f32 0.0, %v3774
  %v3776 = vpop.f32.mrf.mxu0
  %3777 = vmatprep.mubr.bf16.mxu0 0
  %3778 = vmatmul.mubr.bf16.gmra.mxu0 %v3647
  %v3779 = vpop.f32.mrf.mxu0
  %v3780 = vadd.f32 0.0, %v3779
  %v3781 = vpop.f32.mrf.mxu0
  %v3782 = vpop.f32.mrf.mxu0
  %v3783 = vpop.f32.mrf.mxu0
  %3784 = vdwg.mxu0
  %v3785 = vadd.f32 %v3684, %v3687
  %v3786 = vadd.f32 %v3785, %v3692
  %v3787 = vadd.f32 %v3786, %v3695
  %v3788 = vadd.f32 %v3787, %v3700
  %v3789 = vadd.f32 %v3788, %v3703
  %v3790 = vadd.f32 %v3789, %v3708
  %v3791 = vadd.f32 %v3790, %v3711
  %v3792 = vadd.f32 %v3791, %v3716
  %v3793 = vadd.f32 %v3792, %v3719
  %v3794 = vadd.f32 %v3793, %v3724
  %v3795 = vadd.f32 %v3794, %v3727
  %v3796 = vadd.f32 %v3795, %v3732
  %v3797 = vadd.f32 %v3796, %v3735
  %v3798 = vadd.f32 %v3797, %v3740
  %v3799 = vadd.f32 %v3798, %v3743
  %v3800 = vadd.f32 %v3799, %v3748
  %v3801 = vadd.f32 %v3800, %v3751
  %v3802 = vadd.f32 %v3801, %v3756
  %v3803 = vadd.f32 %v3802, %v3759
  %v3804 = vadd.f32 %v3803, %v3764
  %v3805 = vadd.f32 %v3804, %v3767
  %v3806 = vadd.f32 %v3805, %v3772
  %v3807 = vadd.f32 %v3806, %v3775
  %v3808 = vadd.f32 %v3807, %v3780
  %v3809 = vrot.slane %v3808, 4
  %v3810 = vadd.f32 %v3808, %v3809
  %v3811 = vrot.slane %v3810, 2
  %v3812 = vadd.f32 %v3810, %v3811
  %v3813 = vrot.slane %v3812, 1
  %v3814 = vadd.f32 %v3812, %v3813
  %v3815 = vmul.f32 %v3814, %v297
  %v3816 = vsub.f32 %v3684, %v3815
  %v3817 = vsub.f32 %v3687, %v3815
  %v3818 = vsub.f32 %v3692, %v3815
  %v3819 = vsub.f32 %v3695, %v3815
  %v3820 = vsub.f32 %v3700, %v3815
  %v3821 = vsub.f32 %v3703, %v3815
  %v3822 = vsub.f32 %v3708, %v3815
  %v3823 = vsub.f32 %v3711, %v3815
  %v3824 = vsub.f32 %v3716, %v3815
  %v3825 = vsub.f32 %v3719, %v3815
  %v3826 = vsub.f32 %v3724, %v3815
  %v3827 = vsub.f32 %v3727, %v3815
  %v3828 = vsub.f32 %v3732, %v3815
  %v3829 = vsub.f32 %v3735, %v3815
  %v3830 = vsub.f32 %v3740, %v3815
  %v3831 = vsub.f32 %v3743, %v3815
  %v3832 = vsub.f32 %v3748, %v3815
  %v3833 = vsub.f32 %v3751, %v3815
  %v3834 = vsub.f32 %v3756, %v3815
  %v3835 = vsub.f32 %v3759, %v3815
  %v3836 = vsub.f32 %v3764, %v3815
  %v3837 = vsub.f32 %v3767, %v3815
  %v3838 = vsub.f32 %v3772, %v3815
  %v3839 = vsub.f32 %v3775, %v3815
  %v3840 = vsub.f32 %v3780, %v3815
  %v3841 = vmul.f32 %v3816, %v3816
  %v3842 = vmul.f32 %v3817, %v3817
  %v3843 = vmul.f32 %v3818, %v3818
  %v3844 = vmul.f32 %v3819, %v3819
  %v3845 = vmul.f32 %v3820, %v3820
  %v3846 = vmul.f32 %v3821, %v3821
  %v3847 = vmul.f32 %v3822, %v3822
  %v3848 = vmul.f32 %v3823, %v3823
  %v3849 = vmul.f32 %v3824, %v3824
  %v3850 = vmul.f32 %v3825, %v3825
  %v3851 = vmul.f32 %v3826, %v3826
  %v3852 = vmul.f32 %v3827, %v3827
  %v3853 = vmul.f32 %v3828, %v3828
  %v3854 = vmul.f32 %v3829, %v3829
  %v3855 = vmul.f32 %v3830, %v3830
  %v3856 = vmul.f32 %v3831, %v3831
  %v3857 = vmul.f32 %v3832, %v3832
  %v3858 = vmul.f32 %v3833, %v3833
  %v3859 = vmul.f32 %v3834, %v3834
  %v3860 = vmul.f32 %v3835, %v3835
  %v3861 = vmul.f32 %v3836, %v3836
  %v3862 = vmul.f32 %v3837, %v3837
  %v3863 = vmul.f32 %v3838, %v3838
  %v3864 = vmul.f32 %v3839, %v3839
  %v3865 = vmul.f32 %v3840, %v3840
  %v3866 = vadd.f32 %v3841, %v3842
  %v3867 = vadd.f32 %v3866, %v3843
  %v3868 = vadd.f32 %v3867, %v3844
  %v3869 = vadd.f32 %v3868, %v3845
  %v3870 = vadd.f32 %v3869, %v3846
  %v3871 = vadd.f32 %v3870, %v3847
  %v3872 = vadd.f32 %v3871, %v3848
  %v3873 = vadd.f32 %v3872, %v3849
  %v3874 = vadd.f32 %v3873, %v3850
  %v3875 = vadd.f32 %v3874, %v3851
  %v3876 = vadd.f32 %v3875, %v3852
  %v3877 = vadd.f32 %v3876, %v3853
  %v3878 = vadd.f32 %v3877, %v3854
  %v3879 = vadd.f32 %v3878, %v3855
  %v3880 = vadd.f32 %v3879, %v3856
  %v3881 = vadd.f32 %v3880, %v3857
  %v3882 = vadd.f32 %v3881, %v3858
  %v3883 = vadd.f32 %v3882, %v3859
  %v3884 = vadd.f32 %v3883, %v3860
  %v3885 = vadd.f32 %v3884, %v3861
  %v3886 = vadd.f32 %v3885, %v3862
  %v3887 = vadd.f32 %v3886, %v3863
  %v3888 = vadd.f32 %v3887, %v3864
  %v3889 = vadd.f32 %v3888, %v3865
  %v3890 = vrot.slane %v3889, 4
  %v3891 = vadd.f32 %v3889, %v3890
  %v3892 = vrot.slane %v3891, 2
  %v3893 = vadd.f32 %v3891, %v3892
  %v3894 = vrot.slane %v3893, 1
  %v3895 = vadd.f32 %v3893, %v3894
  %v3896 = vmul.f32 %v3895, %v297
  %v3897 = vadd.f32 %v3896, 1e-05
  %v3898 = vrsqrt.pop %v3897
  %v3899 = vmul.f32 %v3816, %v3898
  %v3900 = vmul.f32 %v3817, %v3898
  %v3901 = vmul.f32 %v3818, %v3898
  %v3902 = vmul.f32 %v3819, %v3898
  %v3903 = vmul.f32 %v3820, %v3898
  %v3904 = vmul.f32 %v3821, %v3898
  %v3905 = vmul.f32 %v3822, %v3898
  %v3906 = vmul.f32 %v3823, %v3898
  %v3907 = vmul.f32 %v3824, %v3898
  %v3908 = vmul.f32 %v3825, %v3898
  %v3909 = vmul.f32 %v3826, %v3898
  %v3910 = vmul.f32 %v3827, %v3898
  %v3911 = vmul.f32 %v3828, %v3898
  %v3912 = vmul.f32 %v3829, %v3898
  %v3913 = vmul.f32 %v3830, %v3898
  %v3914 = vmul.f32 %v3831, %v3898
  %v3915 = vmul.f32 %v3832, %v3898
  %v3916 = vmul.f32 %v3833, %v3898
  %v3917 = vmul.f32 %v3834, %v3898
  %v3918 = vmul.f32 %v3835, %v3898
  %v3919 = vmul.f32 %v3836, %v3898
  %v3920 = vmul.f32 %v3837, %v3898
  %v3921 = vmul.f32 %v3838, %v3898
  %v3922 = vmul.f32 %v3839, %v3898
  %v3923 = vmul.f32 %v3840, %v3898
  %v3924 = vld [vmem:[%s2 + $0x5] sm:$0x1]
  %v3925 = vlaneseq
  %v3926 = vshrl.u32 %v3925, 7
  %v3927 = vsub.s32 0, %v3926
  %v3928 = vrot.slane %v3924, %v3927
  %v3929 = vmul.f32 %v3899, %v3928
  %v3930 = vmul.f32 %v3900, %v3928
  %v3931 = vmul.f32 %v3901, %v3928
  %v3932 = vmul.f32 %v3902, %v3928
  %v3933 = vmul.f32 %v3903, %v3928
  %v3934 = vmul.f32 %v3904, %v3928
  %v3935 = vmul.f32 %v3905, %v3928
  %v3936 = vmul.f32 %v3906, %v3928
  %v3937 = vmul.f32 %v3907, %v3928
  %v3938 = vmul.f32 %v3908, %v3928
  %v3939 = vmul.f32 %v3909, %v3928
  %v3940 = vmul.f32 %v3910, %v3928
  %v3941 = vmul.f32 %v3911, %v3928
  %v3942 = vmul.f32 %v3912, %v3928
  %v3943 = vmul.f32 %v3913, %v3928
  %v3944 = vmul.f32 %v3914, %v3928
  %v3945 = vmul.f32 %v3915, %v3928
  %v3946 = vmul.f32 %v3916, %v3928
  %v3947 = vmul.f32 %v3917, %v3928
  %v3948 = vmul.f32 %v3918, %v3928
  %v3949 = vmul.f32 %v3919, %v3928
  %v3950 = vmul.f32 %v3920, %v3928
  %v3951 = vmul.f32 %v3921, %v3928
  %v3952 = vmul.f32 %v3922, %v3928
  %v3953 = vmul.f32 %v3923, %v3928
  %v3954 = vld [vmem:[%s3 + $0x5] sm:$0x1]
  %v3955 = vlaneseq
  %v3956 = vshrl.u32 %v3955, 7
  %v3957 = vsub.s32 0, %v3956
  %v3958 = vrot.slane %v3954, %v3957
  %v3959 = vadd.f32 %v3929, %v3958
  %v3960 = vadd.f32 %v3930, %v3958
  %v3961 = vadd.f32 %v3931, %v3958
  %v3962 = vadd.f32 %v3932, %v3958
  %v3963 = vadd.f32 %v3933, %v3958
  %v3964 = vadd.f32 %v3934, %v3958
  %v3965 = vadd.f32 %v3935, %v3958
  %v3966 = vadd.f32 %v3936, %v3958
  %v3967 = vadd.f32 %v3937, %v3958
  %v3968 = vadd.f32 %v3938, %v3958
  %v3969 = vadd.f32 %v3939, %v3958
  %v3970 = vadd.f32 %v3940, %v3958
  %v3971 = vadd.f32 %v3941, %v3958
  %v3972 = vadd.f32 %v3942, %v3958
  %v3973 = vadd.f32 %v3943, %v3958
  %v3974 = vadd.f32 %v3944, %v3958
  %v3975 = vadd.f32 %v3945, %v3958
  %v3976 = vadd.f32 %v3946, %v3958
  %v3977 = vadd.f32 %v3947, %v3958
  %v3978 = vadd.f32 %v3948, %v3958
  %v3979 = vadd.f32 %v3949, %v3958
  %v3980 = vadd.f32 %v3950, %v3958
  %v3981 = vadd.f32 %v3951, %v3958
  %v3982 = vadd.f32 %v3952, %v3958
  %v3983 = vadd.f32 %v3953, %v3958
  %v3984 = vmax.f32 %v3959, 0.0
  %v3985 = vmax.f32 %v3960, 0.0
  %v3986 = vmax.f32 %v3961, 0.0
  %v3987 = vmax.f32 %v3962, 0.0
  %v3988 = vmax.f32 %v3963, 0.0
  %v3989 = vmax.f32 %v3964, 0.0
  %v3990 = vmax.f32 %v3965, 0.0
  %v3991 = vmax.f32 %v3966, 0.0
  %v3992 = vmax.f32 %v3967, 0.0
  %v3993 = vmax.f32 %v3968, 0.0
  %v3994 = vmax.f32 %v3969, 0.0
  %v3995 = vmax.f32 %v3970, 0.0
  %v3996 = vmax.f32 %v3971, 0.0
  %v3997 = vmax.f32 %v3972, 0.0
  %v3998 = vmax.f32 %v3973, 0.0
  %v3999 = vmax.f32 %v3974, 0.0
  %v4000 = vmax.f32 %v3975, 0.0
  %v4001 = vmax.f32 %v3976, 0.0
  %v4002 = vmax.f32 %v3977, 0.0
  %v4003 = vmax.f32 %v3978, 0.0
  %v4004 = vmax.f32 %v3979, 0.0
  %v4005 = vmax.f32 %v3980, 0.0
  %v4006 = vmax.f32 %v3981, 0.0
  %v4007 = vmax.f32 %v3982, 0.0
  %v4008 = vmax.f32 %v3983, 0.0
  %s4009 = scalar_lea.vmem %s4, 500
  %v4010 = vld [vmem:[%s4009] sm:$0xf]
  %v4011 = vld [vmem:[%s4009 + $0x4] sm:$0xf]
  %v4012 = vld [vmem:[%s4009 + $0x8] sm:$0xf]
  %v4013 = vld [vmem:[%s4009 + $0xc] sm:$0xf]
  %v4014 = vld [vmem:[%s4009 + $0x10] sm:$0xf]
  %v4015 = vld [vmem:[%s4009 + $0x14] sm:$0xf]
  %v4016 = vld [vmem:[%s4009 + $0x18] sm:$0xf]
  %v4017 = vld [vmem:[%s4009 + $0x1c] sm:$0xf]
  %v4018 = vld [vmem:[%s4009 + $0x20] sm:$0xf]
  %v4019 = vld [vmem:[%s4009 + $0x24] sm:$0xf]
  %v4020 = vld [vmem:[%s4009 + $0x28] sm:$0xf]
  %v4021 = vld [vmem:[%s4009 + $0x2c] sm:$0xf]
  %v4022 = vld [vmem:[%s4009 + $0x30] sm:$0xf]
  %v4023 = vld [vmem:[%s4009 + $0x34] sm:$0xf]
  %v4024 = vld [vmem:[%s4009 + $0x38] sm:$0xf]
  %v4025 = vld [vmem:[%s4009 + $0x3c] sm:$0xf]
  %v4026 = vld [vmem:[%s4009 + $0x40] sm:$0xf]
  %v4027 = vld [vmem:[%s4009 + $0x44] sm:$0xf]
  %v4028 = vld [vmem:[%s4009 + $0x48] sm:$0xf]
  %v4029 = vld [vmem:[%s4009 + $0x4c] sm:$0xf]
  %v4030 = vld [vmem:[%s4009 + $0x50] sm:$0xf]
  %v4031 = vld [vmem:[%s4009 + $0x54] sm:$0xf]
  %v4032 = vld [vmem:[%s4009 + $0x58] sm:$0xf]
  %v4033 = vld [vmem:[%s4009 + $0x5c] sm:$0xf]
  %v4034 = vld [vmem:[%s4009 + $0x60] sm:$0xf]
  %v4035 = vunpack.c.l.bf16 %v4010
  %v4036 = vunpack.c.l.bf16 %v4011
  %v4037 = vunpack.c.l.bf16 %v4012
  %v4038 = vunpack.c.l.bf16 %v4013
  %v4039 = vunpack.c.l.bf16 %v4014
  %v4040 = vunpack.c.l.bf16 %v4015
  %v4041 = vunpack.c.l.bf16 %v4016
  %v4042 = vunpack.c.l.bf16 %v4017
  %v4043 = vunpack.c.l.bf16 %v4018
  %v4044 = vunpack.c.l.bf16 %v4019
  %v4045 = vunpack.c.l.bf16 %v4020
  %v4046 = vunpack.c.l.bf16 %v4021
  %v4047 = vunpack.c.l.bf16 %v4022
  %v4048 = vunpack.c.l.bf16 %v4023
  %v4049 = vunpack.c.l.bf16 %v4024
  %v4050 = vunpack.c.l.bf16 %v4025
  %v4051 = vunpack.c.l.bf16 %v4026
  %v4052 = vunpack.c.l.bf16 %v4027
  %v4053 = vunpack.c.l.bf16 %v4028
  %v4054 = vunpack.c.l.bf16 %v4029
  %v4055 = vunpack.c.l.bf16 %v4030
  %v4056 = vunpack.c.l.bf16 %v4031
  %v4057 = vunpack.c.l.bf16 %v4032
  %v4058 = vunpack.c.l.bf16 %v4033
  %v4059 = vunpack.c.l.bf16 %v4034
  %v4060 = vmul.f32 %v3984, %v4035
  %v4061 = vmul.f32 %v3985, %v4036
  %v4062 = vmul.f32 %v3986, %v4037
  %v4063 = vmul.f32 %v3987, %v4038
  %v4064 = vmul.f32 %v3988, %v4039
  %v4065 = vmul.f32 %v3989, %v4040
  %v4066 = vmul.f32 %v3990, %v4041
  %v4067 = vmul.f32 %v3991, %v4042
  %v4068 = vmul.f32 %v3992, %v4043
  %v4069 = vmul.f32 %v3993, %v4044
  %v4070 = vmul.f32 %v3994, %v4045
  %v4071 = vmul.f32 %v3995, %v4046
  %v4072 = vmul.f32 %v3996, %v4047
  %v4073 = vmul.f32 %v3997, %v4048
  %v4074 = vmul.f32 %v3998, %v4049
  %v4075 = vmul.f32 %v3999, %v4050
  %v4076 = vmul.f32 %v4000, %v4051
  %v4077 = vmul.f32 %v4001, %v4052
  %v4078 = vmul.f32 %v4002, %v4053
  %v4079 = vmul.f32 %v4003, %v4054
  %v4080 = vmul.f32 %v4004, %v4055
  %v4081 = vmul.f32 %v4005, %v4056
  %v4082 = vmul.f32 %v4006, %v4057
  %v4083 = vmul.f32 %v4007, %v4058
  %v4084 = vmul.f32 %v4008, %v4059
  %v4085 = vld [vmem:[%s1 + $0xa8] sm:$0xf]
  %v4086 = vld [vmem:[%s1 + $0xac] sm:$0xf]
  %v4087 = vpack.c.bf16 %v4061, %v4060
  %v4088 = vpack.c.bf16 %v4063, %v4062
  %v4089 = vpack.c.bf16 %v4065, %v4064
  %v4090 = vpack.c.bf16 %v4067, %v4066
  %v4091 = vpack.c.bf16 %v4069, %v4068
  %v4092 = vpack.c.bf16 %v4071, %v4070
  %v4093 = vpack.c.bf16 %v4073, %v4072
  %v4094 = vpack.c.bf16 %v4075, %v4074
  %v4095 = vpack.c.bf16 %v4077, %v4076
  %v4096 = vpack.c.bf16 %v4079, %v4078
  %v4097 = vpack.c.bf16 %v4081, %v4080
  %v4098 = vpack.c.bf16 %v4083, %v4082
  %v4099 = vpack.c.bf16 %v4084, %v4084
  %v4102 = vunpack.c.l.b16 %v4085
  %v4103 = vunpack.c.l.b16 %v4086
  %v4104 = vpack.c.b16 %v4103, %v4102
  %v4107 = vsel %vm2225, %v4087, 0
  %v4110 = vsel %vm2225, %v4088, 0
  %v4113 = vsel %vm2225, %v4089, 0
  %v4116 = vsel %vm2225, %v4090, 0
  %v4119 = vsel %vm2225, %v4091, 0
  %v4122 = vsel %vm2225, %v4092, 0
  %v4125 = vsel %vm2225, %v4093, 0
  %v4128 = vsel %vm2225, %v4094, 0
  %v4131 = vsel %vm2225, %v4095, 0
  %v4134 = vsel %vm2225, %v4096, 0
  %v4137 = vsel %vm2225, %v4097, 0
  %v4140 = vsel %vm2225, %v4098, 0
  %v4143 = vsel %vm2225, %v4099, 0
  %4145 = vmatprep.subr.bf16.mxu0 0
  %4146 = vmatpush1.bf16.msra.mxu0 0
  %4147 = vmatprep.subr.bf16.mxu0 0
  %4148 = vmatpush1.bf16.msra.mxu0 0
  %4149 = vmatprep.subr.bf16.mxu0 0
  %4150 = vmatpush1.bf16.msra.mxu0 0
  %4151 = vmatprep.subr.bf16.mxu0 0
  %4152 = vmatpush1.bf16.msra.mxu0 0
  %4153 = vmatprep.subr.bf16.mxu0 0
  %4154 = vmatpush1.bf16.msra.mxu0 0
  %4155 = vmatprep.subr.bf16.mxu0 0
  %4156 = vmatpush1.bf16.msra.mxu0 0
  %4157 = vmatprep.subr.bf16.mxu0 0
  %4158 = vmatpush1.bf16.msra.mxu0 0
  %4159 = vmatprep.subr.bf16.mxu0 0
  %4160 = vmatpush1.bf16.msra.mxu0 %v4104
  %4161 = vmatprep.subr.bf16.mxu0 0
  %4162 = vmatpush2.bf16.msra.mxu0 0
  %4163 = vmatprep.subr.bf16.mxu0 0
  %4164 = vmatpush2.bf16.msra.mxu0 0
  %4165 = vmatprep.subr.bf16.mxu0 0
  %4166 = vmatpush2.bf16.msra.mxu0 0
  %4167 = vmatprep.subr.bf16.mxu0 0
  %4168 = vmatpush2.bf16.msra.mxu0 0
  %4169 = vmatprep.subr.bf16.mxu0 0
  %4170 = vmatpush2.bf16.msra.mxu0 0
  %4171 = vmatprep.subr.bf16.mxu0 0
  %4172 = vmatpush2.bf16.msra.mxu0 0
  %4173 = vmatprep.subr.bf16.mxu0 0
  %4174 = vmatpush2.bf16.msra.mxu0 0
  %4175 = vmatprep.subr.bf16.mxu0 0
  %4176 = vmatpush2.bf16.msra.mxu0 0
  %4177 = vmatprep.mubr.bf16.mxu0 0
  %4178 = vmatmul.mubr.bf16.gmra.mxu0 %v4107
  %v4179 = vpop.f32.mrf.mxu0
  %v4180 = vadd.f32 0.0, %v4179
  %v4181 = vpop.f32.mrf.mxu0
  %v4182 = vpop.f32.mrf.mxu0
  %v4183 = vadd.f32 0.0, %v4182
  %v4184 = vpop.f32.mrf.mxu0
  %4185 = vmatprep.mubr.bf16.mxu0 0
  %4186 = vmatmul.mubr.bf16.gmra.mxu0 %v4110
  %v4187 = vpop.f32.mrf.mxu0
  %v4188 = vadd.f32 0.0, %v4187
  %v4189 = vpop.f32.mrf.mxu0
  %v4190 = vpop.f32.mrf.mxu0
  %v4191 = vadd.f32 0.0, %v4190
  %v4192 = vpop.f32.mrf.mxu0
  %4193 = vmatprep.mubr.bf16.mxu0 0
  %4194 = vmatmul.mubr.bf16.gmra.mxu0 %v4113
  %v4195 = vpop.f32.mrf.mxu0
  %v4196 = vadd.f32 0.0, %v4195
  %v4197 = vpop.f32.mrf.mxu0
  %v4198 = vpop.f32.mrf.mxu0
  %v4199 = vadd.f32 0.0, %v4198
  %v4200 = vpop.f32.mrf.mxu0
  %4201 = vmatprep.mubr.bf16.mxu0 0
  %4202 = vmatmul.mubr.bf16.gmra.mxu0 %v4116
  %v4203 = vpop.f32.mrf.mxu0
  %v4204 = vadd.f32 0.0, %v4203
  %v4205 = vpop.f32.mrf.mxu0
  %v4206 = vpop.f32.mrf.mxu0
  %v4207 = vadd.f32 0.0, %v4206
  %v4208 = vpop.f32.mrf.mxu0
  %4209 = vmatprep.mubr.bf16.mxu0 0
  %4210 = vmatmul.mubr.bf16.gmra.mxu0 %v4119
  %v4211 = vpop.f32.mrf.mxu0
  %v4212 = vadd.f32 0.0, %v4211
  %v4213 = vpop.f32.mrf.mxu0
  %v4214 = vpop.f32.mrf.mxu0
  %v4215 = vadd.f32 0.0, %v4214
  %v4216 = vpop.f32.mrf.mxu0
  %4217 = vmatprep.mubr.bf16.mxu0 0
  %4218 = vmatmul.mubr.bf16.gmra.mxu0 %v4122
  %v4219 = vpop.f32.mrf.mxu0
  %v4220 = vadd.f32 0.0, %v4219
  %v4221 = vpop.f32.mrf.mxu0
  %v4222 = vpop.f32.mrf.mxu0
  %v4223 = vadd.f32 0.0, %v4222
  %v4224 = vpop.f32.mrf.mxu0
  %4225 = vmatprep.mubr.bf16.mxu0 0
  %4226 = vmatmul.mubr.bf16.gmra.mxu0 %v4125
  %v4227 = vpop.f32.mrf.mxu0
  %v4228 = vadd.f32 0.0, %v4227
  %v4229 = vpop.f32.mrf.mxu0
  %v4230 = vpop.f32.mrf.mxu0
  %v4231 = vadd.f32 0.0, %v4230
  %v4232 = vpop.f32.mrf.mxu0
  %4233 = vmatprep.mubr.bf16.mxu0 0
  %4234 = vmatmul.mubr.bf16.gmra.mxu0 %v4128
  %v4235 = vpop.f32.mrf.mxu0
  %v4236 = vadd.f32 0.0, %v4235
  %v4237 = vpop.f32.mrf.mxu0
  %v4238 = vpop.f32.mrf.mxu0
  %v4239 = vadd.f32 0.0, %v4238
  %v4240 = vpop.f32.mrf.mxu0
  %4241 = vmatprep.mubr.bf16.mxu0 0
  %4242 = vmatmul.mubr.bf16.gmra.mxu0 %v4131
  %v4243 = vpop.f32.mrf.mxu0
  %v4244 = vadd.f32 0.0, %v4243
  %v4245 = vpop.f32.mrf.mxu0
  %v4246 = vpop.f32.mrf.mxu0
  %v4247 = vadd.f32 0.0, %v4246
  %v4248 = vpop.f32.mrf.mxu0
  %4249 = vmatprep.mubr.bf16.mxu0 0
  %4250 = vmatmul.mubr.bf16.gmra.mxu0 %v4134
  %v4251 = vpop.f32.mrf.mxu0
  %v4252 = vadd.f32 0.0, %v4251
  %v4253 = vpop.f32.mrf.mxu0
  %v4254 = vpop.f32.mrf.mxu0
  %v4255 = vadd.f32 0.0, %v4254
  %v4256 = vpop.f32.mrf.mxu0
  %4257 = vmatprep.mubr.bf16.mxu0 0
  %4258 = vmatmul.mubr.bf16.gmra.mxu0 %v4137
  %v4259 = vpop.f32.mrf.mxu0
  %v4260 = vadd.f32 0.0, %v4259
  %v4261 = vpop.f32.mrf.mxu0
  %v4262 = vpop.f32.mrf.mxu0
  %v4263 = vadd.f32 0.0, %v4262
  %v4264 = vpop.f32.mrf.mxu0
  %4265 = vmatprep.mubr.bf16.mxu0 0
  %4266 = vmatmul.mubr.bf16.gmra.mxu0 %v4140
  %v4267 = vpop.f32.mrf.mxu0
  %v4268 = vadd.f32 0.0, %v4267
  %v4269 = vpop.f32.mrf.mxu0
  %v4270 = vpop.f32.mrf.mxu0
  %v4271 = vadd.f32 0.0, %v4270
  %v4272 = vpop.f32.mrf.mxu0
  %4273 = vmatprep.mubr.bf16.mxu0 0
  %4274 = vmatmul.mubr.bf16.gmra.mxu0 %v4143
  %v4275 = vpop.f32.mrf.mxu0
  %v4276 = vadd.f32 0.0, %v4275
  %v4277 = vpop.f32.mrf.mxu0
  %v4278 = vpop.f32.mrf.mxu0
  %v4279 = vpop.f32.mrf.mxu0
  %4280 = vdwg.mxu0
  %v4281 = vld [vmem:[%s1 + $0xb0] sm:$0xf]
  %v4282 = vld [vmem:[%s1 + $0xb4] sm:$0xf]
  %v4283 = vpack.c.bf16 %v4183, %v4180
  %v4284 = vpack.c.bf16 %v4191, %v4188
  %v4285 = vpack.c.bf16 %v4199, %v4196
  %v4286 = vpack.c.bf16 %v4207, %v4204
  %v4287 = vpack.c.bf16 %v4215, %v4212
  %v4288 = vpack.c.bf16 %v4223, %v4220
  %v4289 = vpack.c.bf16 %v4231, %v4228
  %v4290 = vpack.c.bf16 %v4239, %v4236
  %v4291 = vpack.c.bf16 %v4247, %v4244
  %v4292 = vpack.c.bf16 %v4255, %v4252
  %v4293 = vpack.c.bf16 %v4263, %v4260
  %v4294 = vpack.c.bf16 %v4271, %v4268
  %v4295 = vpack.c.bf16 %v4276, %v4276
  %v4298 = vunpack.c.l.b16 %v4281
  %v4299 = vunpack.c.l.b16 %v4282
  %v4300 = vpack.c.b16 %v4299, %v4298
  %v4303 = vsel %vm2225, %v4283, 0
  %v4306 = vsel %vm2225, %v4284, 0
  %v4309 = vsel %vm2225, %v4285, 0
  %v4312 = vsel %vm2225, %v4286, 0
  %v4315 = vsel %vm2225, %v4287, 0
  %v4318 = vsel %vm2225, %v4288, 0
  %v4321 = vsel %vm2225, %v4289, 0
  %v4324 = vsel %vm2225, %v4290, 0
  %v4327 = vsel %vm2225, %v4291, 0
  %v4330 = vsel %vm2225, %v4292, 0
  %v4333 = vsel %vm2225, %v4293, 0
  %v4336 = vsel %vm2225, %v4294, 0
  %v4339 = vsel %vm2225, %v4295, 0
  %4341 = vmatprep.subr.bf16.mxu0 0
  %4342 = vmatpush1.bf16.msra.mxu0 0
  %4343 = vmatprep.subr.bf16.mxu0 0
  %4344 = vmatpush1.bf16.msra.mxu0 0
  %4345 = vmatprep.subr.bf16.mxu0 0
  %4346 = vmatpush1.bf16.msra.mxu0 0
  %4347 = vmatprep.subr.bf16.mxu0 0
  %4348 = vmatpush1.bf16.msra.mxu0 0
  %4349 = vmatprep.subr.bf16.mxu0 0
  %4350 = vmatpush1.bf16.msra.mxu0 0
  %4351 = vmatprep.subr.bf16.mxu0 0
  %4352 = vmatpush1.bf16.msra.mxu0 0
  %4353 = vmatprep.subr.bf16.mxu0 0
  %4354 = vmatpush1.bf16.msra.mxu0 0
  %4355 = vmatprep.subr.bf16.mxu0 0
  %4356 = vmatpush1.bf16.msra.mxu0 %v4300
  %4357 = vmatprep.subr.bf16.mxu0 0
  %4358 = vmatpush2.bf16.msra.mxu0 0
  %4359 = vmatprep.subr.bf16.mxu0 0
  %4360 = vmatpush2.bf16.msra.mxu0 0
  %4361 = vmatprep.subr.bf16.mxu0 0
  %4362 = vmatpush2.bf16.msra.mxu0 0
  %4363 = vmatprep.subr.bf16.mxu0 0
  %4364 = vmatpush2.bf16.msra.mxu0 0
  %4365 = vmatprep.subr.bf16.mxu0 0
  %4366 = vmatpush2.bf16.msra.mxu0 0
  %4367 = vmatprep.subr.bf16.mxu0 0
  %4368 = vmatpush2.bf16.msra.mxu0 0
  %4369 = vmatprep.subr.bf16.mxu0 0
  %4370 = vmatpush2.bf16.msra.mxu0 0
  %4371 = vmatprep.subr.bf16.mxu0 0
  %4372 = vmatpush2.bf16.msra.mxu0 0
  %4373 = vmatprep.mubr.bf16.mxu0 0
  %4374 = vmatmul.mubr.bf16.gmra.mxu0 %v4303
  %v4375 = vpop.f32.mrf.mxu0
  %v4376 = vadd.f32 0.0, %v4375
  %v4377 = vpop.f32.mrf.mxu0
  %v4378 = vpop.f32.mrf.mxu0
  %v4379 = vadd.f32 0.0, %v4378
  %v4380 = vpop.f32.mrf.mxu0
  %4381 = vmatprep.mubr.bf16.mxu0 0
  %4382 = vmatmul.mubr.bf16.gmra.mxu0 %v4306
  %v4383 = vpop.f32.mrf.mxu0
  %v4384 = vadd.f32 0.0, %v4383
  %v4385 = vpop.f32.mrf.mxu0
  %v4386 = vpop.f32.mrf.mxu0
  %v4387 = vadd.f32 0.0, %v4386
  %v4388 = vpop.f32.mrf.mxu0
  %4389 = vmatprep.mubr.bf16.mxu0 0
  %4390 = vmatmul.mubr.bf16.gmra.mxu0 %v4309
  %v4391 = vpop.f32.mrf.mxu0
  %v4392 = vadd.f32 0.0, %v4391
  %v4393 = vpop.f32.mrf.mxu0
  %v4394 = vpop.f32.mrf.mxu0
  %v4395 = vadd.f32 0.0, %v4394
  %v4396 = vpop.f32.mrf.mxu0
  %4397 = vmatprep.mubr.bf16.mxu0 0
  %4398 = vmatmul.mubr.bf16.gmra.mxu0 %v4312
  %v4399 = vpop.f32.mrf.mxu0
  %v4400 = vadd.f32 0.0, %v4399
  %v4401 = vpop.f32.mrf.mxu0
  %v4402 = vpop.f32.mrf.mxu0
  %v4403 = vadd.f32 0.0, %v4402
  %v4404 = vpop.f32.mrf.mxu0
  %4405 = vmatprep.mubr.bf16.mxu0 0
  %4406 = vmatmul.mubr.bf16.gmra.mxu0 %v4315
  %v4407 = vpop.f32.mrf.mxu0
  %v4408 = vadd.f32 0.0, %v4407
  %v4409 = vpop.f32.mrf.mxu0
  %v4410 = vpop.f32.mrf.mxu0
  %v4411 = vadd.f32 0.0, %v4410
  %v4412 = vpop.f32.mrf.mxu0
  %4413 = vmatprep.mubr.bf16.mxu0 0
  %4414 = vmatmul.mubr.bf16.gmra.mxu0 %v4318
  %v4415 = vpop.f32.mrf.mxu0
  %v4416 = vadd.f32 0.0, %v4415
  %v4417 = vpop.f32.mrf.mxu0
  %v4418 = vpop.f32.mrf.mxu0
  %v4419 = vadd.f32 0.0, %v4418
  %v4420 = vpop.f32.mrf.mxu0
  %4421 = vmatprep.mubr.bf16.mxu0 0
  %4422 = vmatmul.mubr.bf16.gmra.mxu0 %v4321
  %v4423 = vpop.f32.mrf.mxu0
  %v4424 = vadd.f32 0.0, %v4423
  %v4425 = vpop.f32.mrf.mxu0
  %v4426 = vpop.f32.mrf.mxu0
  %v4427 = vadd.f32 0.0, %v4426
  %v4428 = vpop.f32.mrf.mxu0
  %4429 = vmatprep.mubr.bf16.mxu0 0
  %4430 = vmatmul.mubr.bf16.gmra.mxu0 %v4324
  %v4431 = vpop.f32.mrf.mxu0
  %v4432 = vadd.f32 0.0, %v4431
  %v4433 = vpop.f32.mrf.mxu0
  %v4434 = vpop.f32.mrf.mxu0
  %v4435 = vadd.f32 0.0, %v4434
  %v4436 = vpop.f32.mrf.mxu0
  %4437 = vmatprep.mubr.bf16.mxu0 0
  %4438 = vmatmul.mubr.bf16.gmra.mxu0 %v4327
  %v4439 = vpop.f32.mrf.mxu0
  %v4440 = vadd.f32 0.0, %v4439
  %v4441 = vpop.f32.mrf.mxu0
  %v4442 = vpop.f32.mrf.mxu0
  %v4443 = vadd.f32 0.0, %v4442
  %v4444 = vpop.f32.mrf.mxu0
  %4445 = vmatprep.mubr.bf16.mxu0 0
  %4446 = vmatmul.mubr.bf16.gmra.mxu0 %v4330
  %v4447 = vpop.f32.mrf.mxu0
  %v4448 = vadd.f32 0.0, %v4447
  %v4449 = vpop.f32.mrf.mxu0
  %v4450 = vpop.f32.mrf.mxu0
  %v4451 = vadd.f32 0.0, %v4450
  %v4452 = vpop.f32.mrf.mxu0
  %4453 = vmatprep.mubr.bf16.mxu0 0
  %4454 = vmatmul.mubr.bf16.gmra.mxu0 %v4333
  %v4455 = vpop.f32.mrf.mxu0
  %v4456 = vadd.f32 0.0, %v4455
  %v4457 = vpop.f32.mrf.mxu0
  %v4458 = vpop.f32.mrf.mxu0
  %v4459 = vadd.f32 0.0, %v4458
  %v4460 = vpop.f32.mrf.mxu0
  %4461 = vmatprep.mubr.bf16.mxu0 0
  %4462 = vmatmul.mubr.bf16.gmra.mxu0 %v4336
  %v4463 = vpop.f32.mrf.mxu0
  %v4464 = vadd.f32 0.0, %v4463
  %v4465 = vpop.f32.mrf.mxu0
  %v4466 = vpop.f32.mrf.mxu0
  %v4467 = vadd.f32 0.0, %v4466
  %v4468 = vpop.f32.mrf.mxu0
  %4469 = vmatprep.mubr.bf16.mxu0 0
  %4470 = vmatmul.mubr.bf16.gmra.mxu0 %v4339
  %v4471 = vpop.f32.mrf.mxu0
  %v4472 = vadd.f32 0.0, %v4471
  %v4473 = vpop.f32.mrf.mxu0
  %v4474 = vpop.f32.mrf.mxu0
  %v4475 = vpop.f32.mrf.mxu0
  %4476 = vdwg.mxu0
  %v4477 = vadd.f32 %v4376, %v4379
  %v4478 = vadd.f32 %v4477, %v4384
  %v4479 = vadd.f32 %v4478, %v4387
  %v4480 = vadd.f32 %v4479, %v4392
  %v4481 = vadd.f32 %v4480, %v4395
  %v4482 = vadd.f32 %v4481, %v4400
  %v4483 = vadd.f32 %v4482, %v4403
  %v4484 = vadd.f32 %v4483, %v4408
  %v4485 = vadd.f32 %v4484, %v4411
  %v4486 = vadd.f32 %v4485, %v4416
  %v4487 = vadd.f32 %v4486, %v4419
  %v4488 = vadd.f32 %v4487, %v4424
  %v4489 = vadd.f32 %v4488, %v4427
  %v4490 = vadd.f32 %v4489, %v4432
  %v4491 = vadd.f32 %v4490, %v4435
  %v4492 = vadd.f32 %v4491, %v4440
  %v4493 = vadd.f32 %v4492, %v4443
  %v4494 = vadd.f32 %v4493, %v4448
  %v4495 = vadd.f32 %v4494, %v4451
  %v4496 = vadd.f32 %v4495, %v4456
  %v4497 = vadd.f32 %v4496, %v4459
  %v4498 = vadd.f32 %v4497, %v4464
  %v4499 = vadd.f32 %v4498, %v4467
  %v4500 = vadd.f32 %v4499, %v4472
  %v4501 = vrot.slane %v4500, 4
  %v4502 = vadd.f32 %v4500, %v4501
  %v4503 = vrot.slane %v4502, 2
  %v4504 = vadd.f32 %v4502, %v4503
  %v4505 = vrot.slane %v4504, 1
  %v4506 = vadd.f32 %v4504, %v4505
  %v4507 = vmul.f32 %v4506, %v297
  %v4508 = vsub.f32 %v4376, %v4507
  %v4509 = vsub.f32 %v4379, %v4507
  %v4510 = vsub.f32 %v4384, %v4507
  %v4511 = vsub.f32 %v4387, %v4507
  %v4512 = vsub.f32 %v4392, %v4507
  %v4513 = vsub.f32 %v4395, %v4507
  %v4514 = vsub.f32 %v4400, %v4507
  %v4515 = vsub.f32 %v4403, %v4507
  %v4516 = vsub.f32 %v4408, %v4507
  %v4517 = vsub.f32 %v4411, %v4507
  %v4518 = vsub.f32 %v4416, %v4507
  %v4519 = vsub.f32 %v4419, %v4507
  %v4520 = vsub.f32 %v4424, %v4507
  %v4521 = vsub.f32 %v4427, %v4507
  %v4522 = vsub.f32 %v4432, %v4507
  %v4523 = vsub.f32 %v4435, %v4507
  %v4524 = vsub.f32 %v4440, %v4507
  %v4525 = vsub.f32 %v4443, %v4507
  %v4526 = vsub.f32 %v4448, %v4507
  %v4527 = vsub.f32 %v4451, %v4507
  %v4528 = vsub.f32 %v4456, %v4507
  %v4529 = vsub.f32 %v4459, %v4507
  %v4530 = vsub.f32 %v4464, %v4507
  %v4531 = vsub.f32 %v4467, %v4507
  %v4532 = vsub.f32 %v4472, %v4507
  %v4533 = vmul.f32 %v4508, %v4508
  %v4534 = vmul.f32 %v4509, %v4509
  %v4535 = vmul.f32 %v4510, %v4510
  %v4536 = vmul.f32 %v4511, %v4511
  %v4537 = vmul.f32 %v4512, %v4512
  %v4538 = vmul.f32 %v4513, %v4513
  %v4539 = vmul.f32 %v4514, %v4514
  %v4540 = vmul.f32 %v4515, %v4515
  %v4541 = vmul.f32 %v4516, %v4516
  %v4542 = vmul.f32 %v4517, %v4517
  %v4543 = vmul.f32 %v4518, %v4518
  %v4544 = vmul.f32 %v4519, %v4519
  %v4545 = vmul.f32 %v4520, %v4520
  %v4546 = vmul.f32 %v4521, %v4521
  %v4547 = vmul.f32 %v4522, %v4522
  %v4548 = vmul.f32 %v4523, %v4523
  %v4549 = vmul.f32 %v4524, %v4524
  %v4550 = vmul.f32 %v4525, %v4525
  %v4551 = vmul.f32 %v4526, %v4526
  %v4552 = vmul.f32 %v4527, %v4527
  %v4553 = vmul.f32 %v4528, %v4528
  %v4554 = vmul.f32 %v4529, %v4529
  %v4555 = vmul.f32 %v4530, %v4530
  %v4556 = vmul.f32 %v4531, %v4531
  %v4557 = vmul.f32 %v4532, %v4532
  %v4558 = vadd.f32 %v4533, %v4534
  %v4559 = vadd.f32 %v4558, %v4535
  %v4560 = vadd.f32 %v4559, %v4536
  %v4561 = vadd.f32 %v4560, %v4537
  %v4562 = vadd.f32 %v4561, %v4538
  %v4563 = vadd.f32 %v4562, %v4539
  %v4564 = vadd.f32 %v4563, %v4540
  %v4565 = vadd.f32 %v4564, %v4541
  %v4566 = vadd.f32 %v4565, %v4542
  %v4567 = vadd.f32 %v4566, %v4543
  %v4568 = vadd.f32 %v4567, %v4544
  %v4569 = vadd.f32 %v4568, %v4545
  %v4570 = vadd.f32 %v4569, %v4546
  %v4571 = vadd.f32 %v4570, %v4547
  %v4572 = vadd.f32 %v4571, %v4548
  %v4573 = vadd.f32 %v4572, %v4549
  %v4574 = vadd.f32 %v4573, %v4550
  %v4575 = vadd.f32 %v4574, %v4551
  %v4576 = vadd.f32 %v4575, %v4552
  %v4577 = vadd.f32 %v4576, %v4553
  %v4578 = vadd.f32 %v4577, %v4554
  %v4579 = vadd.f32 %v4578, %v4555
  %v4580 = vadd.f32 %v4579, %v4556
  %v4581 = vadd.f32 %v4580, %v4557
  %v4582 = vrot.slane %v4581, 4
  %v4583 = vadd.f32 %v4581, %v4582
  %v4584 = vrot.slane %v4583, 2
  %v4585 = vadd.f32 %v4583, %v4584
  %v4586 = vrot.slane %v4585, 1
  %v4587 = vadd.f32 %v4585, %v4586
  %v4588 = vmul.f32 %v4587, %v297
  %v4589 = vadd.f32 %v4588, 1e-05
  %v4590 = vrsqrt.pop %v4589
  %v4591 = vmul.f32 %v4508, %v4590
  %v4592 = vmul.f32 %v4509, %v4590
  %v4593 = vmul.f32 %v4510, %v4590
  %v4594 = vmul.f32 %v4511, %v4590
  %v4595 = vmul.f32 %v4512, %v4590
  %v4596 = vmul.f32 %v4513, %v4590
  %v4597 = vmul.f32 %v4514, %v4590
  %v4598 = vmul.f32 %v4515, %v4590
  %v4599 = vmul.f32 %v4516, %v4590
  %v4600 = vmul.f32 %v4517, %v4590
  %v4601 = vmul.f32 %v4518, %v4590
  %v4602 = vmul.f32 %v4519, %v4590
  %v4603 = vmul.f32 %v4520, %v4590
  %v4604 = vmul.f32 %v4521, %v4590
  %v4605 = vmul.f32 %v4522, %v4590
  %v4606 = vmul.f32 %v4523, %v4590
  %v4607 = vmul.f32 %v4524, %v4590
  %v4608 = vmul.f32 %v4525, %v4590
  %v4609 = vmul.f32 %v4526, %v4590
  %v4610 = vmul.f32 %v4527, %v4590
  %v4611 = vmul.f32 %v4528, %v4590
  %v4612 = vmul.f32 %v4529, %v4590
  %v4613 = vmul.f32 %v4530, %v4590
  %v4614 = vmul.f32 %v4531, %v4590
  %v4615 = vmul.f32 %v4532, %v4590
  %4616 = vst [vmem:[%s5] sm:$0xff] %v4591
  %4617 = vst [vmem:[%s5 + $0x8] sm:$0xff] %v4592
  %4618 = vst [vmem:[%s5 + $0x10] sm:$0xff] %v4593
  %4619 = vst [vmem:[%s5 + $0x18] sm:$0xff] %v4594
  %4620 = vst [vmem:[%s5 + $0x20] sm:$0xff] %v4595
  %4621 = vst [vmem:[%s5 + $0x28] sm:$0xff] %v4596
  %4622 = vst [vmem:[%s5 + $0x30] sm:$0xff] %v4597
  %4623 = vst [vmem:[%s5 + $0x38] sm:$0xff] %v4598
  %4624 = vst [vmem:[%s5 + $0x40] sm:$0xff] %v4599
  %4625 = vst [vmem:[%s5 + $0x48] sm:$0xff] %v4600
  %4626 = vst [vmem:[%s5 + $0x50] sm:$0xff] %v4601
  %4627 = vst [vmem:[%s5 + $0x58] sm:$0xff] %v4602
  %4628 = vst [vmem:[%s5 + $0x60] sm:$0xff] %v4603
  %4629 = vst [vmem:[%s5 + $0x68] sm:$0xff] %v4604
  %4630 = vst [vmem:[%s5 + $0x70] sm:$0xff] %v4605
  %4631 = vst [vmem:[%s5 + $0x78] sm:$0xff] %v4606
  %4632 = vst [vmem:[%s5 + $0x80] sm:$0xff] %v4607
  %4633 = vst [vmem:[%s5 + $0x88] sm:$0xff] %v4608
  %4634 = vst [vmem:[%s5 + $0x90] sm:$0xff] %v4609
  %4635 = vst [vmem:[%s5 + $0x98] sm:$0xff] %v4610
  %4636 = vst [vmem:[%s5 + $0xa0] sm:$0xff] %v4611
  %4637 = vst [vmem:[%s5 + $0xa8] sm:$0xff] %v4612
  %4638 = vst [vmem:[%s5 + $0xb0] sm:$0xff] %v4613
  %4639 = vst [vmem:[%s5 + $0xb8] sm:$0xff] %v4614
  %4640 = vst [vmem:[%s5 + $0xc0] sm:$0xff] %v4615
  // Predicated region
  $region22: #{bayesian_encoder_forward.3} parent=0 // pred_check
    _
  $region23: #{bayesian_encoder_forward.3} parent=0 // pred_check_branch
    %4642 = sbr.rel (0) target = $region25
  $region24: #{bayesian_encoder_forward.3} parent=0 // pred_region
    _
  $region25: #{bayesian_encoder_forward.3} parent=0 // pred_fallthru
    _
  // Predicated region
  $region26: #{bayesian_encoder_forward.3} parent=0 // pred_check
    _
  $region27: #{bayesian_encoder_forward.3} parent=0 // pred_check_branch
    %4644 = sbr.rel (0) target = $region29
  $region28: #{bayesian_encoder_forward.3} parent=0 // pred_region
    _
  $region29: #{bayesian_encoder_forward.3} parent=0 // pred_fallthru
    _

</llo_original>
